<compile_context>
chip_gen: v5e
topology: v5e:2x2
jax: 0.10.0
libtpu: 0.0.40
codegen_flags: <defaults>
</compile_context>

<pallas_src>
import math

import jax
import jax.numpy as jnp
import numpy as np
from jax.experimental import pallas as pl
from jax.experimental.pallas import tpu as pltpu

BERT_DIM = 768
BP = 8  # batch padded to one sublane group


# --------------------------------------------------------------------------- fused kernel
def _bert_lstm_fused_kernel(x_ref, wih0_ref, wih1_ref, whh_ref, bias_ref,
                            h0_ref, c0_ref, fcw_ref, fcb_ref, out_ref,
                            gates_sc, y_sc):
    """Fused 2-layer bidirectional LSTM + fc.

    x_ref     : (S*Bp, 768) time-major rows (row = t*Bp + b), batch zero-padded to Bp
    wih0_ref  : (768, 8H)   layer-0 W_ih^T, cols = [fwd (i,f,o,g) | bwd (i,f,o,g)]
    wih1_ref  : (2H, 8H)    layer-1 W_ih^T, rows = [fwd-half | bwd-half] of its input
    whh_ref   : (2, 2H, 8H) per-layer block-diagonal W_hh^T (fwd top-left, bwd bottom-right)
    bias_ref  : (2, 1, 8H)  (b_ih + b_hh) per layer, both directions
    h0_ref/c0_ref : (2, Bp, 2H) per-layer [fwd | bwd] initial state
    fcw_ref   : (2H, Dout) fc.weight^T ; fcb_ref : (1, Dout)
    out_ref   : (Bp, Dout)
    gates_sc  : VMEM (S*Bp, 8H) hoisted input gates (reused by both layers)
    y_sc      : VMEM (S*Bp, 2H) layer-0 outputs [fwd | bwd] (feed layer 1, never hit HBM)
    """
    _, Bp, H2 = h0_ref.shape
    H = H2 // 2
    SB = x_ref.shape[0]
    S = SB // Bp

    def gate_step(z, c):
        # z: (Bp, 4H) pre-activations in (i, f, o, g) column order.
        ifo = jax.nn.sigmoid(z[:, :3 * H])          # one contiguous EUP region
        g = jnp.tanh(z[:, 3 * H:])                  # one EUP region
        c = ifo[:, H:2 * H] * c + ifo[:, :H] * g
        h = ifo[:, 2 * H:] * jnp.tanh(c)
        return h, c

    def run_layer(layer, store_y):
        whh_bd = whh_ref[layer]                     # (2H, 8H) block-diagonal
        h = h0_ref[layer]                           # (Bp, 2H) = [h_fwd | h_bwd]
        c0 = c0_ref[layer]
        c_f, c_b = c0[:, :H], c0[:, H:]
        for s in range(S):                          # statically unrolled (S small)
            rf = s * Bp                             # fwd reads time t = s
            rb = (S - 1 - s) * Bp                   # bwd reads time t = S-1-s
            # ONE MXU push per step for both directions (block-diagonal W_hh)
            rec = jnp.dot(h, whh_bd, preferred_element_type=jnp.float32)
            # (8,128)-tile-aligned gate loads from the hoisted-gate scratch
            z_f = gates_sc[rf:rf + Bp, :4 * H] + rec[:, :4 * H]
            z_b = gates_sc[rb:rb + Bp, 4 * H:] + rec[:, 4 * H:]
            h_f, c_f = gate_step(z_f, c_f)
            h_b, c_b = gate_step(z_b, c_b)
            h = jnp.concatenate([h_f, h_b], axis=1)  # (Bp, 2H)
            if store_y:                              # only layer 0 feeds layer 1
                y_sc[rf:rf + Bp, :H] = h_f
                y_sc[rb:rb + Bp, H:] = h_b
        return h                                     # last step = final hidden, both dirs

    # ---- layer 0: one hoisted MXU matmul -> input gates for all steps & both directions
    gates_sc[...] = (jnp.dot(x_ref[...], wih0_ref[...],
                             preferred_element_type=jnp.float32) + bias_ref[0])
    run_layer(0, store_y=True)

    # ---- layer 1: hoisted input-gate matmul over VMEM-resident layer-0 outputs
    gates_sc[...] = (jnp.dot(y_sc[...], wih1_ref[...],
                             preferred_element_type=jnp.float32) + bias_ref[1])
    h_last = run_layer(1, store_y=False)             # (Bp, 2H) = [h_fwd_final | h_bwd_final]

    # ---- dropout: identity (inference)  # TODO(synk): train-mode dropout RNG not replicated
    # ---- fc on the already-concatenated final hidden
    out_ref[...] = (jnp.dot(h_last, fcw_ref[...], preferred_element_type=jnp.float32)
                    + fcb_ref[...])


def _full_block(shape):
    zeros = (0,) * len(shape)
    return pl.BlockSpec(shape, lambda zeros=zeros: zeros)


def _reorder_gates(w):
    """PyTorch LSTM gate order (i,f,g,o) -> kernel order (i,f,o,g) along the leading 4H axis."""
    H = w.shape[0] // 4
    return jnp.concatenate([w[:2 * H], w[3 * H:], w[2 * H:3 * H]], axis=0)


# --------------------------------------------------------------------------- model wrapper
def init_params(key, vocab, hidden_dim, output_size, n_layers=2):
    params = {"lstm": []}
    k_embed, key = jax.random.split(key)
    params["embed"] = 0.02 * jax.random.normal(k_embed, (vocab, BERT_DIM), jnp.float32)

    k = 1.0 / math.sqrt(hidden_dim)
    for layer in range(n_layers):
        d_in = BERT_DIM if layer == 0 else 2 * hidden_dim
        for _direction in range(2):                            # bidirectional
            key, k1, k2, k3, k4 = jax.random.split(key, 5)
            w_ih = jax.random.uniform(k1, (4 * hidden_dim, d_in), jnp.float32, -k, k)
            w_hh = jax.random.uniform(k2, (4 * hidden_dim, hidden_dim), jnp.float32, -k, k)
            b_ih = jax.random.uniform(k3, (4 * hidden_dim,), jnp.float32, -k, k)
            b_hh = jax.random.uniform(k4, (4 * hidden_dim,), jnp.float32, -k, k)
            params["lstm"].append((w_ih, w_hh, b_ih, b_hh))

    kf = 1.0 / math.sqrt(2 * hidden_dim)
    key, k1, k2 = jax.random.split(key, 3)
    params["fc_w"] = jax.random.uniform(k1, (output_size, 2 * hidden_dim), jnp.float32, -kf, kf)
    params["fc_b"] = jax.random.uniform(k2, (output_size,), jnp.float32, -kf, kf)
    return params


def init_hidden(batch_size, hidden_dim, n_layers=2):
    shape = (n_layers * 2, batch_size, hidden_dim)
    return jnp.zeros(shape, jnp.float32), jnp.zeros(shape, jnp.float32)


def bert_lstm_forward(params, x_ids, hidden, n_layers=2):
    assert n_layers == 2, "fused kernel is specialized to the module default n_layers=2"
    h0_all, c0_all = hidden                                    # (4, B, H)
    B, S = x_ids.shape
    H = h0_all.shape[-1]
    Bp = BP

    # BERT stand-in: time-major embedding gather, batch zero-padded to Bp sublanes
    feats = params["embed"][x_ids.T]                           # (S, B, 768)
    x2d = (jnp.zeros((S, Bp, BERT_DIM), jnp.float32)
           .at[:, :B].set(feats).reshape(S * Bp, BERT_DIM))

    lp = params["lstm"]                                        # [l0f, l0b, l1f, l1b]

    def wih_T(idx):
        return _reorder_gates(lp[idx][0]).T                    # (D_in, 4H)

    def whh_T(idx):
        return _reorder_gates(lp[idx][1]).T                    # (H, 4H)

    def bias_dir(idx):
        return _reorder_gates(lp[idx][2] + lp[idx][3])         # (4H,)

    wih0 = jnp.concatenate([wih_T(0), wih_T(1)], axis=1)       # (768, 8H)
    wih1 = jnp.concatenate([wih_T(2), wih_T(3)], axis=1)       # (2H, 8H)

    def block_diag(idx_f, idx_b):                              # (2H, 8H) fwd/bwd W_hh^T
        z = jnp.zeros((2 * H, 8 * H), jnp.float32)
        z = z.at[:H, :4 * H].set(whh_T(idx_f))
        z = z.at[H:, 4 * H:].set(whh_T(idx_b))
        return z

    whh = jnp.stack([block_diag(0, 1), block_diag(2, 3)])      # (2, 2H, 8H)

    bias = jnp.stack([jnp.concatenate([bias_dir(0), bias_dir(1)]),
                      jnp.concatenate([bias_dir(2), bias_dir(3)])]).reshape(2, 1, 8 * H)

    def pad_state(a):                                          # (4,B,H) -> (2,Bp,2H)
        a = jnp.zeros((4, Bp, H), jnp.float32).at[:, :B].set(a.astype(jnp.float32))
        return jnp.concatenate([a[0::2], a[1::2]], axis=-1)    # [fwd | bwd] per layer

    h0s, c0s = pad_state(h0_all), pad_state(c0_all)

    fcw = params["fc_w"].T                                     # (2H, Dout)
    fcb = params["fc_b"].reshape(1, -1)
    dout = fcb.shape[-1]

    args = (x2d, wih0, wih1, whh, bias, h0s, c0s, fcw, fcb)

    out = pl.pallas_call(
        _bert_lstm_fused_kernel,
        out_shape=jax.ShapeDtypeStruct((Bp, dout), jnp.float32),
        in_specs=[_full_block(a.shape) for a in args],
        out_specs=_full_block((Bp, dout)),
        scratch_shapes=[pltpu.VMEM((S * Bp, 8 * H), jnp.float32),   # hoisted gates
                        pltpu.VMEM((S * Bp, 2 * H), jnp.float32)],  # layer-0 outputs
        compiler_params=pltpu.CompilerParams(vmem_limit_bytes=32 * 1024 * 1024),
    )(*args)
    return out[:B]


# --------------------------------------------------------------------------- pure-JAX reference
def _ref_lstm_dir(x_seq, w_ih, w_hh, b_ih, b_hh, h0, c0):
    H = h0.shape[-1]
    h, c = h0, c0
    ys = []
    for t in range(x_seq.shape[0]):
        gates = x_seq[t] @ w_ih.T + b_ih + h @ w_hh.T + b_hh
        i = jax.nn.sigmoid(gates[:, :H]); f = jax.nn.sigmoid(gates[:, H:2 * H])
        g = jnp.tanh(gates[:, 2 * H:3 * H]); o = jax.nn.sigmoid(gates[:, 3 * H:])
        c = f * c + i * g
        h = o * jnp.tanh(c)
        ys.append(h)
    return jnp.stack(ys), h


def ref_forward(params, x_ids, hidden, n_layers=2):
    h0_all, c0_all = hidden
    layer_in = jnp.transpose(params["embed"][x_ids], (1, 0, 2))
    h_finals = []
    for layer in range(n_layers):
        outs = []
        for d in range(2):
            idx = 2 * layer + d
            w_ih, w_hh, b_ih, b_hh = params["lstm"][idx]
            x_dir = layer_in if d == 0 else layer_in[::-1]
            y, h_last = _ref_lstm_dir(x_dir, w_ih, w_hh, b_ih, b_hh, h0_all[idx], c0_all[idx])
            if d == 1:
                y = y[::-1]
            outs.append(y)
            h_finals.append(h_last)
        layer_in = jnp.concatenate(outs, axis=-1)
    hid = jnp.concatenate([h_finals[-2], h_finals[-1]], axis=-1)
    return hid @ params["fc_w"].T + params["fc_b"]


# --------------------------------------------------------------------------- main
if __name__ == "__main__":
    BATCH, SEQ, HIDDEN, OUT, VOCAB = 2, 8, 32, 4, 100

    key = jax.random.PRNGKey(0)
    k_params, k_ids = jax.random.split(key)
    params = init_params(k_params, VOCAB, HIDDEN, OUT)
    x_ids = jax.random.randint(k_ids, (BATCH, SEQ), 0, VOCAB, dtype=jnp.int32)
    hidden = init_hidden(BATCH, HIDDEN)

    forward = jax.jit(bert_lstm_forward)
    out = jax.block_until_ready(forward(params, x_ids, hidden))

    ref = jax.block_until_ready(ref_forward(params, x_ids, hidden))
    np.testing.assert_allclose(np.asarray(out), np.asarray(ref), atol=2e-4, rtol=2e-4)
    assert out.shape == (BATCH, OUT)

    print("KERNEL_OK")
</pallas_src>

<mosaic_0001>
module attributes {stable_mosaic.version = 11 : i64} {
  func.func @_bert_lstm_fused_kernel(%arg0: memref<64x768xf32, #tpu.memory_space<vmem>>, %arg1: memref<768x256xf32, #tpu.memory_space<vmem>>, %arg2: memref<64x256xf32, #tpu.memory_space<vmem>>, %arg3: memref<2x64x256xf32, #tpu.memory_space<vmem>>, %arg4: memref<2x1x256xf32, #tpu.memory_space<vmem>>, %arg5: memref<2x8x64xf32, #tpu.memory_space<vmem>>, %arg6: memref<2x8x64xf32, #tpu.memory_space<vmem>>, %arg7: memref<64x4xf32, #tpu.memory_space<vmem>>, %arg8: memref<1x4xf32, #tpu.memory_space<vmem>>, %arg9: memref<8x4xf32, #tpu.memory_space<vmem>>, %arg10: memref<64x256xf32, #tpu.memory_space<vmem>>, %arg11: memref<64x64xf32, #tpu.memory_space<vmem>>) attributes {dimension_semantics = [], scalar_prefetch = 0 : i64, scratch_operands = 2 : i64, tpu.core_type = #tpu.core_type<tc>} {
    %c0 = arith.constant 0 : index
    %c0_0 = arith.constant 0 : index
    %0 = vector.load %arg0[%c0, %c0_0] : memref<64x768xf32, #tpu.memory_space<vmem>>, vector<64x768xf32>
    %c0_1 = arith.constant 0 : index
    %c0_2 = arith.constant 0 : index
    %1 = vector.load %arg1[%c0_1, %c0_2] : memref<768x256xf32, #tpu.memory_space<vmem>>, vector<768x256xf32>
    %cst = arith.constant dense<0.000000e+00> : vector<64x256xf32>
    %2 = tpu.matmul %0, %1, %cst {dimension_numbers = #tpu.dot_dimension_numbers<[1], [0], [0], [1], [0, 0, 1, 1], [], []>} : vector<64x768xf32>, vector<768x256xf32>, vector<64x256xf32> -> vector<64x256xf32>
    %c0_3 = arith.constant 0 : index
    %c0_4 = arith.constant 0 : index
    %c0_5 = arith.constant 0 : index
    %3 = vector.load %arg4[%c0_3, %c0_4, %c0_5] : memref<2x1x256xf32, #tpu.memory_space<vmem>>, vector<1x1x256xf32>
    %4 = vector.shape_cast %3 : vector<1x1x256xf32> to vector<1x256xf32>
    %5 = vector.broadcast %4 : vector<1x256xf32> to vector<64x256xf32>
    %6 = arith.addf %2, %5 : vector<64x256xf32>
    %c0_6 = arith.constant 0 : index
    %c0_7 = arith.constant 0 : index
    %7 = vector.load %arg10[%c0_6, %c0_7] : memref<64x256xf32, #tpu.memory_space<vmem>>, vector<64x256xf32>
    tpu.vector_store %arg10[%c0_6, %c0_7], %6 {strides = array<i32>} : memref<64x256xf32, #tpu.memory_space<vmem>>, vector<64x256xf32>,
    %c0_8 = arith.constant 0 : index
    %c0_9 = arith.constant 0 : index
    %c0_10 = arith.constant 0 : index
    %8 = vector.load %arg3[%c0_8, %c0_9, %c0_10] : memref<2x64x256xf32, #tpu.memory_space<vmem>>, vector<1x64x256xf32>
    %9 = vector.shape_cast %8 : vector<1x64x256xf32> to vector<64x256xf32>
    %c0_11 = arith.constant 0 : index
    %c0_12 = arith.constant 0 : index
    %c0_13 = arith.constant 0 : index
    %10 = vector.load %arg5[%c0_11, %c0_12, %c0_13] : memref<2x8x64xf32, #tpu.memory_space<vmem>>, vector<1x8x64xf32>
    %11 = vector.shape_cast %10 : vector<1x8x64xf32> to vector<8x64xf32>
    %c0_14 = arith.constant 0 : index
    %c0_15 = arith.constant 0 : index
    %c0_16 = arith.constant 0 : index
    %12 = vector.load %arg6[%c0_14, %c0_15, %c0_16] : memref<2x8x64xf32, #tpu.memory_space<vmem>>, vector<1x8x64xf32>
    %13 = vector.shape_cast %12 : vector<1x8x64xf32> to vector<8x64xf32>
    %14 = vector.extract_strided_slice %13 {offsets = [0, 0], sizes = [8, 32], strides = [1, 1]} : vector<8x64xf32> to vector<8x32xf32>
    %15 = vector.extract_strided_slice %13 {offsets = [0, 32], sizes = [8, 32], strides = [1, 1]} : vector<8x64xf32> to vector<8x32xf32>
    %cst_17 = arith.constant dense<0.000000e+00> : vector<8x256xf32>
    %16 = tpu.matmul %11, %9, %cst_17 {dimension_numbers = #tpu.dot_dimension_numbers<[1], [0], [0], [1], [0, 0, 1, 1], [], []>} : vector<8x64xf32>, vector<64x256xf32>, vector<8x256xf32> -> vector<8x256xf32>
    %c0_18 = arith.constant 0 : index
    %c0_19 = arith.constant 0 : index
    %17 = vector.load %arg10[%c0_18, %c0_19] : memref<64x256xf32, #tpu.memory_space<vmem>>, vector<8x128xf32>
    %18 = vector.extract_strided_slice %16 {offsets = [0, 0], sizes = [8, 128], strides = [1, 1]} : vector<8x256xf32> to vector<8x128xf32>
    %19 = arith.addf %17, %18 : vector<8x128xf32>
    %c56 = arith.constant 56 : index
    %c128 = arith.constant 128 : index
    %20 = vector.load %arg10[%c56, %c128] : memref<64x256xf32, #tpu.memory_space<vmem>>, vector<8x128xf32>
    %21 = vector.extract_strided_slice %16 {offsets = [0, 128], sizes = [8, 128], strides = [1, 1]} : vector<8x256xf32> to vector<8x128xf32>
    %22 = arith.addf %20, %21 : vector<8x128xf32>
    %23 = vector.extract_strided_slice %19 {offsets = [0, 0], sizes = [8, 96], strides = [1, 1]} : vector<8x128xf32> to vector<8x96xf32>
    %24 = arith.negf %23 : vector<8x96xf32>
    %25 = math.exp %24 : vector<8x96xf32>
    %cst_20 = arith.constant 1.000000e+00 : f32
    %26 = vector.broadcast %cst_20 : f32 to vector<8x96xf32>
    %27 = arith.addf %26, %25 : vector<8x96xf32>
    %28 = arith.divf %26, %27 : vector<8x96xf32>
    %29 = vector.extract_strided_slice %19 {offsets = [0, 96], sizes = [8, 32], strides = [1, 1]} : vector<8x128xf32> to vector<8x32xf32>
    %30 = math.tanh %29 : vector<8x32xf32>
    %31 = vector.extract_strided_slice %28 {offsets = [0, 32], sizes = [8, 32], strides = [1, 1]} : vector<8x96xf32> to vector<8x32xf32>
    %32 = arith.mulf %31, %14 : vector<8x32xf32>
    %33 = vector.extract_strided_slice %28 {offsets = [0, 0], sizes = [8, 32], strides = [1, 1]} : vector<8x96xf32> to vector<8x32xf32>
    %34 = arith.mulf %33, %30 : vector<8x32xf32>
    %35 = arith.addf %32, %34 : vector<8x32xf32>
    %36 = vector.extract_strided_slice %28 {offsets = [0, 64], sizes = [8, 32], strides = [1, 1]} : vector<8x96xf32> to vector<8x32xf32>
    %37 = math.tanh %35 : vector<8x32xf32>
    %38 = arith.mulf %36, %37 : vector<8x32xf32>
    %39 = vector.extract_strided_slice %22 {offsets = [0, 0], sizes = [8, 96], strides = [1, 1]} : vector<8x128xf32> to vector<8x96xf32>
    %40 = arith.negf %39 : vector<8x96xf32>
    %41 = math.exp %40 : vector<8x96xf32>
    %cst_21 = arith.constant 1.000000e+00 : f32
    %42 = vector.broadcast %cst_21 : f32 to vector<8x96xf32>
    %43 = arith.addf %42, %41 : vector<8x96xf32>
    %44 = arith.divf %42, %43 : vector<8x96xf32>
    %45 = vector.extract_strided_slice %22 {offsets = [0, 96], sizes = [8, 32], strides = [1, 1]} : vector<8x128xf32> to vector<8x32xf32>
    %46 = math.tanh %45 : vector<8x32xf32>
    %47 = vector.extract_strided_slice %44 {offsets = [0, 32], sizes = [8, 32], strides = [1, 1]} : vector<8x96xf32> to vector<8x32xf32>
    %48 = arith.mulf %47, %15 : vector<8x32xf32>
    %49 = vector.extract_strided_slice %44 {offsets = [0, 0], sizes = [8, 32], strides = [1, 1]} : vector<8x96xf32> to vector<8x32xf32>
    %50 = arith.mulf %49, %46 : vector<8x32xf32>
    %51 = arith.addf %48, %50 : vector<8x32xf32>
    %52 = vector.extract_strided_slice %44 {offsets = [0, 64], sizes = [8, 32], strides = [1, 1]} : vector<8x96xf32> to vector<8x32xf32>
    %53 = math.tanh %51 : vector<8x32xf32>
    %54 = arith.mulf %52, %53 : vector<8x32xf32>
    %55 = tpu.concatenate %38, %54 in 1 : vector<8x32xf32>, vector<8x32xf32> -> vector<8x64xf32>
    %c0_22 = arith.constant 0 : index
    %c0_23 = arith.constant 0 : index
    %56 = vector.load %arg11[%c0_22, %c0_23] : memref<64x64xf32, #tpu.memory_space<vmem>>, vector<8x32xf32>
    tpu.vector_store %arg11[%c0_22, %c0_23], %38 {strides = array<i32>} : memref<64x64xf32, #tpu.memory_space<vmem>>, vector<8x32xf32>,
    %c56_24 = arith.constant 56 : index
    %c32 = arith.constant 32 : index
    %57 = vector.load %arg11[%c56_24, %c32] : memref<64x64xf32, #tpu.memory_space<vmem>>, vector<8x32xf32>
    tpu.vector_store %arg11[%c56_24, %c32], %54 {strides = array<i32>} : memref<64x64xf32, #tpu.memory_space<vmem>>, vector<8x32xf32>,
    %cst_25 = arith.constant dense<0.000000e+00> : vector<8x256xf32>
    %58 = tpu.matmul %55, %9, %cst_25 {dimension_numbers = #tpu.dot_dimension_numbers<[1], [0], [0], [1], [0, 0, 1, 1], [], []>} : vector<8x64xf32>, vector<64x256xf32>, vector<8x256xf32> -> vector<8x256xf32>
    %c8 = arith.constant 8 : index
    %c0_26 = arith.constant 0 : index
    %59 = vector.load %arg10[%c8, %c0_26] : memref<64x256xf32, #tpu.memory_space<vmem>>, vector<8x128xf32>
    %60 = vector.extract_strided_slice %58 {offsets = [0, 0], sizes = [8, 128], strides = [1, 1]} : vector<8x256xf32> to vector<8x128xf32>
    %61 = arith.addf %59, %60 : vector<8x128xf32>
    %c48 = arith.constant 48 : index
    %c128_27 = arith.constant 128 : index
    %62 = vector.load %arg10[%c48, %c128_27] : memref<64x256xf32, #tpu.memory_space<vmem>>, vector<8x128xf32>
    %63 = vector.extract_strided_slice %58 {offsets = [0, 128], sizes = [8, 128], strides = [1, 1]} : vector<8x256xf32> to vector<8x128xf32>
    %64 = arith.addf %62, %63 : vector<8x128xf32>
    %65 = vector.extract_strided_slice %61 {offsets = [0, 0], sizes = [8, 96], strides = [1, 1]} : vector<8x128xf32> to vector<8x96xf32>
    %66 = arith.negf %65 : vector<8x96xf32>
    %67 = math.exp %66 : vector<8x96xf32>
    %cst_28 = arith.constant 1.000000e+00 : f32
    %68 = vector.broadcast %cst_28 : f32 to vector<8x96xf32>
    %69 = arith.addf %68, %67 : vector<8x96xf32>
    %70 = arith.divf %68, %69 : vector<8x96xf32>
    %71 = vector.extract_strided_slice %61 {offsets = [0, 96], sizes = [8, 32], strides = [1, 1]} : vector<8x128xf32> to vector<8x32xf32>
    %72 = math.tanh %71 : vector<8x32xf32>
    %73 = vector.extract_strided_slice %70 {offsets = [0, 32], sizes = [8, 32], strides = [1, 1]} : vector<8x96xf32> to vector<8x32xf32>
    %74 = arith.mulf %73, %35 : vector<8x32xf32>
    %75 = vector.extract_strided_slice %70 {offsets = [0, 0], sizes = [8, 32], strides = [1, 1]} : vector<8x96xf32> to vector<8x32xf32>
    %76 = arith.mulf %75, %72 : vector<8x32xf32>
    %77 = arith.addf %74, %76 : vector<8x32xf32>
    %78 = vector.extract_strided_slice %70 {offsets = [0, 64], sizes = [8, 32], strides = [1, 1]} : vector<8x96xf32> to vector<8x32xf32>
    %79 = math.tanh %77 : vector<8x32xf32>
    %80 = arith.mulf %78, %79 : vector<8x32xf32>
    %81 = vector.extract_strided_slice %64 {offsets = [0, 0], sizes = [8, 96], strides = [1, 1]} : vector<8x128xf32> to vector<8x96xf32>
    %82 = arith.negf %81 : vector<8x96xf32>
    %83 = math.exp %82 : vector<8x96xf32>
    %cst_29 = arith.constant 1.000000e+00 : f32
    %84 = vector.broadcast %cst_29 : f32 to vector<8x96xf32>
    %85 = arith.addf %84, %83 : vector<8x96xf32>
    %86 = arith.divf %84, %85 : vector<8x96xf32>
    %87 = vector.extract_strided_slice %64 {offsets = [0, 96], sizes = [8, 32], strides = [1, 1]} : vector<8x128xf32> to vector<8x32xf32>
    %88 = math.tanh %87 : vector<8x32xf32>
    %89 = vector.extract_strided_slice %86 {offsets = [0, 32], sizes = [8, 32], strides = [1, 1]} : vector<8x96xf32> to vector<8x32xf32>
    %90 = arith.mulf %89, %51 : vector<8x32xf32>
    %91 = vector.extract_strided_slice %86 {offsets = [0, 0], sizes = [8, 32], strides = [1, 1]} : vector<8x96xf32> to vector<8x32xf32>
    %92 = arith.mulf %91, %88 : vector<8x32xf32>
    %93 = arith.addf %90, %92 : vector<8x32xf32>
    %94 = vector.extract_strided_slice %86 {offsets = [0, 64], sizes = [8, 32], strides = [1, 1]} : vector<8x96xf32> to vector<8x32xf32>
    %95 = math.tanh %93 : vector<8x32xf32>
    %96 = arith.mulf %94, %95 : vector<8x32xf32>
    %97 = tpu.concatenate %80, %96 in 1 : vector<8x32xf32>, vector<8x32xf32> -> vector<8x64xf32>
    %c8_30 = arith.constant 8 : index
    %c0_31 = arith.constant 0 : index
    %98 = vector.load %arg11[%c8_30, %c0_31] : memref<64x64xf32, #tpu.memory_space<vmem>>, vector<8x32xf32>
    tpu.vector_store %arg11[%c8_30, %c0_31], %80 {strides = array<i32>} : memref<64x64xf32, #tpu.memory_space<vmem>>, vector<8x32xf32>,
    %c48_32 = arith.constant 48 : index
    %c32_33 = arith.constant 32 : index
    %99 = vector.load %arg11[%c48_32, %c32_33] : memref<64x64xf32, #tpu.memory_space<vmem>>, vector<8x32xf32>
    tpu.vector_store %arg11[%c48_32, %c32_33], %96 {strides = array<i32>} : memref<64x64xf32, #tpu.memory_space<vmem>>, vector<8x32xf32>,
    %cst_34 = arith.constant dense<0.000000e+00> : vector<8x256xf32>
    %100 = tpu.matmul %97, %9, %cst_34 {dimension_numbers = #tpu.dot_dimension_numbers<[1], [0], [0], [1], [0, 0, 1, 1], [], []>} : vector<8x64xf32>, vector<64x256xf32>, vector<8x256xf32> -> vector<8x256xf32>
    %c16 = arith.constant 16 : index
    %c0_35 = arith.constant 0 : index
    %101 = vector.load %arg10[%c16, %c0_35] : memref<64x256xf32, #tpu.memory_space<vmem>>, vector<8x128xf32>
    %102 = vector.extract_strided_slice %100 {offsets = [0, 0], sizes = [8, 128], strides = [1, 1]} : vector<8x256xf32> to vector<8x128xf32>
    %103 = arith.addf %101, %102 : vector<8x128xf32>
    %c40 = arith.constant 40 : index
    %c128_36 = arith.constant 128 : index
    %104 = vector.load %arg10[%c40, %c128_36] : memref<64x256xf32, #tpu.memory_space<vmem>>, vector<8x128xf32>
    %105 = vector.extract_strided_slice %100 {offsets = [0, 128], sizes = [8, 128], strides = [1, 1]} : vector<8x256xf32> to vector<8x128xf32>
    %106 = arith.addf %104, %105 : vector<8x128xf32>
    %107 = vector.extract_strided_slice %103 {offsets = [0, 0], sizes = [8, 96], strides = [1, 1]} : vector<8x128xf32> to vector<8x96xf32>
    %108 = arith.negf %107 : vector<8x96xf32>
    %109 = math.exp %108 : vector<8x96xf32>
    %cst_37 = arith.constant 1.000000e+00 : f32
    %110 = vector.broadcast %cst_37 : f32 to vector<8x96xf32>
    %111 = arith.addf %110, %109 : vector<8x96xf32>
    %112 = arith.divf %110, %111 : vector<8x96xf32>
    %113 = vector.extract_strided_slice %103 {offsets = [0, 96], sizes = [8, 32], strides = [1, 1]} : vector<8x128xf32> to vector<8x32xf32>
    %114 = math.tanh %113 : vector<8x32xf32>
    %115 = vector.extract_strided_slice %112 {offsets = [0, 32], sizes = [8, 32], strides = [1, 1]} : vector<8x96xf32> to vector<8x32xf32>
    %116 = arith.mulf %115, %77 : vector<8x32xf32>
    %117 = vector.extract_strided_slice %112 {offsets = [0, 0], sizes = [8, 32], strides = [1, 1]} : vector<8x96xf32> to vector<8x32xf32>
    %118 = arith.mulf %117, %114 : vector<8x32xf32>
    %119 = arith.addf %116, %118 : vector<8x32xf32>
    %120 = vector.extract_strided_slice %112 {offsets = [0, 64], sizes = [8, 32], strides = [1, 1]} : vector<8x96xf32> to vector<8x32xf32>
    %121 = math.tanh %119 : vector<8x32xf32>
    %122 = arith.mulf %120, %121 : vector<8x32xf32>
    %123 = vector.extract_strided_slice %106 {offsets = [0, 0], sizes = [8, 96], strides = [1, 1]} : vector<8x128xf32> to vector<8x96xf32>
    %124 = arith.negf %123 : vector<8x96xf32>
    %125 = math.exp %124 : vector<8x96xf32>
    %cst_38 = arith.constant 1.000000e+00 : f32
    %126 = vector.broadcast %cst_38 : f32 to vector<8x96xf32>
    %127 = arith.addf %126, %125 : vector<8x96xf32>
    %128 = arith.divf %126, %127 : vector<8x96xf32>
    %129 = vector.extract_strided_slice %106 {offsets = [0, 96], sizes = [8, 32], strides = [1, 1]} : vector<8x128xf32> to vector<8x32xf32>
    %130 = math.tanh %129 : vector<8x32xf32>
    %131 = vector.extract_strided_slice %128 {offsets = [0, 32], sizes = [8, 32], strides = [1, 1]} : vector<8x96xf32> to vector<8x32xf32>
    %132 = arith.mulf %131, %93 : vector<8x32xf32>
    %133 = vector.extract_strided_slice %128 {offsets = [0, 0], sizes = [8, 32], strides = [1, 1]} : vector<8x96xf32> to vector<8x32xf32>
    %134 = arith.mulf %133, %130 : vector<8x32xf32>
    %135 = arith.addf %132, %134 : vector<8x32xf32>
    %136 = vector.extract_strided_slice %128 {offsets = [0, 64], sizes = [8, 32], strides = [1, 1]} : vector<8x96xf32> to vector<8x32xf32>
    %137 = math.tanh %135 : vector<8x32xf32>
    %138 = arith.mulf %136, %137 : vector<8x32xf32>
    %139 = tpu.concatenate %122, %138 in 1 : vector<8x32xf32>, vector<8x32xf32> -> vector<8x64xf32>
    %c16_39 = arith.constant 16 : index
    %c0_40 = arith.constant 0 : index
    %140 = vector.load %arg11[%c16_39, %c0_40] : memref<64x64xf32, #tpu.memory_space<vmem>>, vector<8x32xf32>
    tpu.vector_store %arg11[%c16_39, %c0_40], %122 {strides = array<i32>} : memref<64x64xf32, #tpu.memory_space<vmem>>, vector<8x32xf32>,
    %c40_41 = arith.constant 40 : index
    %c32_42 = arith.constant 32 : index
    %141 = vector.load %arg11[%c40_41, %c32_42] : memref<64x64xf32, #tpu.memory_space<vmem>>, vector<8x32xf32>
    tpu.vector_store %arg11[%c40_41, %c32_42], %138 {strides = array<i32>} : memref<64x64xf32, #tpu.memory_space<vmem>>, vector<8x32xf32>,
    %cst_43 = arith.constant dense<0.000000e+00> : vector<8x256xf32>
    %142 = tpu.matmul %139, %9, %cst_43 {dimension_numbers = #tpu.dot_dimension_numbers<[1], [0], [0], [1], [0, 0, 1, 1], [], []>} : vector<8x64xf32>, vector<64x256xf32>, vector<8x256xf32> -> vector<8x256xf32>
    %c24 = arith.constant 24 : index
    %c0_44 = arith.constant 0 : index
    %143 = vector.load %arg10[%c24, %c0_44] : memref<64x256xf32, #tpu.memory_space<vmem>>, vector<8x128xf32>
    %144 = vector.extract_strided_slice %142 {offsets = [0, 0], sizes = [8, 128], strides = [1, 1]} : vector<8x256xf32> to vector<8x128xf32>
    %145 = arith.addf %143, %144 : vector<8x128xf32>
    %c32_45 = arith.constant 32 : index
    %c128_46 = arith.constant 128 : index
    %146 = vector.load %arg10[%c32_45, %c128_46] : memref<64x256xf32, #tpu.memory_space<vmem>>, vector<8x128xf32>
    %147 = vector.extract_strided_slice %142 {offsets = [0, 128], sizes = [8, 128], strides = [1, 1]} : vector<8x256xf32> to vector<8x128xf32>
    %148 = arith.addf %146, %147 : vector<8x128xf32>
    %149 = vector.extract_strided_slice %145 {offsets = [0, 0], sizes = [8, 96], strides = [1, 1]} : vector<8x128xf32> to vector<8x96xf32>
    %150 = arith.negf %149 : vector<8x96xf32>
    %151 = math.exp %150 : vector<8x96xf32>
    %cst_47 = arith.constant 1.000000e+00 : f32
    %152 = vector.broadcast %cst_47 : f32 to vector<8x96xf32>
    %153 = arith.addf %152, %151 : vector<8x96xf32>
    %154 = arith.divf %152, %153 : vector<8x96xf32>
    %155 = vector.extract_strided_slice %145 {offsets = [0, 96], sizes = [8, 32], strides = [1, 1]} : vector<8x128xf32> to vector<8x32xf32>
    %156 = math.tanh %155 : vector<8x32xf32>
    %157 = vector.extract_strided_slice %154 {offsets = [0, 32], sizes = [8, 32], strides = [1, 1]} : vector<8x96xf32> to vector<8x32xf32>
    %158 = arith.mulf %157, %119 : vector<8x32xf32>
    %159 = vector.extract_strided_slice %154 {offsets = [0, 0], sizes = [8, 32], strides = [1, 1]} : vector<8x96xf32> to vector<8x32xf32>
    %160 = arith.mulf %159, %156 : vector<8x32xf32>
    %161 = arith.addf %158, %160 : vector<8x32xf32>
    %162 = vector.extract_strided_slice %154 {offsets = [0, 64], sizes = [8, 32], strides = [1, 1]} : vector<8x96xf32> to vector<8x32xf32>
    %163 = math.tanh %161 : vector<8x32xf32>
    %164 = arith.mulf %162, %163 : vector<8x32xf32>
    %165 = vector.extract_strided_slice %148 {offsets = [0, 0], sizes = [8, 96], strides = [1, 1]} : vector<8x128xf32> to vector<8x96xf32>
    %166 = arith.negf %165 : vector<8x96xf32>
    %167 = math.exp %166 : vector<8x96xf32>
    %cst_48 = arith.constant 1.000000e+00 : f32
    %168 = vector.broadcast %cst_48 : f32 to vector<8x96xf32>
    %169 = arith.addf %168, %167 : vector<8x96xf32>
    %170 = arith.divf %168, %169 : vector<8x96xf32>
    %171 = vector.extract_strided_slice %148 {offsets = [0, 96], sizes = [8, 32], strides = [1, 1]} : vector<8x128xf32> to vector<8x32xf32>
    %172 = math.tanh %171 : vector<8x32xf32>
    %173 = vector.extract_strided_slice %170 {offsets = [0, 32], sizes = [8, 32], strides = [1, 1]} : vector<8x96xf32> to vector<8x32xf32>
    %174 = arith.mulf %173, %135 : vector<8x32xf32>
    %175 = vector.extract_strided_slice %170 {offsets = [0, 0], sizes = [8, 32], strides = [1, 1]} : vector<8x96xf32> to vector<8x32xf32>
    %176 = arith.mulf %175, %172 : vector<8x32xf32>
    %177 = arith.addf %174, %176 : vector<8x32xf32>
    %178 = vector.extract_strided_slice %170 {offsets = [0, 64], sizes = [8, 32], strides = [1, 1]} : vector<8x96xf32> to vector<8x32xf32>
    %179 = math.tanh %177 : vector<8x32xf32>
    %180 = arith.mulf %178, %179 : vector<8x32xf32>
    %181 = tpu.concatenate %164, %180 in 1 : vector<8x32xf32>, vector<8x32xf32> -> vector<8x64xf32>
    %c24_49 = arith.constant 24 : index
    %c0_50 = arith.constant 0 : index
    %182 = vector.load %arg11[%c24_49, %c0_50] : memref<64x64xf32, #tpu.memory_space<vmem>>, vector<8x32xf32>
    tpu.vector_store %arg11[%c24_49, %c0_50], %164 {strides = array<i32>} : memref<64x64xf32, #tpu.memory_space<vmem>>, vector<8x32xf32>,
    %c32_51 = arith.constant 32 : index
    %c32_52 = arith.constant 32 : index
    %183 = vector.load %arg11[%c32_51, %c32_52] : memref<64x64xf32, #tpu.memory_space<vmem>>, vector<8x32xf32>
    tpu.vector_store %arg11[%c32_51, %c32_52], %180 {strides = array<i32>} : memref<64x64xf32, #tpu.memory_space<vmem>>, vector<8x32xf32>,
    %cst_53 = arith.constant dense<0.000000e+00> : vector<8x256xf32>
    %184 = tpu.matmul %181, %9, %cst_53 {dimension_numbers = #tpu.dot_dimension_numbers<[1], [0], [0], [1], [0, 0, 1, 1], [], []>} : vector<8x64xf32>, vector<64x256xf32>, vector<8x256xf32> -> vector<8x256xf32>
    %c32_54 = arith.constant 32 : index
    %c0_55 = arith.constant 0 : index
    %185 = vector.load %arg10[%c32_54, %c0_55] : memref<64x256xf32, #tpu.memory_space<vmem>>, vector<8x128xf32>
    %186 = vector.extract_strided_slice %184 {offsets = [0, 0], sizes = [8, 128], strides = [1, 1]} : vector<8x256xf32> to vector<8x128xf32>
    %187 = arith.addf %185, %186 : vector<8x128xf32>
    %c24_56 = arith.constant 24 : index
    %c128_57 = arith.constant 128 : index
    %188 = vector.load %arg10[%c24_56, %c128_57] : memref<64x256xf32, #tpu.memory_space<vmem>>, vector<8x128xf32>
    %189 = vector.extract_strided_slice %184 {offsets = [0, 128], sizes = [8, 128], strides = [1, 1]} : vector<8x256xf32> to vector<8x128xf32>
    %190 = arith.addf %188, %189 : vector<8x128xf32>
    %191 = vector.extract_strided_slice %187 {offsets = [0, 0], sizes = [8, 96], strides = [1, 1]} : vector<8x128xf32> to vector<8x96xf32>
    %192 = arith.negf %191 : vector<8x96xf32>
    %193 = math.exp %192 : vector<8x96xf32>
    %cst_58 = arith.constant 1.000000e+00 : f32
    %194 = vector.broadcast %cst_58 : f32 to vector<8x96xf32>
    %195 = arith.addf %194, %193 : vector<8x96xf32>
    %196 = arith.divf %194, %195 : vector<8x96xf32>
    %197 = vector.extract_strided_slice %187 {offsets = [0, 96], sizes = [8, 32], strides = [1, 1]} : vector<8x128xf32> to vector<8x32xf32>
    %198 = math.tanh %197 : vector<8x32xf32>
    %199 = vector.extract_strided_slice %196 {offsets = [0, 32], sizes = [8, 32], strides = [1, 1]} : vector<8x96xf32> to vector<8x32xf32>
    %200 = arith.mulf %199, %161 : vector<8x32xf32>
    %201 = vector.extract_strided_slice %196 {offsets = [0, 0], sizes = [8, 32], strides = [1, 1]} : vector<8x96xf32> to vector<8x32xf32>
    %202 = arith.mulf %201, %198 : vector<8x32xf32>
    %203 = arith.addf %200, %202 : vector<8x32xf32>
    %204 = vector.extract_strided_slice %196 {offsets = [0, 64], sizes = [8, 32], strides = [1, 1]} : vector<8x96xf32> to vector<8x32xf32>
    %205 = math.tanh %203 : vector<8x32xf32>
    %206 = arith.mulf %204, %205 : vector<8x32xf32>
    %207 = vector.extract_strided_slice %190 {offsets = [0, 0], sizes = [8, 96], strides = [1, 1]} : vector<8x128xf32> to vector<8x96xf32>
    %208 = arith.negf %207 : vector<8x96xf32>
    %209 = math.exp %208 : vector<8x96xf32>
    %cst_59 = arith.constant 1.000000e+00 : f32
    %210 = vector.broadcast %cst_59 : f32 to vector<8x96xf32>
    %211 = arith.addf %210, %209 : vector<8x96xf32>
    %212 = arith.divf %210, %211 : vector<8x96xf32>
    %213 = vector.extract_strided_slice %190 {offsets = [0, 96], sizes = [8, 32], strides = [1, 1]} : vector<8x128xf32> to vector<8x32xf32>
    %214 = math.tanh %213 : vector<8x32xf32>
    %215 = vector.extract_strided_slice %212 {offsets = [0, 32], sizes = [8, 32], strides = [1, 1]} : vector<8x96xf32> to vector<8x32xf32>
    %216 = arith.mulf %215, %177 : vector<8x32xf32>
    %217 = vector.extract_strided_slice %212 {offsets = [0, 0], sizes = [8, 32], strides = [1, 1]} : vector<8x96xf32> to vector<8x32xf32>
    %218 = arith.mulf %217, %214 : vector<8x32xf32>
    %219 = arith.addf %216, %218 : vector<8x32xf32>
    %220 = vector.extract_strided_slice %212 {offsets = [0, 64], sizes = [8, 32], strides = [1, 1]} : vector<8x96xf32> to vector<8x32xf32>
    %221 = math.tanh %219 : vector<8x32xf32>
    %222 = arith.mulf %220, %221 : vector<8x32xf32>
    %223 = tpu.concatenate %206, %222 in 1 : vector<8x32xf32>, vector<8x32xf32> -> vector<8x64xf32>
    %c32_60 = arith.constant 32 : index
    %c0_61 = arith.constant 0 : index
    %224 = vector.load %arg11[%c32_60, %c0_61] : memref<64x64xf32, #tpu.memory_space<vmem>>, vector<8x32xf32>
    tpu.vector_store %arg11[%c32_60, %c0_61], %206 {strides = array<i32>} : memref<64x64xf32, #tpu.memory_space<vmem>>, vector<8x32xf32>,
    %c24_62 = arith.constant 24 : index
    %c32_63 = arith.constant 32 : index
    %225 = vector.load %arg11[%c24_62, %c32_63] : memref<64x64xf32, #tpu.memory_space<vmem>>, vector<8x32xf32>
    tpu.vector_store %arg11[%c24_62, %c32_63], %222 {strides = array<i32>} : memref<64x64xf32, #tpu.memory_space<vmem>>, vector<8x32xf32>,
    %cst_64 = arith.constant dense<0.000000e+00> : vector<8x256xf32>
    %226 = tpu.matmul %223, %9, %cst_64 {dimension_numbers = #tpu.dot_dimension_numbers<[1], [0], [0], [1], [0, 0, 1, 1], [], []>} : vector<8x64xf32>, vector<64x256xf32>, vector<8x256xf32> -> vector<8x256xf32>
    %c40_65 = arith.constant 40 : index
    %c0_66 = arith.constant 0 : index
    %227 = vector.load %arg10[%c40_65, %c0_66] : memref<64x256xf32, #tpu.memory_space<vmem>>, vector<8x128xf32>
    %228 = vector.extract_strided_slice %226 {offsets = [0, 0], sizes = [8, 128], strides = [1, 1]} : vector<8x256xf32> to vector<8x128xf32>
    %229 = arith.addf %227, %228 : vector<8x128xf32>
    %c16_67 = arith.constant 16 : index
    %c128_68 = arith.constant 128 : index
    %230 = vector.load %arg10[%c16_67, %c128_68] : memref<64x256xf32, #tpu.memory_space<vmem>>, vector<8x128xf32>
    %231 = vector.extract_strided_slice %226 {offsets = [0, 128], sizes = [8, 128], strides = [1, 1]} : vector<8x256xf32> to vector<8x128xf32>
    %232 = arith.addf %230, %231 : vector<8x128xf32>
    %233 = vector.extract_strided_slice %229 {offsets = [0, 0], sizes = [8, 96], strides = [1, 1]} : vector<8x128xf32> to vector<8x96xf32>
    %234 = arith.negf %233 : vector<8x96xf32>
    %235 = math.exp %234 : vector<8x96xf32>
    %cst_69 = arith.constant 1.000000e+00 : f32
    %236 = vector.broadcast %cst_69 : f32 to vector<8x96xf32>
    %237 = arith.addf %236, %235 : vector<8x96xf32>
    %238 = arith.divf %236, %237 : vector<8x96xf32>
    %239 = vector.extract_strided_slice %229 {offsets = [0, 96], sizes = [8, 32], strides = [1, 1]} : vector<8x128xf32> to vector<8x32xf32>
    %240 = math.tanh %239 : vector<8x32xf32>
    %241 = vector.extract_strided_slice %238 {offsets = [0, 32], sizes = [8, 32], strides = [1, 1]} : vector<8x96xf32> to vector<8x32xf32>
    %242 = arith.mulf %241, %203 : vector<8x32xf32>
    %243 = vector.extract_strided_slice %238 {offsets = [0, 0], sizes = [8, 32], strides = [1, 1]} : vector<8x96xf32> to vector<8x32xf32>
    %244 = arith.mulf %243, %240 : vector<8x32xf32>
    %245 = arith.addf %242, %244 : vector<8x32xf32>
    %246 = vector.extract_strided_slice %238 {offsets = [0, 64], sizes = [8, 32], strides = [1, 1]} : vector<8x96xf32> to vector<8x32xf32>
    %247 = math.tanh %245 : vector<8x32xf32>
    %248 = arith.mulf %246, %247 : vector<8x32xf32>
    %249 = vector.extract_strided_slice %232 {offsets = [0, 0], sizes = [8, 96], strides = [1, 1]} : vector<8x128xf32> to vector<8x96xf32>
    %250 = arith.negf %249 : vector<8x96xf32>
    %251 = math.exp %250 : vector<8x96xf32>
    %cst_70 = arith.constant 1.000000e+00 : f32
    %252 = vector.broadcast %cst_70 : f32 to vector<8x96xf32>
    %253 = arith.addf %252, %251 : vector<8x96xf32>
    %254 = arith.divf %252, %253 : vector<8x96xf32>
    %255 = vector.extract_strided_slice %232 {offsets = [0, 96], sizes = [8, 32], strides = [1, 1]} : vector<8x128xf32> to vector<8x32xf32>
    %256 = math.tanh %255 : vector<8x32xf32>
    %257 = vector.extract_strided_slice %254 {offsets = [0, 32], sizes = [8, 32], strides = [1, 1]} : vector<8x96xf32> to vector<8x32xf32>
    %258 = arith.mulf %257, %219 : vector<8x32xf32>
    %259 = vector.extract_strided_slice %254 {offsets = [0, 0], sizes = [8, 32], strides = [1, 1]} : vector<8x96xf32> to vector<8x32xf32>
    %260 = arith.mulf %259, %256 : vector<8x32xf32>
    %261 = arith.addf %258, %260 : vector<8x32xf32>
    %262 = vector.extract_strided_slice %254 {offsets = [0, 64], sizes = [8, 32], strides = [1, 1]} : vector<8x96xf32> to vector<8x32xf32>
    %263 = math.tanh %261 : vector<8x32xf32>
    %264 = arith.mulf %262, %263 : vector<8x32xf32>
    %265 = tpu.concatenate %248, %264 in 1 : vector<8x32xf32>, vector<8x32xf32> -> vector<8x64xf32>
    %c40_71 = arith.constant 40 : index
    %c0_72 = arith.constant 0 : index
    %266 = vector.load %arg11[%c40_71, %c0_72] : memref<64x64xf32, #tpu.memory_space<vmem>>, vector<8x32xf32>
    tpu.vector_store %arg11[%c40_71, %c0_72], %248 {strides = array<i32>} : memref<64x64xf32, #tpu.memory_space<vmem>>, vector<8x32xf32>,
    %c16_73 = arith.constant 16 : index
    %c32_74 = arith.constant 32 : index
    %267 = vector.load %arg11[%c16_73, %c32_74] : memref<64x64xf32, #tpu.memory_space<vmem>>, vector<8x32xf32>
    tpu.vector_store %arg11[%c16_73, %c32_74], %264 {strides = array<i32>} : memref<64x64xf32, #tpu.memory_space<vmem>>, vector<8x32xf32>,
    %cst_75 = arith.constant dense<0.000000e+00> : vector<8x256xf32>
    %268 = tpu.matmul %265, %9, %cst_75 {dimension_numbers = #tpu.dot_dimension_numbers<[1], [0], [0], [1], [0, 0, 1, 1], [], []>} : vector<8x64xf32>, vector<64x256xf32>, vector<8x256xf32> -> vector<8x256xf32>
    %c48_76 = arith.constant 48 : index
    %c0_77 = arith.constant 0 : index
    %269 = vector.load %arg10[%c48_76, %c0_77] : memref<64x256xf32, #tpu.memory_space<vmem>>, vector<8x128xf32>
    %270 = vector.extract_strided_slice %268 {offsets = [0, 0], sizes = [8, 128], strides = [1, 1]} : vector<8x256xf32> to vector<8x128xf32>
    %271 = arith.addf %269, %270 : vector<8x128xf32>
    %c8_78 = arith.constant 8 : index
    %c128_79 = arith.constant 128 : index
    %272 = vector.load %arg10[%c8_78, %c128_79] : memref<64x256xf32, #tpu.memory_space<vmem>>, vector<8x128xf32>
    %273 = vector.extract_strided_slice %268 {offsets = [0, 128], sizes = [8, 128], strides = [1, 1]} : vector<8x256xf32> to vector<8x128xf32>
    %274 = arith.addf %272, %273 : vector<8x128xf32>
    %275 = vector.extract_strided_slice %271 {offsets = [0, 0], sizes = [8, 96], strides = [1, 1]} : vector<8x128xf32> to vector<8x96xf32>
    %276 = arith.negf %275 : vector<8x96xf32>
    %277 = math.exp %276 : vector<8x96xf32>
    %cst_80 = arith.constant 1.000000e+00 : f32
    %278 = vector.broadcast %cst_80 : f32 to vector<8x96xf32>
    %279 = arith.addf %278, %277 : vector<8x96xf32>
    %280 = arith.divf %278, %279 : vector<8x96xf32>
    %281 = vector.extract_strided_slice %271 {offsets = [0, 96], sizes = [8, 32], strides = [1, 1]} : vector<8x128xf32> to vector<8x32xf32>
    %282 = math.tanh %281 : vector<8x32xf32>
    %283 = vector.extract_strided_slice %280 {offsets = [0, 32], sizes = [8, 32], strides = [1, 1]} : vector<8x96xf32> to vector<8x32xf32>
    %284 = arith.mulf %283, %245 : vector<8x32xf32>
    %285 = vector.extract_strided_slice %280 {offsets = [0, 0], sizes = [8, 32], strides = [1, 1]} : vector<8x96xf32> to vector<8x32xf32>
    %286 = arith.mulf %285, %282 : vector<8x32xf32>
    %287 = arith.addf %284, %286 : vector<8x32xf32>
    %288 = vector.extract_strided_slice %280 {offsets = [0, 64], sizes = [8, 32], strides = [1, 1]} : vector<8x96xf32> to vector<8x32xf32>
    %289 = math.tanh %287 : vector<8x32xf32>
    %290 = arith.mulf %288, %289 : vector<8x32xf32>
    %291 = vector.extract_strided_slice %274 {offsets = [0, 0], sizes = [8, 96], strides = [1, 1]} : vector<8x128xf32> to vector<8x96xf32>
    %292 = arith.negf %291 : vector<8x96xf32>
    %293 = math.exp %292 : vector<8x96xf32>
    %cst_81 = arith.constant 1.000000e+00 : f32
    %294 = vector.broadcast %cst_81 : f32 to vector<8x96xf32>
    %295 = arith.addf %294, %293 : vector<8x96xf32>
    %296 = arith.divf %294, %295 : vector<8x96xf32>
    %297 = vector.extract_strided_slice %274 {offsets = [0, 96], sizes = [8, 32], strides = [1, 1]} : vector<8x128xf32> to vector<8x32xf32>
    %298 = math.tanh %297 : vector<8x32xf32>
    %299 = vector.extract_strided_slice %296 {offsets = [0, 32], sizes = [8, 32], strides = [1, 1]} : vector<8x96xf32> to vector<8x32xf32>
    %300 = arith.mulf %299, %261 : vector<8x32xf32>
    %301 = vector.extract_strided_slice %296 {offsets = [0, 0], sizes = [8, 32], strides = [1, 1]} : vector<8x96xf32> to vector<8x32xf32>
    %302 = arith.mulf %301, %298 : vector<8x32xf32>
    %303 = arith.addf %300, %302 : vector<8x32xf32>
    %304 = vector.extract_strided_slice %296 {offsets = [0, 64], sizes = [8, 32], strides = [1, 1]} : vector<8x96xf32> to vector<8x32xf32>
    %305 = math.tanh %303 : vector<8x32xf32>
    %306 = arith.mulf %304, %305 : vector<8x32xf32>
    %307 = tpu.concatenate %290, %306 in 1 : vector<8x32xf32>, vector<8x32xf32> -> vector<8x64xf32>
    %c48_82 = arith.constant 48 : index
    %c0_83 = arith.constant 0 : index
    %308 = vector.load %arg11[%c48_82, %c0_83] : memref<64x64xf32, #tpu.memory_space<vmem>>, vector<8x32xf32>
    tpu.vector_store %arg11[%c48_82, %c0_83], %290 {strides = array<i32>} : memref<64x64xf32, #tpu.memory_space<vmem>>, vector<8x32xf32>,
    %c8_84 = arith.constant 8 : index
    %c32_85 = arith.constant 32 : index
    %309 = vector.load %arg11[%c8_84, %c32_85] : memref<64x64xf32, #tpu.memory_space<vmem>>, vector<8x32xf32>
    tpu.vector_store %arg11[%c8_84, %c32_85], %306 {strides = array<i32>} : memref<64x64xf32, #tpu.memory_space<vmem>>, vector<8x32xf32>,
    %cst_86 = arith.constant dense<0.000000e+00> : vector<8x256xf32>
    %310 = tpu.matmul %307, %9, %cst_86 {dimension_numbers = #tpu.dot_dimension_numbers<[1], [0], [0], [1], [0, 0, 1, 1], [], []>} : vector<8x64xf32>, vector<64x256xf32>, vector<8x256xf32> -> vector<8x256xf32>
    %c56_87 = arith.constant 56 : index
    %c0_88 = arith.constant 0 : index
    %311 = vector.load %arg10[%c56_87, %c0_88] : memref<64x256xf32, #tpu.memory_space<vmem>>, vector<8x128xf32>
    %312 = vector.extract_strided_slice %310 {offsets = [0, 0], sizes = [8, 128], strides = [1, 1]} : vector<8x256xf32> to vector<8x128xf32>
    %313 = arith.addf %311, %312 : vector<8x128xf32>
    %c0_89 = arith.constant 0 : index
    %c128_90 = arith.constant 128 : index
    %314 = vector.load %arg10[%c0_89, %c128_90] : memref<64x256xf32, #tpu.memory_space<vmem>>, vector<8x128xf32>
    %315 = vector.extract_strided_slice %310 {offsets = [0, 128], sizes = [8, 128], strides = [1, 1]} : vector<8x256xf32> to vector<8x128xf32>
    %316 = arith.addf %314, %315 : vector<8x128xf32>
    %317 = vector.extract_strided_slice %313 {offsets = [0, 0], sizes = [8, 96], strides = [1, 1]} : vector<8x128xf32> to vector<8x96xf32>
    %318 = arith.negf %317 : vector<8x96xf32>
    %319 = math.exp %318 : vector<8x96xf32>
    %cst_91 = arith.constant 1.000000e+00 : f32
    %320 = vector.broadcast %cst_91 : f32 to vector<8x96xf32>
    %321 = arith.addf %320, %319 : vector<8x96xf32>
    %322 = arith.divf %320, %321 : vector<8x96xf32>
    %323 = vector.extract_strided_slice %313 {offsets = [0, 96], sizes = [8, 32], strides = [1, 1]} : vector<8x128xf32> to vector<8x32xf32>
    %324 = math.tanh %323 : vector<8x32xf32>
    %325 = vector.extract_strided_slice %322 {offsets = [0, 32], sizes = [8, 32], strides = [1, 1]} : vector<8x96xf32> to vector<8x32xf32>
    %326 = arith.mulf %325, %287 : vector<8x32xf32>
    %327 = vector.extract_strided_slice %322 {offsets = [0, 0], sizes = [8, 32], strides = [1, 1]} : vector<8x96xf32> to vector<8x32xf32>
    %328 = arith.mulf %327, %324 : vector<8x32xf32>
    %329 = arith.addf %326, %328 : vector<8x32xf32>
    %330 = vector.extract_strided_slice %322 {offsets = [0, 64], sizes = [8, 32], strides = [1, 1]} : vector<8x96xf32> to vector<8x32xf32>
    %331 = math.tanh %329 : vector<8x32xf32>
    %332 = arith.mulf %330, %331 : vector<8x32xf32>
    %333 = vector.extract_strided_slice %316 {offsets = [0, 0], sizes = [8, 96], strides = [1, 1]} : vector<8x128xf32> to vector<8x96xf32>
    %334 = arith.negf %333 : vector<8x96xf32>
    %335 = math.exp %334 : vector<8x96xf32>
    %cst_92 = arith.constant 1.000000e+00 : f32
    %336 = vector.broadcast %cst_92 : f32 to vector<8x96xf32>
    %337 = arith.addf %336, %335 : vector<8x96xf32>
    %338 = arith.divf %336, %337 : vector<8x96xf32>
    %339 = vector.extract_strided_slice %316 {offsets = [0, 96], sizes = [8, 32], strides = [1, 1]} : vector<8x128xf32> to vector<8x32xf32>
    %340 = math.tanh %339 : vector<8x32xf32>
    %341 = vector.extract_strided_slice %338 {offsets = [0, 32], sizes = [8, 32], strides = [1, 1]} : vector<8x96xf32> to vector<8x32xf32>
    %342 = arith.mulf %341, %303 : vector<8x32xf32>
    %343 = vector.extract_strided_slice %338 {offsets = [0, 0], sizes = [8, 32], strides = [1, 1]} : vector<8x96xf32> to vector<8x32xf32>
    %344 = arith.mulf %343, %340 : vector<8x32xf32>
    %345 = arith.addf %342, %344 : vector<8x32xf32>
    %346 = vector.extract_strided_slice %338 {offsets = [0, 64], sizes = [8, 32], strides = [1, 1]} : vector<8x96xf32> to vector<8x32xf32>
    %347 = math.tanh %345 : vector<8x32xf32>
    %348 = arith.mulf %346, %347 : vector<8x32xf32>
    %c56_93 = arith.constant 56 : index
    %c0_94 = arith.constant 0 : index
    %349 = vector.load %arg11[%c56_93, %c0_94] : memref<64x64xf32, #tpu.memory_space<vmem>>, vector<8x32xf32>
    tpu.vector_store %arg11[%c56_93, %c0_94], %332 {strides = array<i32>} : memref<64x64xf32, #tpu.memory_space<vmem>>, vector<8x32xf32>,
    %c0_95 = arith.constant 0 : index
    %c32_96 = arith.constant 32 : index
    %350 = vector.load %arg11[%c0_95, %c32_96] : memref<64x64xf32, #tpu.memory_space<vmem>>, vector<8x32xf32>
    tpu.vector_store %arg11[%c0_95, %c32_96], %348 {strides = array<i32>} : memref<64x64xf32, #tpu.memory_space<vmem>>, vector<8x32xf32>,
    %c0_97 = arith.constant 0 : index
    %c0_98 = arith.constant 0 : index
    %351 = vector.load %arg11[%c0_97, %c0_98] : memref<64x64xf32, #tpu.memory_space<vmem>>, vector<64x64xf32>
    %c0_99 = arith.constant 0 : index
    %c0_100 = arith.constant 0 : index
    %352 = vector.load %arg2[%c0_99, %c0_100] : memref<64x256xf32, #tpu.memory_space<vmem>>, vector<64x256xf32>
    %cst_101 = arith.constant dense<0.000000e+00> : vector<64x256xf32>
    %353 = tpu.matmul %351, %352, %cst_101 {dimension_numbers = #tpu.dot_dimension_numbers<[1], [0], [0], [1], [0, 0, 1, 1], [], []>} : vector<64x64xf32>, vector<64x256xf32>, vector<64x256xf32> -> vector<64x256xf32>
    %c1 = arith.constant 1 : index
    %c0_102 = arith.constant 0 : index
    %c0_103 = arith.constant 0 : index
    %354 = vector.load %arg4[%c1, %c0_102, %c0_103] : memref<2x1x256xf32, #tpu.memory_space<vmem>>, vector<1x1x256xf32>
    %355 = vector.shape_cast %354 : vector<1x1x256xf32> to vector<1x256xf32>
    %356 = vector.broadcast %355 : vector<1x256xf32> to vector<64x256xf32>
    %357 = arith.addf %353, %356 : vector<64x256xf32>
    %c0_104 = arith.constant 0 : index
    %c0_105 = arith.constant 0 : index
    %358 = vector.load %arg10[%c0_104, %c0_105] : memref<64x256xf32, #tpu.memory_space<vmem>>, vector<64x256xf32>
    tpu.vector_store %arg10[%c0_104, %c0_105], %357 {strides = array<i32>} : memref<64x256xf32, #tpu.memory_space<vmem>>, vector<64x256xf32>,
    %c1_106 = arith.constant 1 : index
    %c0_107 = arith.constant 0 : index
    %c0_108 = arith.constant 0 : index
    %359 = vector.load %arg3[%c1_106, %c0_107, %c0_108] : memref<2x64x256xf32, #tpu.memory_space<vmem>>, vector<1x64x256xf32>
    %360 = vector.shape_cast %359 : vector<1x64x256xf32> to vector<64x256xf32>
    %c1_109 = arith.constant 1 : index
    %c0_110 = arith.constant 0 : index
    %c0_111 = arith.constant 0 : index
    %361 = vector.load %arg5[%c1_109, %c0_110, %c0_111] : memref<2x8x64xf32, #tpu.memory_space<vmem>>, vector<1x8x64xf32>
    %362 = vector.shape_cast %361 : vector<1x8x64xf32> to vector<8x64xf32>
    %c1_112 = arith.constant 1 : index
    %c0_113 = arith.constant 0 : index
    %c0_114 = arith.constant 0 : index
    %363 = vector.load %arg6[%c1_112, %c0_113, %c0_114] : memref<2x8x64xf32, #tpu.memory_space<vmem>>, vector<1x8x64xf32>
    %364 = vector.shape_cast %363 : vector<1x8x64xf32> to vector<8x64xf32>
    %365 = vector.extract_strided_slice %364 {offsets = [0, 0], sizes = [8, 32], strides = [1, 1]} : vector<8x64xf32> to vector<8x32xf32>
    %366 = vector.extract_strided_slice %364 {offsets = [0, 32], sizes = [8, 32], strides = [1, 1]} : vector<8x64xf32> to vector<8x32xf32>
    %cst_115 = arith.constant dense<0.000000e+00> : vector<8x256xf32>
    %367 = tpu.matmul %362, %360, %cst_115 {dimension_numbers = #tpu.dot_dimension_numbers<[1], [0], [0], [1], [0, 0, 1, 1], [], []>} : vector<8x64xf32>, vector<64x256xf32>, vector<8x256xf32> -> vector<8x256xf32>
    %c0_116 = arith.constant 0 : index
    %c0_117 = arith.constant 0 : index
    %368 = vector.load %arg10[%c0_116, %c0_117] : memref<64x256xf32, #tpu.memory_space<vmem>>, vector<8x128xf32>
    %369 = vector.extract_strided_slice %367 {offsets = [0, 0], sizes = [8, 128], strides = [1, 1]} : vector<8x256xf32> to vector<8x128xf32>
    %370 = arith.addf %368, %369 : vector<8x128xf32>
    %c56_118 = arith.constant 56 : index
    %c128_119 = arith.constant 128 : index
    %371 = vector.load %arg10[%c56_118, %c128_119] : memref<64x256xf32, #tpu.memory_space<vmem>>, vector<8x128xf32>
    %372 = vector.extract_strided_slice %367 {offsets = [0, 128], sizes = [8, 128], strides = [1, 1]} : vector<8x256xf32> to vector<8x128xf32>
    %373 = arith.addf %371, %372 : vector<8x128xf32>
    %374 = vector.extract_strided_slice %370 {offsets = [0, 0], sizes = [8, 96], strides = [1, 1]} : vector<8x128xf32> to vector<8x96xf32>
    %375 = arith.negf %374 : vector<8x96xf32>
    %376 = math.exp %375 : vector<8x96xf32>
    %cst_120 = arith.constant 1.000000e+00 : f32
    %377 = vector.broadcast %cst_120 : f32 to vector<8x96xf32>
    %378 = arith.addf %377, %376 : vector<8x96xf32>
    %379 = arith.divf %377, %378 : vector<8x96xf32>
    %380 = vector.extract_strided_slice %370 {offsets = [0, 96], sizes = [8, 32], strides = [1, 1]} : vector<8x128xf32> to vector<8x32xf32>
    %381 = math.tanh %380 : vector<8x32xf32>
    %382 = vector.extract_strided_slice %379 {offsets = [0, 32], sizes = [8, 32], strides = [1, 1]} : vector<8x96xf32> to vector<8x32xf32>
    %383 = arith.mulf %382, %365 : vector<8x32xf32>
    %384 = vector.extract_strided_slice %379 {offsets = [0, 0], sizes = [8, 32], strides = [1, 1]} : vector<8x96xf32> to vector<8x32xf32>
    %385 = arith.mulf %384, %381 : vector<8x32xf32>
    %386 = arith.addf %383, %385 : vector<8x32xf32>
    %387 = vector.extract_strided_slice %379 {offsets = [0, 64], sizes = [8, 32], strides = [1, 1]} : vector<8x96xf32> to vector<8x32xf32>
    %388 = math.tanh %386 : vector<8x32xf32>
    %389 = arith.mulf %387, %388 : vector<8x32xf32>
    %390 = vector.extract_strided_slice %373 {offsets = [0, 0], sizes = [8, 96], strides = [1, 1]} : vector<8x128xf32> to vector<8x96xf32>
    %391 = arith.negf %390 : vector<8x96xf32>
    %392 = math.exp %391 : vector<8x96xf32>
    %cst_121 = arith.constant 1.000000e+00 : f32
    %393 = vector.broadcast %cst_121 : f32 to vector<8x96xf32>
    %394 = arith.addf %393, %392 : vector<8x96xf32>
    %395 = arith.divf %393, %394 : vector<8x96xf32>
    %396 = vector.extract_strided_slice %373 {offsets = [0, 96], sizes = [8, 32], strides = [1, 1]} : vector<8x128xf32> to vector<8x32xf32>
    %397 = math.tanh %396 : vector<8x32xf32>
    %398 = vector.extract_strided_slice %395 {offsets = [0, 32], sizes = [8, 32], strides = [1, 1]} : vector<8x96xf32> to vector<8x32xf32>
    %399 = arith.mulf %398, %366 : vector<8x32xf32>
    %400 = vector.extract_strided_slice %395 {offsets = [0, 0], sizes = [8, 32], strides = [1, 1]} : vector<8x96xf32> to vector<8x32xf32>
    %401 = arith.mulf %400, %397 : vector<8x32xf32>
    %402 = arith.addf %399, %401 : vector<8x32xf32>
    %403 = vector.extract_strided_slice %395 {offsets = [0, 64], sizes = [8, 32], strides = [1, 1]} : vector<8x96xf32> to vector<8x32xf32>
    %404 = math.tanh %402 : vector<8x32xf32>
    %405 = arith.mulf %403, %404 : vector<8x32xf32>
    %406 = tpu.concatenate %389, %405 in 1 : vector<8x32xf32>, vector<8x32xf32> -> vector<8x64xf32>
    %cst_122 = arith.constant dense<0.000000e+00> : vector<8x256xf32>
    %407 = tpu.matmul %406, %360, %cst_122 {dimension_numbers = #tpu.dot_dimension_numbers<[1], [0], [0], [1], [0, 0, 1, 1], [], []>} : vector<8x64xf32>, vector<64x256xf32>, vector<8x256xf32> -> vector<8x256xf32>
    %c8_123 = arith.constant 8 : index
    %c0_124 = arith.constant 0 : index
    %408 = vector.load %arg10[%c8_123, %c0_124] : memref<64x256xf32, #tpu.memory_space<vmem>>, vector<8x128xf32>
    %409 = vector.extract_strided_slice %407 {offsets = [0, 0], sizes = [8, 128], strides = [1, 1]} : vector<8x256xf32> to vector<8x128xf32>
    %410 = arith.addf %408, %409 : vector<8x128xf32>
    %c48_125 = arith.constant 48 : index
    %c128_126 = arith.constant 128 : index
    %411 = vector.load %arg10[%c48_125, %c128_126] : memref<64x256xf32, #tpu.memory_space<vmem>>, vector<8x128xf32>
    %412 = vector.extract_strided_slice %407 {offsets = [0, 128], sizes = [8, 128], strides = [1, 1]} : vector<8x256xf32> to vector<8x128xf32>
    %413 = arith.addf %411, %412 : vector<8x128xf32>
    %414 = vector.extract_strided_slice %410 {offsets = [0, 0], sizes = [8, 96], strides = [1, 1]} : vector<8x128xf32> to vector<8x96xf32>
    %415 = arith.negf %414 : vector<8x96xf32>
    %416 = math.exp %415 : vector<8x96xf32>
    %cst_127 = arith.constant 1.000000e+00 : f32
    %417 = vector.broadcast %cst_127 : f32 to vector<8x96xf32>
    %418 = arith.addf %417, %416 : vector<8x96xf32>
    %419 = arith.divf %417, %418 : vector<8x96xf32>
    %420 = vector.extract_strided_slice %410 {offsets = [0, 96], sizes = [8, 32], strides = [1, 1]} : vector<8x128xf32> to vector<8x32xf32>
    %421 = math.tanh %420 : vector<8x32xf32>
    %422 = vector.extract_strided_slice %419 {offsets = [0, 32], sizes = [8, 32], strides = [1, 1]} : vector<8x96xf32> to vector<8x32xf32>
    %423 = arith.mulf %422, %386 : vector<8x32xf32>
    %424 = vector.extract_strided_slice %419 {offsets = [0, 0], sizes = [8, 32], strides = [1, 1]} : vector<8x96xf32> to vector<8x32xf32>
    %425 = arith.mulf %424, %421 : vector<8x32xf32>
    %426 = arith.addf %423, %425 : vector<8x32xf32>
    %427 = vector.extract_strided_slice %419 {offsets = [0, 64], sizes = [8, 32], strides = [1, 1]} : vector<8x96xf32> to vector<8x32xf32>
    %428 = math.tanh %426 : vector<8x32xf32>
    %429 = arith.mulf %427, %428 : vector<8x32xf32>
    %430 = vector.extract_strided_slice %413 {offsets = [0, 0], sizes = [8, 96], strides = [1, 1]} : vector<8x128xf32> to vector<8x96xf32>
    %431 = arith.negf %430 : vector<8x96xf32>
    %432 = math.exp %431 : vector<8x96xf32>
    %cst_128 = arith.constant 1.000000e+00 : f32
    %433 = vector.broadcast %cst_128 : f32 to vector<8x96xf32>
    %434 = arith.addf %433, %432 : vector<8x96xf32>
    %435 = arith.divf %433, %434 : vector<8x96xf32>
    %436 = vector.extract_strided_slice %413 {offsets = [0, 96], sizes = [8, 32], strides = [1, 1]} : vector<8x128xf32> to vector<8x32xf32>
    %437 = math.tanh %436 : vector<8x32xf32>
    %438 = vector.extract_strided_slice %435 {offsets = [0, 32], sizes = [8, 32], strides = [1, 1]} : vector<8x96xf32> to vector<8x32xf32>
    %439 = arith.mulf %438, %402 : vector<8x32xf32>
    %440 = vector.extract_strided_slice %435 {offsets = [0, 0], sizes = [8, 32], strides = [1, 1]} : vector<8x96xf32> to vector<8x32xf32>
    %441 = arith.mulf %440, %437 : vector<8x32xf32>
    %442 = arith.addf %439, %441 : vector<8x32xf32>
    %443 = vector.extract_strided_slice %435 {offsets = [0, 64], sizes = [8, 32], strides = [1, 1]} : vector<8x96xf32> to vector<8x32xf32>
    %444 = math.tanh %442 : vector<8x32xf32>
    %445 = arith.mulf %443, %444 : vector<8x32xf32>
    %446 = tpu.concatenate %429, %445 in 1 : vector<8x32xf32>, vector<8x32xf32> -> vector<8x64xf32>
    %cst_129 = arith.constant dense<0.000000e+00> : vector<8x256xf32>
    %447 = tpu.matmul %446, %360, %cst_129 {dimension_numbers = #tpu.dot_dimension_numbers<[1], [0], [0], [1], [0, 0, 1, 1], [], []>} : vector<8x64xf32>, vector<64x256xf32>, vector<8x256xf32> -> vector<8x256xf32>
    %c16_130 = arith.constant 16 : index
    %c0_131 = arith.constant 0 : index
    %448 = vector.load %arg10[%c16_130, %c0_131] : memref<64x256xf32, #tpu.memory_space<vmem>>, vector<8x128xf32>
    %449 = vector.extract_strided_slice %447 {offsets = [0, 0], sizes = [8, 128], strides = [1, 1]} : vector<8x256xf32> to vector<8x128xf32>
    %450 = arith.addf %448, %449 : vector<8x128xf32>
    %c40_132 = arith.constant 40 : index
    %c128_133 = arith.constant 128 : index
    %451 = vector.load %arg10[%c40_132, %c128_133] : memref<64x256xf32, #tpu.memory_space<vmem>>, vector<8x128xf32>
    %452 = vector.extract_strided_slice %447 {offsets = [0, 128], sizes = [8, 128], strides = [1, 1]} : vector<8x256xf32> to vector<8x128xf32>
    %453 = arith.addf %451, %452 : vector<8x128xf32>
    %454 = vector.extract_strided_slice %450 {offsets = [0, 0], sizes = [8, 96], strides = [1, 1]} : vector<8x128xf32> to vector<8x96xf32>
    %455 = arith.negf %454 : vector<8x96xf32>
    %456 = math.exp %455 : vector<8x96xf32>
    %cst_134 = arith.constant 1.000000e+00 : f32
    %457 = vector.broadcast %cst_134 : f32 to vector<8x96xf32>
    %458 = arith.addf %457, %456 : vector<8x96xf32>
    %459 = arith.divf %457, %458 : vector<8x96xf32>
    %460 = vector.extract_strided_slice %450 {offsets = [0, 96], sizes = [8, 32], strides = [1, 1]} : vector<8x128xf32> to vector<8x32xf32>
    %461 = math.tanh %460 : vector<8x32xf32>
    %462 = vector.extract_strided_slice %459 {offsets = [0, 32], sizes = [8, 32], strides = [1, 1]} : vector<8x96xf32> to vector<8x32xf32>
    %463 = arith.mulf %462, %426 : vector<8x32xf32>
    %464 = vector.extract_strided_slice %459 {offsets = [0, 0], sizes = [8, 32], strides = [1, 1]} : vector<8x96xf32> to vector<8x32xf32>
    %465 = arith.mulf %464, %461 : vector<8x32xf32>
    %466 = arith.addf %463, %465 : vector<8x32xf32>
    %467 = vector.extract_strided_slice %459 {offsets = [0, 64], sizes = [8, 32], strides = [1, 1]} : vector<8x96xf32> to vector<8x32xf32>
    %468 = math.tanh %466 : vector<8x32xf32>
    %469 = arith.mulf %467, %468 : vector<8x32xf32>
    %470 = vector.extract_strided_slice %453 {offsets = [0, 0], sizes = [8, 96], strides = [1, 1]} : vector<8x128xf32> to vector<8x96xf32>
    %471 = arith.negf %470 : vector<8x96xf32>
    %472 = math.exp %471 : vector<8x96xf32>
    %cst_135 = arith.constant 1.000000e+00 : f32
    %473 = vector.broadcast %cst_135 : f32 to vector<8x96xf32>
    %474 = arith.addf %473, %472 : vector<8x96xf32>
    %475 = arith.divf %473, %474 : vector<8x96xf32>
    %476 = vector.extract_strided_slice %453 {offsets = [0, 96], sizes = [8, 32], strides = [1, 1]} : vector<8x128xf32> to vector<8x32xf32>
    %477 = math.tanh %476 : vector<8x32xf32>
    %478 = vector.extract_strided_slice %475 {offsets = [0, 32], sizes = [8, 32], strides = [1, 1]} : vector<8x96xf32> to vector<8x32xf32>
    %479 = arith.mulf %478, %442 : vector<8x32xf32>
    %480 = vector.extract_strided_slice %475 {offsets = [0, 0], sizes = [8, 32], strides = [1, 1]} : vector<8x96xf32> to vector<8x32xf32>
    %481 = arith.mulf %480, %477 : vector<8x32xf32>
    %482 = arith.addf %479, %481 : vector<8x32xf32>
    %483 = vector.extract_strided_slice %475 {offsets = [0, 64], sizes = [8, 32], strides = [1, 1]} : vector<8x96xf32> to vector<8x32xf32>
    %484 = math.tanh %482 : vector<8x32xf32>
    %485 = arith.mulf %483, %484 : vector<8x32xf32>
    %486 = tpu.concatenate %469, %485 in 1 : vector<8x32xf32>, vector<8x32xf32> -> vector<8x64xf32>
    %cst_136 = arith.constant dense<0.000000e+00> : vector<8x256xf32>
    %487 = tpu.matmul %486, %360, %cst_136 {dimension_numbers = #tpu.dot_dimension_numbers<[1], [0], [0], [1], [0, 0, 1, 1], [], []>} : vector<8x64xf32>, vector<64x256xf32>, vector<8x256xf32> -> vector<8x256xf32>
    %c24_137 = arith.constant 24 : index
    %c0_138 = arith.constant 0 : index
    %488 = vector.load %arg10[%c24_137, %c0_138] : memref<64x256xf32, #tpu.memory_space<vmem>>, vector<8x128xf32>
    %489 = vector.extract_strided_slice %487 {offsets = [0, 0], sizes = [8, 128], strides = [1, 1]} : vector<8x256xf32> to vector<8x128xf32>
    %490 = arith.addf %488, %489 : vector<8x128xf32>
    %c32_139 = arith.constant 32 : index
    %c128_140 = arith.constant 128 : index
    %491 = vector.load %arg10[%c32_139, %c128_140] : memref<64x256xf32, #tpu.memory_space<vmem>>, vector<8x128xf32>
    %492 = vector.extract_strided_slice %487 {offsets = [0, 128], sizes = [8, 128], strides = [1, 1]} : vector<8x256xf32> to vector<8x128xf32>
    %493 = arith.addf %491, %492 : vector<8x128xf32>
    %494 = vector.extract_strided_slice %490 {offsets = [0, 0], sizes = [8, 96], strides = [1, 1]} : vector<8x128xf32> to vector<8x96xf32>
    %495 = arith.negf %494 : vector<8x96xf32>
    %496 = math.exp %495 : vector<8x96xf32>
    %cst_141 = arith.constant 1.000000e+00 : f32
    %497 = vector.broadcast %cst_141 : f32 to vector<8x96xf32>
    %498 = arith.addf %497, %496 : vector<8x96xf32>
    %499 = arith.divf %497, %498 : vector<8x96xf32>
    %500 = vector.extract_strided_slice %490 {offsets = [0, 96], sizes = [8, 32], strides = [1, 1]} : vector<8x128xf32> to vector<8x32xf32>
    %501 = math.tanh %500 : vector<8x32xf32>
    %502 = vector.extract_strided_slice %499 {offsets = [0, 32], sizes = [8, 32], strides = [1, 1]} : vector<8x96xf32> to vector<8x32xf32>
    %503 = arith.mulf %502, %466 : vector<8x32xf32>
    %504 = vector.extract_strided_slice %499 {offsets = [0, 0], sizes = [8, 32], strides = [1, 1]} : vector<8x96xf32> to vector<8x32xf32>
    %505 = arith.mulf %504, %501 : vector<8x32xf32>
    %506 = arith.addf %503, %505 : vector<8x32xf32>
    %507 = vector.extract_strided_slice %499 {offsets = [0, 64], sizes = [8, 32], strides = [1, 1]} : vector<8x96xf32> to vector<8x32xf32>
    %508 = math.tanh %506 : vector<8x32xf32>
    %509 = arith.mulf %507, %508 : vector<8x32xf32>
    %510 = vector.extract_strided_slice %493 {offsets = [0, 0], sizes = [8, 96], strides = [1, 1]} : vector<8x128xf32> to vector<8x96xf32>
    %511 = arith.negf %510 : vector<8x96xf32>
    %512 = math.exp %511 : vector<8x96xf32>
    %cst_142 = arith.constant 1.000000e+00 : f32
    %513 = vector.broadcast %cst_142 : f32 to vector<8x96xf32>
    %514 = arith.addf %513, %512 : vector<8x96xf32>
    %515 = arith.divf %513, %514 : vector<8x96xf32>
    %516 = vector.extract_strided_slice %493 {offsets = [0, 96], sizes = [8, 32], strides = [1, 1]} : vector<8x128xf32> to vector<8x32xf32>
    %517 = math.tanh %516 : vector<8x32xf32>
    %518 = vector.extract_strided_slice %515 {offsets = [0, 32], sizes = [8, 32], strides = [1, 1]} : vector<8x96xf32> to vector<8x32xf32>
    %519 = arith.mulf %518, %482 : vector<8x32xf32>
    %520 = vector.extract_strided_slice %515 {offsets = [0, 0], sizes = [8, 32], strides = [1, 1]} : vector<8x96xf32> to vector<8x32xf32>
    %521 = arith.mulf %520, %517 : vector<8x32xf32>
    %522 = arith.addf %519, %521 : vector<8x32xf32>
    %523 = vector.extract_strided_slice %515 {offsets = [0, 64], sizes = [8, 32], strides = [1, 1]} : vector<8x96xf32> to vector<8x32xf32>
    %524 = math.tanh %522 : vector<8x32xf32>
    %525 = arith.mulf %523, %524 : vector<8x32xf32>
    %526 = tpu.concatenate %509, %525 in 1 : vector<8x32xf32>, vector<8x32xf32> -> vector<8x64xf32>
    %cst_143 = arith.constant dense<0.000000e+00> : vector<8x256xf32>
    %527 = tpu.matmul %526, %360, %cst_143 {dimension_numbers = #tpu.dot_dimension_numbers<[1], [0], [0], [1], [0, 0, 1, 1], [], []>} : vector<8x64xf32>, vector<64x256xf32>, vector<8x256xf32> -> vector<8x256xf32>
    %c32_144 = arith.constant 32 : index
    %c0_145 = arith.constant 0 : index
    %528 = vector.load %arg10[%c32_144, %c0_145] : memref<64x256xf32, #tpu.memory_space<vmem>>, vector<8x128xf32>
    %529 = vector.extract_strided_slice %527 {offsets = [0, 0], sizes = [8, 128], strides = [1, 1]} : vector<8x256xf32> to vector<8x128xf32>
    %530 = arith.addf %528, %529 : vector<8x128xf32>
    %c24_146 = arith.constant 24 : index
    %c128_147 = arith.constant 128 : index
    %531 = vector.load %arg10[%c24_146, %c128_147] : memref<64x256xf32, #tpu.memory_space<vmem>>, vector<8x128xf32>
    %532 = vector.extract_strided_slice %527 {offsets = [0, 128], sizes = [8, 128], strides = [1, 1]} : vector<8x256xf32> to vector<8x128xf32>
    %533 = arith.addf %531, %532 : vector<8x128xf32>
    %534 = vector.extract_strided_slice %530 {offsets = [0, 0], sizes = [8, 96], strides = [1, 1]} : vector<8x128xf32> to vector<8x96xf32>
    %535 = arith.negf %534 : vector<8x96xf32>
    %536 = math.exp %535 : vector<8x96xf32>
    %cst_148 = arith.constant 1.000000e+00 : f32
    %537 = vector.broadcast %cst_148 : f32 to vector<8x96xf32>
    %538 = arith.addf %537, %536 : vector<8x96xf32>
    %539 = arith.divf %537, %538 : vector<8x96xf32>
    %540 = vector.extract_strided_slice %530 {offsets = [0, 96], sizes = [8, 32], strides = [1, 1]} : vector<8x128xf32> to vector<8x32xf32>
    %541 = math.tanh %540 : vector<8x32xf32>
    %542 = vector.extract_strided_slice %539 {offsets = [0, 32], sizes = [8, 32], strides = [1, 1]} : vector<8x96xf32> to vector<8x32xf32>
    %543 = arith.mulf %542, %506 : vector<8x32xf32>
    %544 = vector.extract_strided_slice %539 {offsets = [0, 0], sizes = [8, 32], strides = [1, 1]} : vector<8x96xf32> to vector<8x32xf32>
    %545 = arith.mulf %544, %541 : vector<8x32xf32>
    %546 = arith.addf %543, %545 : vector<8x32xf32>
    %547 = vector.extract_strided_slice %539 {offsets = [0, 64], sizes = [8, 32], strides = [1, 1]} : vector<8x96xf32> to vector<8x32xf32>
    %548 = math.tanh %546 : vector<8x32xf32>
    %549 = arith.mulf %547, %548 : vector<8x32xf32>
    %550 = vector.extract_strided_slice %533 {offsets = [0, 0], sizes = [8, 96], strides = [1, 1]} : vector<8x128xf32> to vector<8x96xf32>
    %551 = arith.negf %550 : vector<8x96xf32>
    %552 = math.exp %551 : vector<8x96xf32>
    %cst_149 = arith.constant 1.000000e+00 : f32
    %553 = vector.broadcast %cst_149 : f32 to vector<8x96xf32>
    %554 = arith.addf %553, %552 : vector<8x96xf32>
    %555 = arith.divf %553, %554 : vector<8x96xf32>
    %556 = vector.extract_strided_slice %533 {offsets = [0, 96], sizes = [8, 32], strides = [1, 1]} : vector<8x128xf32> to vector<8x32xf32>
    %557 = math.tanh %556 : vector<8x32xf32>
    %558 = vector.extract_strided_slice %555 {offsets = [0, 32], sizes = [8, 32], strides = [1, 1]} : vector<8x96xf32> to vector<8x32xf32>
    %559 = arith.mulf %558, %522 : vector<8x32xf32>
    %560 = vector.extract_strided_slice %555 {offsets = [0, 0], sizes = [8, 32], strides = [1, 1]} : vector<8x96xf32> to vector<8x32xf32>
    %561 = arith.mulf %560, %557 : vector<8x32xf32>
    %562 = arith.addf %559, %561 : vector<8x32xf32>
    %563 = vector.extract_strided_slice %555 {offsets = [0, 64], sizes = [8, 32], strides = [1, 1]} : vector<8x96xf32> to vector<8x32xf32>
    %564 = math.tanh %562 : vector<8x32xf32>
    %565 = arith.mulf %563, %564 : vector<8x32xf32>
    %566 = tpu.concatenate %549, %565 in 1 : vector<8x32xf32>, vector<8x32xf32> -> vector<8x64xf32>
    %cst_150 = arith.constant dense<0.000000e+00> : vector<8x256xf32>
    %567 = tpu.matmul %566, %360, %cst_150 {dimension_numbers = #tpu.dot_dimension_numbers<[1], [0], [0], [1], [0, 0, 1, 1], [], []>} : vector<8x64xf32>, vector<64x256xf32>, vector<8x256xf32> -> vector<8x256xf32>
    %c40_151 = arith.constant 40 : index
    %c0_152 = arith.constant 0 : index
    %568 = vector.load %arg10[%c40_151, %c0_152] : memref<64x256xf32, #tpu.memory_space<vmem>>, vector<8x128xf32>
    %569 = vector.extract_strided_slice %567 {offsets = [0, 0], sizes = [8, 128], strides = [1, 1]} : vector<8x256xf32> to vector<8x128xf32>
    %570 = arith.addf %568, %569 : vector<8x128xf32>
    %c16_153 = arith.constant 16 : index
    %c128_154 = arith.constant 128 : index
    %571 = vector.load %arg10[%c16_153, %c128_154] : memref<64x256xf32, #tpu.memory_space<vmem>>, vector<8x128xf32>
    %572 = vector.extract_strided_slice %567 {offsets = [0, 128], sizes = [8, 128], strides = [1, 1]} : vector<8x256xf32> to vector<8x128xf32>
    %573 = arith.addf %571, %572 : vector<8x128xf32>
    %574 = vector.extract_strided_slice %570 {offsets = [0, 0], sizes = [8, 96], strides = [1, 1]} : vector<8x128xf32> to vector<8x96xf32>
    %575 = arith.negf %574 : vector<8x96xf32>
    %576 = math.exp %575 : vector<8x96xf32>
    %cst_155 = arith.constant 1.000000e+00 : f32
    %577 = vector.broadcast %cst_155 : f32 to vector<8x96xf32>
    %578 = arith.addf %577, %576 : vector<8x96xf32>
    %579 = arith.divf %577, %578 : vector<8x96xf32>
    %580 = vector.extract_strided_slice %570 {offsets = [0, 96], sizes = [8, 32], strides = [1, 1]} : vector<8x128xf32> to vector<8x32xf32>
    %581 = math.tanh %580 : vector<8x32xf32>
    %582 = vector.extract_strided_slice %579 {offsets = [0, 32], sizes = [8, 32], strides = [1, 1]} : vector<8x96xf32> to vector<8x32xf32>
    %583 = arith.mulf %582, %546 : vector<8x32xf32>
    %584 = vector.extract_strided_slice %579 {offsets = [0, 0], sizes = [8, 32], strides = [1, 1]} : vector<8x96xf32> to vector<8x32xf32>
    %585 = arith.mulf %584, %581 : vector<8x32xf32>
    %586 = arith.addf %583, %585 : vector<8x32xf32>
    %587 = vector.extract_strided_slice %579 {offsets = [0, 64], sizes = [8, 32], strides = [1, 1]} : vector<8x96xf32> to vector<8x32xf32>
    %588 = math.tanh %586 : vector<8x32xf32>
    %589 = arith.mulf %587, %588 : vector<8x32xf32>
    %590 = vector.extract_strided_slice %573 {offsets = [0, 0], sizes = [8, 96], strides = [1, 1]} : vector<8x128xf32> to vector<8x96xf32>
    %591 = arith.negf %590 : vector<8x96xf32>
    %592 = math.exp %591 : vector<8x96xf32>
    %cst_156 = arith.constant 1.000000e+00 : f32
    %593 = vector.broadcast %cst_156 : f32 to vector<8x96xf32>
    %594 = arith.addf %593, %592 : vector<8x96xf32>
    %595 = arith.divf %593, %594 : vector<8x96xf32>
    %596 = vector.extract_strided_slice %573 {offsets = [0, 96], sizes = [8, 32], strides = [1, 1]} : vector<8x128xf32> to vector<8x32xf32>
    %597 = math.tanh %596 : vector<8x32xf32>
    %598 = vector.extract_strided_slice %595 {offsets = [0, 32], sizes = [8, 32], strides = [1, 1]} : vector<8x96xf32> to vector<8x32xf32>
    %599 = arith.mulf %598, %562 : vector<8x32xf32>
    %600 = vector.extract_strided_slice %595 {offsets = [0, 0], sizes = [8, 32], strides = [1, 1]} : vector<8x96xf32> to vector<8x32xf32>
    %601 = arith.mulf %600, %597 : vector<8x32xf32>
    %602 = arith.addf %599, %601 : vector<8x32xf32>
    %603 = vector.extract_strided_slice %595 {offsets = [0, 64], sizes = [8, 32], strides = [1, 1]} : vector<8x96xf32> to vector<8x32xf32>
    %604 = math.tanh %602 : vector<8x32xf32>
    %605 = arith.mulf %603, %604 : vector<8x32xf32>
    %606 = tpu.concatenate %589, %605 in 1 : vector<8x32xf32>, vector<8x32xf32> -> vector<8x64xf32>
    %cst_157 = arith.constant dense<0.000000e+00> : vector<8x256xf32>
    %607 = tpu.matmul %606, %360, %cst_157 {dimension_numbers = #tpu.dot_dimension_numbers<[1], [0], [0], [1], [0, 0, 1, 1], [], []>} : vector<8x64xf32>, vector<64x256xf32>, vector<8x256xf32> -> vector<8x256xf32>
    %c48_158 = arith.constant 48 : index
    %c0_159 = arith.constant 0 : index
    %608 = vector.load %arg10[%c48_158, %c0_159] : memref<64x256xf32, #tpu.memory_space<vmem>>, vector<8x128xf32>
    %609 = vector.extract_strided_slice %607 {offsets = [0, 0], sizes = [8, 128], strides = [1, 1]} : vector<8x256xf32> to vector<8x128xf32>
    %610 = arith.addf %608, %609 : vector<8x128xf32>
    %c8_160 = arith.constant 8 : index
    %c128_161 = arith.constant 128 : index
    %611 = vector.load %arg10[%c8_160, %c128_161] : memref<64x256xf32, #tpu.memory_space<vmem>>, vector<8x128xf32>
    %612 = vector.extract_strided_slice %607 {offsets = [0, 128], sizes = [8, 128], strides = [1, 1]} : vector<8x256xf32> to vector<8x128xf32>
    %613 = arith.addf %611, %612 : vector<8x128xf32>
    %614 = vector.extract_strided_slice %610 {offsets = [0, 0], sizes = [8, 96], strides = [1, 1]} : vector<8x128xf32> to vector<8x96xf32>
    %615 = arith.negf %614 : vector<8x96xf32>
    %616 = math.exp %615 : vector<8x96xf32>
    %cst_162 = arith.constant 1.000000e+00 : f32
    %617 = vector.broadcast %cst_162 : f32 to vector<8x96xf32>
    %618 = arith.addf %617, %616 : vector<8x96xf32>
    %619 = arith.divf %617, %618 : vector<8x96xf32>
    %620 = vector.extract_strided_slice %610 {offsets = [0, 96], sizes = [8, 32], strides = [1, 1]} : vector<8x128xf32> to vector<8x32xf32>
    %621 = math.tanh %620 : vector<8x32xf32>
    %622 = vector.extract_strided_slice %619 {offsets = [0, 32], sizes = [8, 32], strides = [1, 1]} : vector<8x96xf32> to vector<8x32xf32>
    %623 = arith.mulf %622, %586 : vector<8x32xf32>
    %624 = vector.extract_strided_slice %619 {offsets = [0, 0], sizes = [8, 32], strides = [1, 1]} : vector<8x96xf32> to vector<8x32xf32>
    %625 = arith.mulf %624, %621 : vector<8x32xf32>
    %626 = arith.addf %623, %625 : vector<8x32xf32>
    %627 = vector.extract_strided_slice %619 {offsets = [0, 64], sizes = [8, 32], strides = [1, 1]} : vector<8x96xf32> to vector<8x32xf32>
    %628 = math.tanh %626 : vector<8x32xf32>
    %629 = arith.mulf %627, %628 : vector<8x32xf32>
    %630 = vector.extract_strided_slice %613 {offsets = [0, 0], sizes = [8, 96], strides = [1, 1]} : vector<8x128xf32> to vector<8x96xf32>
    %631 = arith.negf %630 : vector<8x96xf32>
    %632 = math.exp %631 : vector<8x96xf32>
    %cst_163 = arith.constant 1.000000e+00 : f32
    %633 = vector.broadcast %cst_163 : f32 to vector<8x96xf32>
    %634 = arith.addf %633, %632 : vector<8x96xf32>
    %635 = arith.divf %633, %634 : vector<8x96xf32>
    %636 = vector.extract_strided_slice %613 {offsets = [0, 96], sizes = [8, 32], strides = [1, 1]} : vector<8x128xf32> to vector<8x32xf32>
    %637 = math.tanh %636 : vector<8x32xf32>
    %638 = vector.extract_strided_slice %635 {offsets = [0, 32], sizes = [8, 32], strides = [1, 1]} : vector<8x96xf32> to vector<8x32xf32>
    %639 = arith.mulf %638, %602 : vector<8x32xf32>
    %640 = vector.extract_strided_slice %635 {offsets = [0, 0], sizes = [8, 32], strides = [1, 1]} : vector<8x96xf32> to vector<8x32xf32>
    %641 = arith.mulf %640, %637 : vector<8x32xf32>
    %642 = arith.addf %639, %641 : vector<8x32xf32>
    %643 = vector.extract_strided_slice %635 {offsets = [0, 64], sizes = [8, 32], strides = [1, 1]} : vector<8x96xf32> to vector<8x32xf32>
    %644 = math.tanh %642 : vector<8x32xf32>
    %645 = arith.mulf %643, %644 : vector<8x32xf32>
    %646 = tpu.concatenate %629, %645 in 1 : vector<8x32xf32>, vector<8x32xf32> -> vector<8x64xf32>
    %cst_164 = arith.constant dense<0.000000e+00> : vector<8x256xf32>
    %647 = tpu.matmul %646, %360, %cst_164 {dimension_numbers = #tpu.dot_dimension_numbers<[1], [0], [0], [1], [0, 0, 1, 1], [], []>} : vector<8x64xf32>, vector<64x256xf32>, vector<8x256xf32> -> vector<8x256xf32>
    %c56_165 = arith.constant 56 : index
    %c0_166 = arith.constant 0 : index
    %648 = vector.load %arg10[%c56_165, %c0_166] : memref<64x256xf32, #tpu.memory_space<vmem>>, vector<8x128xf32>
    %649 = vector.extract_strided_slice %647 {offsets = [0, 0], sizes = [8, 128], strides = [1, 1]} : vector<8x256xf32> to vector<8x128xf32>
    %650 = arith.addf %648, %649 : vector<8x128xf32>
    %c0_167 = arith.constant 0 : index
    %c128_168 = arith.constant 128 : index
    %651 = vector.load %arg10[%c0_167, %c128_168] : memref<64x256xf32, #tpu.memory_space<vmem>>, vector<8x128xf32>
    %652 = vector.extract_strided_slice %647 {offsets = [0, 128], sizes = [8, 128], strides = [1, 1]} : vector<8x256xf32> to vector<8x128xf32>
    %653 = arith.addf %651, %652 : vector<8x128xf32>
    %654 = vector.extract_strided_slice %650 {offsets = [0, 0], sizes = [8, 96], strides = [1, 1]} : vector<8x128xf32> to vector<8x96xf32>
    %655 = arith.negf %654 : vector<8x96xf32>
    %656 = math.exp %655 : vector<8x96xf32>
    %cst_169 = arith.constant 1.000000e+00 : f32
    %657 = vector.broadcast %cst_169 : f32 to vector<8x96xf32>
    %658 = arith.addf %657, %656 : vector<8x96xf32>
    %659 = arith.divf %657, %658 : vector<8x96xf32>
    %660 = vector.extract_strided_slice %650 {offsets = [0, 96], sizes = [8, 32], strides = [1, 1]} : vector<8x128xf32> to vector<8x32xf32>
    %661 = math.tanh %660 : vector<8x32xf32>
    %662 = vector.extract_strided_slice %659 {offsets = [0, 32], sizes = [8, 32], strides = [1, 1]} : vector<8x96xf32> to vector<8x32xf32>
    %663 = arith.mulf %662, %626 : vector<8x32xf32>
    %664 = vector.extract_strided_slice %659 {offsets = [0, 0], sizes = [8, 32], strides = [1, 1]} : vector<8x96xf32> to vector<8x32xf32>
    %665 = arith.mulf %664, %661 : vector<8x32xf32>
    %666 = arith.addf %663, %665 : vector<8x32xf32>
    %667 = vector.extract_strided_slice %659 {offsets = [0, 64], sizes = [8, 32], strides = [1, 1]} : vector<8x96xf32> to vector<8x32xf32>
    %668 = math.tanh %666 : vector<8x32xf32>
    %669 = arith.mulf %667, %668 : vector<8x32xf32>
    %670 = vector.extract_strided_slice %653 {offsets = [0, 0], sizes = [8, 96], strides = [1, 1]} : vector<8x128xf32> to vector<8x96xf32>
    %671 = arith.negf %670 : vector<8x96xf32>
    %672 = math.exp %671 : vector<8x96xf32>
    %cst_170 = arith.constant 1.000000e+00 : f32
    %673 = vector.broadcast %cst_170 : f32 to vector<8x96xf32>
    %674 = arith.addf %673, %672 : vector<8x96xf32>
    %675 = arith.divf %673, %674 : vector<8x96xf32>
    %676 = vector.extract_strided_slice %653 {offsets = [0, 96], sizes = [8, 32], strides = [1, 1]} : vector<8x128xf32> to vector<8x32xf32>
    %677 = math.tanh %676 : vector<8x32xf32>
    %678 = vector.extract_strided_slice %675 {offsets = [0, 32], sizes = [8, 32], strides = [1, 1]} : vector<8x96xf32> to vector<8x32xf32>
    %679 = arith.mulf %678, %642 : vector<8x32xf32>
    %680 = vector.extract_strided_slice %675 {offsets = [0, 0], sizes = [8, 32], strides = [1, 1]} : vector<8x96xf32> to vector<8x32xf32>
    %681 = arith.mulf %680, %677 : vector<8x32xf32>
    %682 = arith.addf %679, %681 : vector<8x32xf32>
    %683 = vector.extract_strided_slice %675 {offsets = [0, 64], sizes = [8, 32], strides = [1, 1]} : vector<8x96xf32> to vector<8x32xf32>
    %684 = math.tanh %682 : vector<8x32xf32>
    %685 = arith.mulf %683, %684 : vector<8x32xf32>
    %686 = tpu.concatenate %669, %685 in 1 : vector<8x32xf32>, vector<8x32xf32> -> vector<8x64xf32>
    %c0_171 = arith.constant 0 : index
    %c0_172 = arith.constant 0 : index
    %687 = vector.load %arg7[%c0_171, %c0_172] : memref<64x4xf32, #tpu.memory_space<vmem>>, vector<64x4xf32>
    %cst_173 = arith.constant dense<0.000000e+00> : vector<8x4xf32>
    %688 = tpu.matmul %686, %687, %cst_173 {dimension_numbers = #tpu.dot_dimension_numbers<[1], [0], [0], [1], [0, 0, 1, 1], [], []>} : vector<8x64xf32>, vector<64x4xf32>, vector<8x4xf32> -> vector<8x4xf32>
    %c0_174 = arith.constant 0 : index
    %c0_175 = arith.constant 0 : index
    %689 = vector.load %arg8[%c0_174, %c0_175] : memref<1x4xf32, #tpu.memory_space<vmem>>, vector<1x4xf32>
    %690 = vector.broadcast %689 : vector<1x4xf32> to vector<8x4xf32>
    %691 = arith.addf %688, %690 : vector<8x4xf32>
    %c0_176 = arith.constant 0 : index
    %c0_177 = arith.constant 0 : index
    %692 = vector.load %arg9[%c0_176, %c0_177] : memref<8x4xf32, #tpu.memory_space<vmem>>, vector<8x4xf32>
    tpu.vector_store %arg9[%c0_176, %c0_177], %691 {strides = array<i32>} : memref<8x4xf32, #tpu.memory_space<vmem>>, vector<8x4xf32>,
    return
  }
}

</mosaic_0001>

<llo_original>
// kernel: bert_lstm_forward.1
$region0: #{bert_lstm_forward.1}
  #allocation0 [shape = 'u32[]', space=smem, size = 0x4, offset = 0x4, fixed_abs, tag = 'smem constant byte address 0x4 - core index']
  #allocation1 [shape = 'u32[72,128]{1,0:T(1,128)}', space=vmem, size = 0x9000, scoped, tag = 'internal scratch']
  #allocation2 [shape = 'f32[64,256]{1,0:T(8,128)}', space=vmem, size = 0x10000, scoped, tag = 'scratch operand']
  #allocation3 [shape = 'f32[64,64]{1,0:T(8,128)}', space=vmem, size = 0x8000, scoped, tag = 'scratch operand']
  %s0 = inlined_call_operand.vmem [shape: f32[64,768], index: 0, kind: input, shape index: {}]
  %s1 = inlined_call_operand.vmem [shape: f32[768,256], index: 1, kind: input, shape index: {}]
  %s2 = inlined_call_operand.vmem [shape: f32[64,256], index: 2, kind: input, shape index: {}]
  %s3 = inlined_call_operand.vmem [shape: f32[2,64,256], index: 3, kind: input, shape index: {}]
  %s4 = inlined_call_operand.vmem [shape: f32[2,1,256], index: 4, kind: input, shape index: {}]
  %s5 = inlined_call_operand.vmem [shape: f32[2,8,64], index: 5, kind: input, shape index: {}]
  %s6 = inlined_call_operand.vmem [shape: f32[2,8,64], index: 6, kind: input, shape index: {}]
  %s7 = inlined_call_operand.vmem [shape: f32[64,4], index: 7, kind: input, shape index: {}]
  %s8 = inlined_call_operand.vmem [shape: f32[1,4], index: 8, kind: input, shape index: {}]
  %s9 = inlined_call_operand.vmem [shape: f32[8,4], index: 9, kind: output, shape index: {}]
  %s10 = sld [smem:[#allocation0]]
  $region46: #{bert_lstm_forward.1} parent=0
    _
  %s12 = ssub.s32 1, %s10
  %s13 = scalar_select 0, %s12, %s10
  // Predicated region
  $region2: #{bert_lstm_forward.1} parent=0 // pred_check
    _
  $region3: #{bert_lstm_forward.1} parent=0 // pred_check_branch
    %15 = sbr.rel (0) target = $region5
  $region4: #{bert_lstm_forward.1} parent=0 // pred_region
    _
  $region5: #{bert_lstm_forward.1} parent=0 // pred_fallthru
    _
  // Predicated region
  $region6: #{bert_lstm_forward.1} parent=0 // pred_check
    _
  $region7: #{bert_lstm_forward.1} parent=0 // pred_check_branch
    %17 = sbr.rel (0) target = $region9
  $region8: #{bert_lstm_forward.1} parent=0 // pred_region
    _
  $region9: #{bert_lstm_forward.1} parent=0 // pred_fallthru
    _
  // Predicated region
  $region10: #{bert_lstm_forward.1} parent=0 // pred_check
    _
  $region11: #{bert_lstm_forward.1} parent=0 // pred_check_branch
    %19 = sbr.rel (0) target = $region13
  $region12: #{bert_lstm_forward.1} parent=0 // pred_region
    _
  $region13: #{bert_lstm_forward.1} parent=0 // pred_fallthru
    _
  // Predicated region
  $region14: #{bert_lstm_forward.1} parent=0 // pred_check
    _
  $region15: #{bert_lstm_forward.1} parent=0 // pred_check_branch
    %21 = sbr.rel (0) target = $region17
  $region16: #{bert_lstm_forward.1} parent=0 // pred_region
    _
  $region17: #{bert_lstm_forward.1} parent=0 // pred_fallthru
    _
  // Predicated region
  $region18: #{bert_lstm_forward.1} parent=0 // pred_check
    _
  $region19: #{bert_lstm_forward.1} parent=0 // pred_check_branch
    %23 = sbr.rel (0) target = $region21
  $region20: #{bert_lstm_forward.1} parent=0 // pred_region
    _
  $region21: #{bert_lstm_forward.1} parent=0 // pred_fallthru
    _
  // Predicated region
  $region22: #{bert_lstm_forward.1} parent=0 // pred_check
    _
  $region23: #{bert_lstm_forward.1} parent=0 // pred_check_branch
    %25 = sbr.rel (0) target = $region25
  $region24: #{bert_lstm_forward.1} parent=0 // pred_region
    _
  $region25: #{bert_lstm_forward.1} parent=0 // pred_fallthru
    _
  // Predicated region
  $region26: #{bert_lstm_forward.1} parent=0 // pred_check
    _
  $region27: #{bert_lstm_forward.1} parent=0 // pred_check_branch
    %27 = sbr.rel (0) target = $region29
  $region28: #{bert_lstm_forward.1} parent=0 // pred_region
    _
  $region29: #{bert_lstm_forward.1} parent=0 // pred_fallthru
    _
  // Predicated region
  $region30: #{bert_lstm_forward.1} parent=0 // pred_check
    _
  $region31: #{bert_lstm_forward.1} parent=0 // pred_check_branch
    %29 = sbr.rel (0) target = $region33
  $region32: #{bert_lstm_forward.1} parent=0 // pred_region
    _
  $region33: #{bert_lstm_forward.1} parent=0 // pred_fallthru
    _
  // Predicated region
  $region34: #{bert_lstm_forward.1} parent=0 // pred_check
    _
  $region35: #{bert_lstm_forward.1} parent=0 // pred_check_branch
    %31 = sbr.rel (0) target = $region37
  $region36: #{bert_lstm_forward.1} parent=0 // pred_region
    _
  $region37: #{bert_lstm_forward.1} parent=0 // pred_fallthru
    _
  %v32 = vld [vmem:[%s0] sm:$0xff]
  %v33 = vld [vmem:[%s0 + $0x8] sm:$0xff]
  %v34 = vld [vmem:[%s0 + $0x10] sm:$0xff]
  %v35 = vld [vmem:[%s0 + $0x18] sm:$0xff]
  %v36 = vld [vmem:[%s0 + $0x20] sm:$0xff]
  %v37 = vld [vmem:[%s0 + $0x28] sm:$0xff]
  %v38 = vld [vmem:[%s0 + $0x30] sm:$0xff]
  %v39 = vld [vmem:[%s0 + $0x38] sm:$0xff]
  %v40 = vld [vmem:[%s0 + $0x40] sm:$0xff]
  %v41 = vld [vmem:[%s0 + $0x48] sm:$0xff]
  %v42 = vld [vmem:[%s0 + $0x50] sm:$0xff]
  %v43 = vld [vmem:[%s0 + $0x58] sm:$0xff]
  %v44 = vld [vmem:[%s0 + $0x60] sm:$0xff]
  %v45 = vld [vmem:[%s0 + $0x68] sm:$0xff]
  %v46 = vld [vmem:[%s0 + $0x70] sm:$0xff]
  %v47 = vld [vmem:[%s0 + $0x78] sm:$0xff]
  %v48 = vld [vmem:[%s0 + $0x80] sm:$0xff]
  %v49 = vld [vmem:[%s0 + $0x88] sm:$0xff]
  %v50 = vld [vmem:[%s0 + $0x90] sm:$0xff]
  %v51 = vld [vmem:[%s0 + $0x98] sm:$0xff]
  %v52 = vld [vmem:[%s0 + $0xa0] sm:$0xff]
  %v53 = vld [vmem:[%s0 + $0xa8] sm:$0xff]
  %v54 = vld [vmem:[%s0 + $0xb0] sm:$0xff]
  %v55 = vld [vmem:[%s0 + $0xb8] sm:$0xff]
  %v56 = vld [vmem:[%s0 + $0xc0] sm:$0xff]
  %v57 = vld [vmem:[%s0 + $0xc8] sm:$0xff]
  %v58 = vld [vmem:[%s0 + $0xd0] sm:$0xff]
  %v59 = vld [vmem:[%s0 + $0xd8] sm:$0xff]
  %v60 = vld [vmem:[%s0 + $0xe0] sm:$0xff]
  %v61 = vld [vmem:[%s0 + $0xe8] sm:$0xff]
  %v62 = vld [vmem:[%s0 + $0xf0] sm:$0xff]
  %v63 = vld [vmem:[%s0 + $0xf8] sm:$0xff]
  %v64 = vld [vmem:[%s0 + $0x100] sm:$0xff]
  %v65 = vld [vmem:[%s0 + $0x108] sm:$0xff]
  %v66 = vld [vmem:[%s0 + $0x110] sm:$0xff]
  %v67 = vld [vmem:[%s0 + $0x118] sm:$0xff]
  %v68 = vld [vmem:[%s0 + $0x120] sm:$0xff]
  %v69 = vld [vmem:[%s0 + $0x128] sm:$0xff]
  %v70 = vld [vmem:[%s0 + $0x130] sm:$0xff]
  %v71 = vld [vmem:[%s0 + $0x138] sm:$0xff]
  %v72 = vld [vmem:[%s0 + $0x140] sm:$0xff]
  %v73 = vld [vmem:[%s0 + $0x148] sm:$0xff]
  %v74 = vld [vmem:[%s0 + $0x150] sm:$0xff]
  %v75 = vld [vmem:[%s0 + $0x158] sm:$0xff]
  %v76 = vld [vmem:[%s0 + $0x160] sm:$0xff]
  %v77 = vld [vmem:[%s0 + $0x168] sm:$0xff]
  %v78 = vld [vmem:[%s0 + $0x170] sm:$0xff]
  %v79 = vld [vmem:[%s0 + $0x178] sm:$0xff]
  %v80 = vld [vmem:[%s1] sm:$0xff]
  %v81 = vld [vmem:[%s1 + $0x8] sm:$0xff]
  %v82 = vld [vmem:[%s1 + $0x10] sm:$0xff]
  %v83 = vld [vmem:[%s1 + $0x18] sm:$0xff]
  %v84 = vld [vmem:[%s1 + $0x20] sm:$0xff]
  %v85 = vld [vmem:[%s1 + $0x28] sm:$0xff]
  %v86 = vld [vmem:[%s1 + $0x30] sm:$0xff]
  %v87 = vld [vmem:[%s1 + $0x38] sm:$0xff]
  %v88 = vld [vmem:[%s1 + $0x40] sm:$0xff]
  %v89 = vld [vmem:[%s1 + $0x48] sm:$0xff]
  %v90 = vld [vmem:[%s1 + $0x50] sm:$0xff]
  %v91 = vld [vmem:[%s1 + $0x58] sm:$0xff]
  %v92 = vld [vmem:[%s1 + $0x60] sm:$0xff]
  %v93 = vld [vmem:[%s1 + $0x68] sm:$0xff]
  %v94 = vld [vmem:[%s1 + $0x70] sm:$0xff]
  %v95 = vld [vmem:[%s1 + $0x78] sm:$0xff]
  %v96 = vld [vmem:[%s1 + $0x80] sm:$0xff]
  %v97 = vld [vmem:[%s1 + $0x88] sm:$0xff]
  %v98 = vld [vmem:[%s1 + $0x90] sm:$0xff]
  %v99 = vld [vmem:[%s1 + $0x98] sm:$0xff]
  %v100 = vld [vmem:[%s1 + $0xa0] sm:$0xff]
  %v101 = vld [vmem:[%s1 + $0xa8] sm:$0xff]
  %v102 = vld [vmem:[%s1 + $0xb0] sm:$0xff]
  %v103 = vld [vmem:[%s1 + $0xb8] sm:$0xff]
  %v104 = vld [vmem:[%s1 + $0xc0] sm:$0xff]
  %v105 = vld [vmem:[%s1 + $0xc8] sm:$0xff]
  %v106 = vld [vmem:[%s1 + $0xd0] sm:$0xff]
  %v107 = vld [vmem:[%s1 + $0xd8] sm:$0xff]
  %v108 = vld [vmem:[%s1 + $0xe0] sm:$0xff]
  %v109 = vld [vmem:[%s1 + $0xe8] sm:$0xff]
  %v110 = vld [vmem:[%s1 + $0xf0] sm:$0xff]
  %v111 = vld [vmem:[%s1 + $0xf8] sm:$0xff]
  %v112 = vld [vmem:[%s1 + $0x100] sm:$0xff]
  %v113 = vld [vmem:[%s1 + $0x108] sm:$0xff]
  %v114 = vld [vmem:[%s1 + $0x110] sm:$0xff]
  %v115 = vld [vmem:[%s1 + $0x118] sm:$0xff]
  %v116 = vld [vmem:[%s1 + $0x120] sm:$0xff]
  %v117 = vld [vmem:[%s1 + $0x128] sm:$0xff]
  %v118 = vld [vmem:[%s1 + $0x130] sm:$0xff]
  %v119 = vld [vmem:[%s1 + $0x138] sm:$0xff]
  %v120 = vld [vmem:[%s1 + $0x140] sm:$0xff]
  %v121 = vld [vmem:[%s1 + $0x148] sm:$0xff]
  %v122 = vld [vmem:[%s1 + $0x150] sm:$0xff]
  %v123 = vld [vmem:[%s1 + $0x158] sm:$0xff]
  %v124 = vld [vmem:[%s1 + $0x160] sm:$0xff]
  %v125 = vld [vmem:[%s1 + $0x168] sm:$0xff]
  %v126 = vld [vmem:[%s1 + $0x170] sm:$0xff]
  %v127 = vld [vmem:[%s1 + $0x178] sm:$0xff]
  %v128 = vld [vmem:[%s1 + $0x180] sm:$0xff]
  %v129 = vld [vmem:[%s1 + $0x188] sm:$0xff]
  %v130 = vld [vmem:[%s1 + $0x190] sm:$0xff]
  %v131 = vld [vmem:[%s1 + $0x198] sm:$0xff]
  %v132 = vld [vmem:[%s1 + $0x1a0] sm:$0xff]
  %v133 = vld [vmem:[%s1 + $0x1a8] sm:$0xff]
  %v134 = vld [vmem:[%s1 + $0x1b0] sm:$0xff]
  %v135 = vld [vmem:[%s1 + $0x1b8] sm:$0xff]
  %v136 = vld [vmem:[%s1 + $0x1c0] sm:$0xff]
  %v137 = vld [vmem:[%s1 + $0x1c8] sm:$0xff]
  %v138 = vld [vmem:[%s1 + $0x1d0] sm:$0xff]
  %v139 = vld [vmem:[%s1 + $0x1d8] sm:$0xff]
  %v140 = vld [vmem:[%s1 + $0x1e0] sm:$0xff]
  %v141 = vld [vmem:[%s1 + $0x1e8] sm:$0xff]
  %v142 = vld [vmem:[%s1 + $0x1f0] sm:$0xff]
  %v143 = vld [vmem:[%s1 + $0x1f8] sm:$0xff]
  %v144 = vld [vmem:[%s1 + $0x200] sm:$0xff]
  %v145 = vld [vmem:[%s1 + $0x208] sm:$0xff]
  %v146 = vld [vmem:[%s1 + $0x210] sm:$0xff]
  %v147 = vld [vmem:[%s1 + $0x218] sm:$0xff]
  %v148 = vld [vmem:[%s1 + $0x220] sm:$0xff]
  %v149 = vld [vmem:[%s1 + $0x228] sm:$0xff]
  %v150 = vld [vmem:[%s1 + $0x230] sm:$0xff]
  %v151 = vld [vmem:[%s1 + $0x238] sm:$0xff]
  %v152 = vld [vmem:[%s1 + $0x240] sm:$0xff]
  %v153 = vld [vmem:[%s1 + $0x248] sm:$0xff]
  %v154 = vld [vmem:[%s1 + $0x250] sm:$0xff]
  %v155 = vld [vmem:[%s1 + $0x258] sm:$0xff]
  %v156 = vld [vmem:[%s1 + $0x260] sm:$0xff]
  %v157 = vld [vmem:[%s1 + $0x268] sm:$0xff]
  %v158 = vld [vmem:[%s1 + $0x270] sm:$0xff]
  %v159 = vld [vmem:[%s1 + $0x278] sm:$0xff]
  %v160 = vld [vmem:[%s1 + $0x280] sm:$0xff]
  %v161 = vld [vmem:[%s1 + $0x288] sm:$0xff]
  %v162 = vld [vmem:[%s1 + $0x290] sm:$0xff]
  %v163 = vld [vmem:[%s1 + $0x298] sm:$0xff]
  %v164 = vld [vmem:[%s1 + $0x2a0] sm:$0xff]
  %v165 = vld [vmem:[%s1 + $0x2a8] sm:$0xff]
  %v166 = vld [vmem:[%s1 + $0x2b0] sm:$0xff]
  %v167 = vld [vmem:[%s1 + $0x2b8] sm:$0xff]
  %v168 = vld [vmem:[%s1 + $0x2c0] sm:$0xff]
  %v169 = vld [vmem:[%s1 + $0x2c8] sm:$0xff]
  %v170 = vld [vmem:[%s1 + $0x2d0] sm:$0xff]
  %v171 = vld [vmem:[%s1 + $0x2d8] sm:$0xff]
  %v172 = vld [vmem:[%s1 + $0x2e0] sm:$0xff]
  %v173 = vld [vmem:[%s1 + $0x2e8] sm:$0xff]
  %v174 = vld [vmem:[%s1 + $0x2f0] sm:$0xff]
  %v175 = vld [vmem:[%s1 + $0x2f8] sm:$0xff]
  %v176 = vld [vmem:[%s1 + $0x300] sm:$0xff]
  %v177 = vld [vmem:[%s1 + $0x308] sm:$0xff]
  %v178 = vld [vmem:[%s1 + $0x310] sm:$0xff]
  %v179 = vld [vmem:[%s1 + $0x318] sm:$0xff]
  %v180 = vld [vmem:[%s1 + $0x320] sm:$0xff]
  %v181 = vld [vmem:[%s1 + $0x328] sm:$0xff]
  %v182 = vld [vmem:[%s1 + $0x330] sm:$0xff]
  %v183 = vld [vmem:[%s1 + $0x338] sm:$0xff]
  %v184 = vld [vmem:[%s1 + $0x340] sm:$0xff]
  %v185 = vld [vmem:[%s1 + $0x348] sm:$0xff]
  %v186 = vld [vmem:[%s1 + $0x350] sm:$0xff]
  %v187 = vld [vmem:[%s1 + $0x358] sm:$0xff]
  %v188 = vld [vmem:[%s1 + $0x360] sm:$0xff]
  %v189 = vld [vmem:[%s1 + $0x368] sm:$0xff]
  %v190 = vld [vmem:[%s1 + $0x370] sm:$0xff]
  %v191 = vld [vmem:[%s1 + $0x378] sm:$0xff]
  %v192 = vld [vmem:[%s1 + $0x380] sm:$0xff]
  %v193 = vld [vmem:[%s1 + $0x388] sm:$0xff]
  %v194 = vld [vmem:[%s1 + $0x390] sm:$0xff]
  %v195 = vld [vmem:[%s1 + $0x398] sm:$0xff]
  %v196 = vld [vmem:[%s1 + $0x3a0] sm:$0xff]
  %v197 = vld [vmem:[%s1 + $0x3a8] sm:$0xff]
  %v198 = vld [vmem:[%s1 + $0x3b0] sm:$0xff]
  %v199 = vld [vmem:[%s1 + $0x3b8] sm:$0xff]
  %v200 = vld [vmem:[%s1 + $0x3c0] sm:$0xff]
  %v201 = vld [vmem:[%s1 + $0x3c8] sm:$0xff]
  %v202 = vld [vmem:[%s1 + $0x3d0] sm:$0xff]
  %v203 = vld [vmem:[%s1 + $0x3d8] sm:$0xff]
  %v204 = vld [vmem:[%s1 + $0x3e0] sm:$0xff]
  %v205 = vld [vmem:[%s1 + $0x3e8] sm:$0xff]
  %v206 = vld [vmem:[%s1 + $0x3f0] sm:$0xff]
  %v207 = vld [vmem:[%s1 + $0x3f8] sm:$0xff]
  %v208 = vld [vmem:[%s1 + $0x400] sm:$0xff]
  %v209 = vld [vmem:[%s1 + $0x408] sm:$0xff]
  %v210 = vld [vmem:[%s1 + $0x410] sm:$0xff]
  %v211 = vld [vmem:[%s1 + $0x418] sm:$0xff]
  %v212 = vld [vmem:[%s1 + $0x420] sm:$0xff]
  %v213 = vld [vmem:[%s1 + $0x428] sm:$0xff]
  %v214 = vld [vmem:[%s1 + $0x430] sm:$0xff]
  %v215 = vld [vmem:[%s1 + $0x438] sm:$0xff]
  %v216 = vld [vmem:[%s1 + $0x440] sm:$0xff]
  %v217 = vld [vmem:[%s1 + $0x448] sm:$0xff]
  %v218 = vld [vmem:[%s1 + $0x450] sm:$0xff]
  %v219 = vld [vmem:[%s1 + $0x458] sm:$0xff]
  %v220 = vld [vmem:[%s1 + $0x460] sm:$0xff]
  %v221 = vld [vmem:[%s1 + $0x468] sm:$0xff]
  %v222 = vld [vmem:[%s1 + $0x470] sm:$0xff]
  %v223 = vld [vmem:[%s1 + $0x478] sm:$0xff]
  %v224 = vld [vmem:[%s1 + $0x480] sm:$0xff]
  %v225 = vld [vmem:[%s1 + $0x488] sm:$0xff]
  %v226 = vld [vmem:[%s1 + $0x490] sm:$0xff]
  %v227 = vld [vmem:[%s1 + $0x498] sm:$0xff]
  %v228 = vld [vmem:[%s1 + $0x4a0] sm:$0xff]
  %v229 = vld [vmem:[%s1 + $0x4a8] sm:$0xff]
  %v230 = vld [vmem:[%s1 + $0x4b0] sm:$0xff]
  %v231 = vld [vmem:[%s1 + $0x4b8] sm:$0xff]
  %v232 = vld [vmem:[%s1 + $0x4c0] sm:$0xff]
  %v233 = vld [vmem:[%s1 + $0x4c8] sm:$0xff]
  %v234 = vld [vmem:[%s1 + $0x4d0] sm:$0xff]
  %v235 = vld [vmem:[%s1 + $0x4d8] sm:$0xff]
  %v236 = vld [vmem:[%s1 + $0x4e0] sm:$0xff]
  %v237 = vld [vmem:[%s1 + $0x4e8] sm:$0xff]
  %v238 = vld [vmem:[%s1 + $0x4f0] sm:$0xff]
  %v239 = vld [vmem:[%s1 + $0x4f8] sm:$0xff]
  %v240 = vld [vmem:[%s1 + $0x500] sm:$0xff]
  %v241 = vld [vmem:[%s1 + $0x508] sm:$0xff]
  %v242 = vld [vmem:[%s1 + $0x510] sm:$0xff]
  %v243 = vld [vmem:[%s1 + $0x518] sm:$0xff]
  %v244 = vld [vmem:[%s1 + $0x520] sm:$0xff]
  %v245 = vld [vmem:[%s1 + $0x528] sm:$0xff]
  %v246 = vld [vmem:[%s1 + $0x530] sm:$0xff]
  %v247 = vld [vmem:[%s1 + $0x538] sm:$0xff]
  %v248 = vld [vmem:[%s1 + $0x540] sm:$0xff]
  %v249 = vld [vmem:[%s1 + $0x548] sm:$0xff]
  %v250 = vld [vmem:[%s1 + $0x550] sm:$0xff]
  %v251 = vld [vmem:[%s1 + $0x558] sm:$0xff]
  %v252 = vld [vmem:[%s1 + $0x560] sm:$0xff]
  %v253 = vld [vmem:[%s1 + $0x568] sm:$0xff]
  %v254 = vld [vmem:[%s1 + $0x570] sm:$0xff]
  %v255 = vld [vmem:[%s1 + $0x578] sm:$0xff]
  %v256 = vld [vmem:[%s1 + $0x580] sm:$0xff]
  %v257 = vld [vmem:[%s1 + $0x588] sm:$0xff]
  %v258 = vld [vmem:[%s1 + $0x590] sm:$0xff]
  %v259 = vld [vmem:[%s1 + $0x598] sm:$0xff]
  %v260 = vld [vmem:[%s1 + $0x5a0] sm:$0xff]
  %v261 = vld [vmem:[%s1 + $0x5a8] sm:$0xff]
  %v262 = vld [vmem:[%s1 + $0x5b0] sm:$0xff]
  %v263 = vld [vmem:[%s1 + $0x5b8] sm:$0xff]
  %v264 = vld [vmem:[%s1 + $0x5c0] sm:$0xff]
  %v265 = vld [vmem:[%s1 + $0x5c8] sm:$0xff]
  %v266 = vld [vmem:[%s1 + $0x5d0] sm:$0xff]
  %v267 = vld [vmem:[%s1 + $0x5d8] sm:$0xff]
  %v268 = vld [vmem:[%s1 + $0x5e0] sm:$0xff]
  %v269 = vld [vmem:[%s1 + $0x5e8] sm:$0xff]
  %v270 = vld [vmem:[%s1 + $0x5f0] sm:$0xff]
  %v271 = vld [vmem:[%s1 + $0x5f8] sm:$0xff]
  %v272 = vld [vmem:[%s4] sm:$0x3]
  %v274 = vperm.slane %v272, 0
  %v275 = vperm.slane %v272, 1
  %278 = vmatpush.msra.mxu0 %v110
  %279 = vmatpush.msra.mxu0 %v108
  %280 = vmatpush.msra.mxu0 %v106
  %281 = vmatpush.msra.mxu0 %v104
  %282 = vmatpush.msra.mxu0 %v102
  %283 = vmatpush.msra.mxu0 %v100
  %284 = vmatpush.msra.mxu0 %v98
  %285 = vmatpush.msra.mxu0 %v96
  %286 = vmatpush.msra.mxu0 %v94
  %287 = vmatpush.msra.mxu0 %v92
  %288 = vmatpush.msra.mxu0 %v90
  %289 = vmatpush.msra.mxu0 %v88
  %290 = vmatpush.msra.mxu0 %v86
  %291 = vmatpush.msra.mxu0 %v84
  %292 = vmatpush.msra.mxu0 %v82
  %293 = vmatpush.msra.mxu0 %v80
  %294 = vmatmul.f32.gmra.mxu0 %v32
  %v295 = vpop.f32.mrf.mxu0
  %v296 = vadd.f32 %v274, %v295
  %297 = vmatmul.f32.gmra.mxu0 %v38
  %v298 = vpop.f32.mrf.mxu0
  %v299 = vadd.f32 %v274, %v298
  %300 = vmatmul.f32.gmra.mxu0 %v44
  %v301 = vpop.f32.mrf.mxu0
  %v302 = vadd.f32 %v274, %v301
  %303 = vmatmul.f32.gmra.mxu0 %v50
  %v304 = vpop.f32.mrf.mxu0
  %v305 = vadd.f32 %v274, %v304
  %306 = vmatmul.f32.gmra.mxu0 %v56
  %v307 = vpop.f32.mrf.mxu0
  %v308 = vadd.f32 %v274, %v307
  %309 = vmatmul.f32.gmra.mxu0 %v62
  %v310 = vpop.f32.mrf.mxu0
  %v311 = vadd.f32 %v274, %v310
  %312 = vmatmul.f32.gmra.mxu0 %v68
  %v313 = vpop.f32.mrf.mxu0
  %v314 = vadd.f32 %v274, %v313
  %315 = vmatmul.f32.gmra.mxu0 %v74
  %v316 = vpop.f32.mrf.mxu0
  %v317 = vadd.f32 %v274, %v316
  %318 = vdwg.mxu0
  %319 = vmatpush.msra.mxu0 %v142
  %320 = vmatpush.msra.mxu0 %v140
  %321 = vmatpush.msra.mxu0 %v138
  %322 = vmatpush.msra.mxu0 %v136
  %323 = vmatpush.msra.mxu0 %v134
  %324 = vmatpush.msra.mxu0 %v132
  %325 = vmatpush.msra.mxu0 %v130
  %326 = vmatpush.msra.mxu0 %v128
  %327 = vmatpush.msra.mxu0 %v126
  %328 = vmatpush.msra.mxu0 %v124
  %329 = vmatpush.msra.mxu0 %v122
  %330 = vmatpush.msra.mxu0 %v120
  %331 = vmatpush.msra.mxu0 %v118
  %332 = vmatpush.msra.mxu0 %v116
  %333 = vmatpush.msra.mxu0 %v114
  %334 = vmatpush.msra.mxu0 %v112
  %335 = vmatmul.f32.gmra.mxu0 %v33
  %v336 = vpop.f32.mrf.mxu0
  %v337 = vadd.f32 %v296, %v336
  %338 = vmatmul.f32.gmra.mxu0 %v39
  %v339 = vpop.f32.mrf.mxu0
  %v340 = vadd.f32 %v299, %v339
  %341 = vmatmul.f32.gmra.mxu0 %v45
  %v342 = vpop.f32.mrf.mxu0
  %v343 = vadd.f32 %v302, %v342
  %344 = vmatmul.f32.gmra.mxu0 %v51
  %v345 = vpop.f32.mrf.mxu0
  %v346 = vadd.f32 %v305, %v345
  %347 = vmatmul.f32.gmra.mxu0 %v57
  %v348 = vpop.f32.mrf.mxu0
  %v349 = vadd.f32 %v308, %v348
  %350 = vmatmul.f32.gmra.mxu0 %v63
  %v351 = vpop.f32.mrf.mxu0
  %v352 = vadd.f32 %v311, %v351
  %353 = vmatmul.f32.gmra.mxu0 %v69
  %v354 = vpop.f32.mrf.mxu0
  %v355 = vadd.f32 %v314, %v354
  %356 = vmatmul.f32.gmra.mxu0 %v75
  %v357 = vpop.f32.mrf.mxu0
  %v358 = vadd.f32 %v317, %v357
  %359 = vdwg.mxu0
  %360 = vmatpush.msra.mxu0 %v174
  %361 = vmatpush.msra.mxu0 %v172
  %362 = vmatpush.msra.mxu0 %v170
  %363 = vmatpush.msra.mxu0 %v168
  %364 = vmatpush.msra.mxu0 %v166
  %365 = vmatpush.msra.mxu0 %v164
  %366 = vmatpush.msra.mxu0 %v162
  %367 = vmatpush.msra.mxu0 %v160
  %368 = vmatpush.msra.mxu0 %v158
  %369 = vmatpush.msra.mxu0 %v156
  %370 = vmatpush.msra.mxu0 %v154
  %371 = vmatpush.msra.mxu0 %v152
  %372 = vmatpush.msra.mxu0 %v150
  %373 = vmatpush.msra.mxu0 %v148
  %374 = vmatpush.msra.mxu0 %v146
  %375 = vmatpush.msra.mxu0 %v144
  %376 = vmatmul.f32.gmra.mxu0 %v34
  %v377 = vpop.f32.mrf.mxu0
  %v378 = vadd.f32 %v337, %v377
  %379 = vmatmul.f32.gmra.mxu0 %v40
  %v380 = vpop.f32.mrf.mxu0
  %v381 = vadd.f32 %v340, %v380
  %382 = vmatmul.f32.gmra.mxu0 %v46
  %v383 = vpop.f32.mrf.mxu0
  %v384 = vadd.f32 %v343, %v383
  %385 = vmatmul.f32.gmra.mxu0 %v52
  %v386 = vpop.f32.mrf.mxu0
  %v387 = vadd.f32 %v346, %v386
  %388 = vmatmul.f32.gmra.mxu0 %v58
  %v389 = vpop.f32.mrf.mxu0
  %v390 = vadd.f32 %v349, %v389
  %391 = vmatmul.f32.gmra.mxu0 %v64
  %v392 = vpop.f32.mrf.mxu0
  %v393 = vadd.f32 %v352, %v392
  %394 = vmatmul.f32.gmra.mxu0 %v70
  %v395 = vpop.f32.mrf.mxu0
  %v396 = vadd.f32 %v355, %v395
  %397 = vmatmul.f32.gmra.mxu0 %v76
  %v398 = vpop.f32.mrf.mxu0
  %v399 = vadd.f32 %v358, %v398
  %400 = vdwg.mxu0
  %401 = vmatpush.msra.mxu0 %v206
  %402 = vmatpush.msra.mxu0 %v204
  %403 = vmatpush.msra.mxu0 %v202
  %404 = vmatpush.msra.mxu0 %v200
  %405 = vmatpush.msra.mxu0 %v198
  %406 = vmatpush.msra.mxu0 %v196
  %407 = vmatpush.msra.mxu0 %v194
  %408 = vmatpush.msra.mxu0 %v192
  %409 = vmatpush.msra.mxu0 %v190
  %410 = vmatpush.msra.mxu0 %v188
  %411 = vmatpush.msra.mxu0 %v186
  %412 = vmatpush.msra.mxu0 %v184
  %413 = vmatpush.msra.mxu0 %v182
  %414 = vmatpush.msra.mxu0 %v180
  %415 = vmatpush.msra.mxu0 %v178
  %416 = vmatpush.msra.mxu0 %v176
  %417 = vmatmul.f32.gmra.mxu0 %v35
  %v418 = vpop.f32.mrf.mxu0
  %v419 = vadd.f32 %v378, %v418
  %420 = vmatmul.f32.gmra.mxu0 %v41
  %v421 = vpop.f32.mrf.mxu0
  %v422 = vadd.f32 %v381, %v421
  %423 = vmatmul.f32.gmra.mxu0 %v47
  %v424 = vpop.f32.mrf.mxu0
  %v425 = vadd.f32 %v384, %v424
  %426 = vmatmul.f32.gmra.mxu0 %v53
  %v427 = vpop.f32.mrf.mxu0
  %v428 = vadd.f32 %v387, %v427
  %429 = vmatmul.f32.gmra.mxu0 %v59
  %v430 = vpop.f32.mrf.mxu0
  %v431 = vadd.f32 %v390, %v430
  %432 = vmatmul.f32.gmra.mxu0 %v65
  %v433 = vpop.f32.mrf.mxu0
  %v434 = vadd.f32 %v393, %v433
  %435 = vmatmul.f32.gmra.mxu0 %v71
  %v436 = vpop.f32.mrf.mxu0
  %v437 = vadd.f32 %v396, %v436
  %438 = vmatmul.f32.gmra.mxu0 %v77
  %v439 = vpop.f32.mrf.mxu0
  %v440 = vadd.f32 %v399, %v439
  %441 = vdwg.mxu0
  %442 = vmatpush.msra.mxu0 %v238
  %443 = vmatpush.msra.mxu0 %v236
  %444 = vmatpush.msra.mxu0 %v234
  %445 = vmatpush.msra.mxu0 %v232
  %446 = vmatpush.msra.mxu0 %v230
  %447 = vmatpush.msra.mxu0 %v228
  %448 = vmatpush.msra.mxu0 %v226
  %449 = vmatpush.msra.mxu0 %v224
  %450 = vmatpush.msra.mxu0 %v222
  %451 = vmatpush.msra.mxu0 %v220
  %452 = vmatpush.msra.mxu0 %v218
  %453 = vmatpush.msra.mxu0 %v216
  %454 = vmatpush.msra.mxu0 %v214
  %455 = vmatpush.msra.mxu0 %v212
  %456 = vmatpush.msra.mxu0 %v210
  %457 = vmatpush.msra.mxu0 %v208
  %458 = vmatmul.f32.gmra.mxu0 %v36
  %v459 = vpop.f32.mrf.mxu0
  %v460 = vadd.f32 %v419, %v459
  %461 = vmatmul.f32.gmra.mxu0 %v42
  %v462 = vpop.f32.mrf.mxu0
  %v463 = vadd.f32 %v422, %v462
  %464 = vmatmul.f32.gmra.mxu0 %v48
  %v465 = vpop.f32.mrf.mxu0
  %v466 = vadd.f32 %v425, %v465
  %467 = vmatmul.f32.gmra.mxu0 %v54
  %v468 = vpop.f32.mrf.mxu0
  %v469 = vadd.f32 %v428, %v468
  %470 = vmatmul.f32.gmra.mxu0 %v60
  %v471 = vpop.f32.mrf.mxu0
  %v472 = vadd.f32 %v431, %v471
  %473 = vmatmul.f32.gmra.mxu0 %v66
  %v474 = vpop.f32.mrf.mxu0
  %v475 = vadd.f32 %v434, %v474
  %476 = vmatmul.f32.gmra.mxu0 %v72
  %v477 = vpop.f32.mrf.mxu0
  %v478 = vadd.f32 %v437, %v477
  %479 = vmatmul.f32.gmra.mxu0 %v78
  %v480 = vpop.f32.mrf.mxu0
  %v481 = vadd.f32 %v440, %v480
  %482 = vdwg.mxu0
  %483 = vmatpush.msra.mxu0 %v270
  %484 = vmatpush.msra.mxu0 %v268
  %485 = vmatpush.msra.mxu0 %v266
  %486 = vmatpush.msra.mxu0 %v264
  %487 = vmatpush.msra.mxu0 %v262
  %488 = vmatpush.msra.mxu0 %v260
  %489 = vmatpush.msra.mxu0 %v258
  %490 = vmatpush.msra.mxu0 %v256
  %491 = vmatpush.msra.mxu0 %v254
  %492 = vmatpush.msra.mxu0 %v252
  %493 = vmatpush.msra.mxu0 %v250
  %494 = vmatpush.msra.mxu0 %v248
  %495 = vmatpush.msra.mxu0 %v246
  %496 = vmatpush.msra.mxu0 %v244
  %497 = vmatpush.msra.mxu0 %v242
  %498 = vmatpush.msra.mxu0 %v240
  %499 = vmatmul.f32.gmra.mxu0 %v37
  %v500 = vpop.f32.mrf.mxu0
  %v501 = vadd.f32 %v460, %v500
  %502 = vmatmul.f32.gmra.mxu0 %v43
  %v503 = vpop.f32.mrf.mxu0
  %v504 = vadd.f32 %v463, %v503
  %505 = vmatmul.f32.gmra.mxu0 %v49
  %v506 = vpop.f32.mrf.mxu0
  %v507 = vadd.f32 %v466, %v506
  %508 = vmatmul.f32.gmra.mxu0 %v55
  %v509 = vpop.f32.mrf.mxu0
  %v510 = vadd.f32 %v469, %v509
  %511 = vmatmul.f32.gmra.mxu0 %v61
  %v512 = vpop.f32.mrf.mxu0
  %v513 = vadd.f32 %v472, %v512
  %514 = vmatmul.f32.gmra.mxu0 %v67
  %v515 = vpop.f32.mrf.mxu0
  %v516 = vadd.f32 %v475, %v515
  %517 = vmatmul.f32.gmra.mxu0 %v73
  %v518 = vpop.f32.mrf.mxu0
  %v519 = vadd.f32 %v478, %v518
  %520 = vmatmul.f32.gmra.mxu0 %v79
  %v521 = vpop.f32.mrf.mxu0
  %v522 = vadd.f32 %v481, %v521
  %523 = vdwg.mxu0
  %524 = vmatpush.msra.mxu0 %v111
  %525 = vmatpush.msra.mxu0 %v109
  %526 = vmatpush.msra.mxu0 %v107
  %527 = vmatpush.msra.mxu0 %v105
  %528 = vmatpush.msra.mxu0 %v103
  %529 = vmatpush.msra.mxu0 %v101
  %530 = vmatpush.msra.mxu0 %v99
  %531 = vmatpush.msra.mxu0 %v97
  %532 = vmatpush.msra.mxu0 %v95
  %533 = vmatpush.msra.mxu0 %v93
  %534 = vmatpush.msra.mxu0 %v91
  %535 = vmatpush.msra.mxu0 %v89
  %536 = vmatpush.msra.mxu0 %v87
  %537 = vmatpush.msra.mxu0 %v85
  %538 = vmatpush.msra.mxu0 %v83
  %539 = vmatpush.msra.mxu0 %v81
  %540 = vmatmul.f32.gmra.mxu0 %v32
  %v541 = vpop.f32.mrf.mxu0
  %v542 = vadd.f32 %v275, %v541
  %543 = vmatmul.f32.gmra.mxu0 %v38
  %v544 = vpop.f32.mrf.mxu0
  %v545 = vadd.f32 %v275, %v544
  %546 = vmatmul.f32.gmra.mxu0 %v44
  %v547 = vpop.f32.mrf.mxu0
  %v548 = vadd.f32 %v275, %v547
  %549 = vmatmul.f32.gmra.mxu0 %v50
  %v550 = vpop.f32.mrf.mxu0
  %v551 = vadd.f32 %v275, %v550
  %552 = vmatmul.f32.gmra.mxu0 %v56
  %v553 = vpop.f32.mrf.mxu0
  %v554 = vadd.f32 %v275, %v553
  %555 = vmatmul.f32.gmra.mxu0 %v62
  %v556 = vpop.f32.mrf.mxu0
  %v557 = vadd.f32 %v275, %v556
  %558 = vmatmul.f32.gmra.mxu0 %v68
  %v559 = vpop.f32.mrf.mxu0
  %v560 = vadd.f32 %v275, %v559
  %561 = vmatmul.f32.gmra.mxu0 %v74
  %v562 = vpop.f32.mrf.mxu0
  %v563 = vadd.f32 %v275, %v562
  %564 = vdwg.mxu0
  %565 = vmatpush.msra.mxu0 %v143
  %566 = vmatpush.msra.mxu0 %v141
  %567 = vmatpush.msra.mxu0 %v139
  %568 = vmatpush.msra.mxu0 %v137
  %569 = vmatpush.msra.mxu0 %v135
  %570 = vmatpush.msra.mxu0 %v133
  %571 = vmatpush.msra.mxu0 %v131
  %572 = vmatpush.msra.mxu0 %v129
  %573 = vmatpush.msra.mxu0 %v127
  %574 = vmatpush.msra.mxu0 %v125
  %575 = vmatpush.msra.mxu0 %v123
  %576 = vmatpush.msra.mxu0 %v121
  %577 = vmatpush.msra.mxu0 %v119
  %578 = vmatpush.msra.mxu0 %v117
  %579 = vmatpush.msra.mxu0 %v115
  %580 = vmatpush.msra.mxu0 %v113
  %581 = vmatmul.f32.gmra.mxu0 %v33
  %v582 = vpop.f32.mrf.mxu0
  %v583 = vadd.f32 %v542, %v582
  %584 = vmatmul.f32.gmra.mxu0 %v39
  %v585 = vpop.f32.mrf.mxu0
  %v586 = vadd.f32 %v545, %v585
  %587 = vmatmul.f32.gmra.mxu0 %v45
  %v588 = vpop.f32.mrf.mxu0
  %v589 = vadd.f32 %v548, %v588
  %590 = vmatmul.f32.gmra.mxu0 %v51
  %v591 = vpop.f32.mrf.mxu0
  %v592 = vadd.f32 %v551, %v591
  %593 = vmatmul.f32.gmra.mxu0 %v57
  %v594 = vpop.f32.mrf.mxu0
  %v595 = vadd.f32 %v554, %v594
  %596 = vmatmul.f32.gmra.mxu0 %v63
  %v597 = vpop.f32.mrf.mxu0
  %v598 = vadd.f32 %v557, %v597
  %599 = vmatmul.f32.gmra.mxu0 %v69
  %v600 = vpop.f32.mrf.mxu0
  %v601 = vadd.f32 %v560, %v600
  %602 = vmatmul.f32.gmra.mxu0 %v75
  %v603 = vpop.f32.mrf.mxu0
  %v604 = vadd.f32 %v563, %v603
  %605 = vdwg.mxu0
  %606 = vmatpush.msra.mxu0 %v175
  %607 = vmatpush.msra.mxu0 %v173
  %608 = vmatpush.msra.mxu0 %v171
  %609 = vmatpush.msra.mxu0 %v169
  %610 = vmatpush.msra.mxu0 %v167
  %611 = vmatpush.msra.mxu0 %v165
  %612 = vmatpush.msra.mxu0 %v163
  %613 = vmatpush.msra.mxu0 %v161
  %614 = vmatpush.msra.mxu0 %v159
  %615 = vmatpush.msra.mxu0 %v157
  %616 = vmatpush.msra.mxu0 %v155
  %617 = vmatpush.msra.mxu0 %v153
  %618 = vmatpush.msra.mxu0 %v151
  %619 = vmatpush.msra.mxu0 %v149
  %620 = vmatpush.msra.mxu0 %v147
  %621 = vmatpush.msra.mxu0 %v145
  %622 = vmatmul.f32.gmra.mxu0 %v34
  %v623 = vpop.f32.mrf.mxu0
  %v624 = vadd.f32 %v583, %v623
  %625 = vmatmul.f32.gmra.mxu0 %v40
  %v626 = vpop.f32.mrf.mxu0
  %v627 = vadd.f32 %v586, %v626
  %628 = vmatmul.f32.gmra.mxu0 %v46
  %v629 = vpop.f32.mrf.mxu0
  %v630 = vadd.f32 %v589, %v629
  %631 = vmatmul.f32.gmra.mxu0 %v52
  %v632 = vpop.f32.mrf.mxu0
  %v633 = vadd.f32 %v592, %v632
  %634 = vmatmul.f32.gmra.mxu0 %v58
  %v635 = vpop.f32.mrf.mxu0
  %v636 = vadd.f32 %v595, %v635
  %637 = vmatmul.f32.gmra.mxu0 %v64
  %v638 = vpop.f32.mrf.mxu0
  %v639 = vadd.f32 %v598, %v638
  %640 = vmatmul.f32.gmra.mxu0 %v70
  %v641 = vpop.f32.mrf.mxu0
  %v642 = vadd.f32 %v601, %v641
  %643 = vmatmul.f32.gmra.mxu0 %v76
  %v644 = vpop.f32.mrf.mxu0
  %v645 = vadd.f32 %v604, %v644
  %646 = vdwg.mxu0
  %647 = vmatpush.msra.mxu0 %v207
  %648 = vmatpush.msra.mxu0 %v205
  %649 = vmatpush.msra.mxu0 %v203
  %650 = vmatpush.msra.mxu0 %v201
  %651 = vmatpush.msra.mxu0 %v199
  %652 = vmatpush.msra.mxu0 %v197
  %653 = vmatpush.msra.mxu0 %v195
  %654 = vmatpush.msra.mxu0 %v193
  %655 = vmatpush.msra.mxu0 %v191
  %656 = vmatpush.msra.mxu0 %v189
  %657 = vmatpush.msra.mxu0 %v187
  %658 = vmatpush.msra.mxu0 %v185
  %659 = vmatpush.msra.mxu0 %v183
  %660 = vmatpush.msra.mxu0 %v181
  %661 = vmatpush.msra.mxu0 %v179
  %662 = vmatpush.msra.mxu0 %v177
  %663 = vmatmul.f32.gmra.mxu0 %v35
  %v664 = vpop.f32.mrf.mxu0
  %v665 = vadd.f32 %v624, %v664
  %666 = vmatmul.f32.gmra.mxu0 %v41
  %v667 = vpop.f32.mrf.mxu0
  %v668 = vadd.f32 %v627, %v667
  %669 = vmatmul.f32.gmra.mxu0 %v47
  %v670 = vpop.f32.mrf.mxu0
  %v671 = vadd.f32 %v630, %v670
  %672 = vmatmul.f32.gmra.mxu0 %v53
  %v673 = vpop.f32.mrf.mxu0
  %v674 = vadd.f32 %v633, %v673
  %675 = vmatmul.f32.gmra.mxu0 %v59
  %v676 = vpop.f32.mrf.mxu0
  %v677 = vadd.f32 %v636, %v676
  %678 = vmatmul.f32.gmra.mxu0 %v65
  %v679 = vpop.f32.mrf.mxu0
  %v680 = vadd.f32 %v639, %v679
  %681 = vmatmul.f32.gmra.mxu0 %v71
  %v682 = vpop.f32.mrf.mxu0
  %v683 = vadd.f32 %v642, %v682
  %684 = vmatmul.f32.gmra.mxu0 %v77
  %v685 = vpop.f32.mrf.mxu0
  %v686 = vadd.f32 %v645, %v685
  %687 = vdwg.mxu0
  %688 = vmatpush.msra.mxu0 %v239
  %689 = vmatpush.msra.mxu0 %v237
  %690 = vmatpush.msra.mxu0 %v235
  %691 = vmatpush.msra.mxu0 %v233
  %692 = vmatpush.msra.mxu0 %v231
  %693 = vmatpush.msra.mxu0 %v229
  %694 = vmatpush.msra.mxu0 %v227
  %695 = vmatpush.msra.mxu0 %v225
  %696 = vmatpush.msra.mxu0 %v223
  %697 = vmatpush.msra.mxu0 %v221
  %698 = vmatpush.msra.mxu0 %v219
  %699 = vmatpush.msra.mxu0 %v217
  %700 = vmatpush.msra.mxu0 %v215
  %701 = vmatpush.msra.mxu0 %v213
  %702 = vmatpush.msra.mxu0 %v211
  %703 = vmatpush.msra.mxu0 %v209
  %704 = vmatmul.f32.gmra.mxu0 %v36
  %v705 = vpop.f32.mrf.mxu0
  %v706 = vadd.f32 %v665, %v705
  %707 = vmatmul.f32.gmra.mxu0 %v42
  %v708 = vpop.f32.mrf.mxu0
  %v709 = vadd.f32 %v668, %v708
  %710 = vmatmul.f32.gmra.mxu0 %v48
  %v711 = vpop.f32.mrf.mxu0
  %v712 = vadd.f32 %v671, %v711
  %713 = vmatmul.f32.gmra.mxu0 %v54
  %v714 = vpop.f32.mrf.mxu0
  %v715 = vadd.f32 %v674, %v714
  %716 = vmatmul.f32.gmra.mxu0 %v60
  %v717 = vpop.f32.mrf.mxu0
  %v718 = vadd.f32 %v677, %v717
  %719 = vmatmul.f32.gmra.mxu0 %v66
  %v720 = vpop.f32.mrf.mxu0
  %v721 = vadd.f32 %v680, %v720
  %722 = vmatmul.f32.gmra.mxu0 %v72
  %v723 = vpop.f32.mrf.mxu0
  %v724 = vadd.f32 %v683, %v723
  %725 = vmatmul.f32.gmra.mxu0 %v78
  %v726 = vpop.f32.mrf.mxu0
  %v727 = vadd.f32 %v686, %v726
  %728 = vdwg.mxu0
  %729 = vmatpush.msra.mxu0 %v271
  %730 = vmatpush.msra.mxu0 %v269
  %731 = vmatpush.msra.mxu0 %v267
  %732 = vmatpush.msra.mxu0 %v265
  %733 = vmatpush.msra.mxu0 %v263
  %734 = vmatpush.msra.mxu0 %v261
  %735 = vmatpush.msra.mxu0 %v259
  %736 = vmatpush.msra.mxu0 %v257
  %737 = vmatpush.msra.mxu0 %v255
  %738 = vmatpush.msra.mxu0 %v253
  %739 = vmatpush.msra.mxu0 %v251
  %740 = vmatpush.msra.mxu0 %v249
  %741 = vmatpush.msra.mxu0 %v247
  %742 = vmatpush.msra.mxu0 %v245
  %743 = vmatpush.msra.mxu0 %v243
  %744 = vmatpush.msra.mxu0 %v241
  %745 = vmatmul.f32.gmra.mxu0 %v37
  %v746 = vpop.f32.mrf.mxu0
  %v747 = vadd.f32 %v706, %v746
  %748 = vmatmul.f32.gmra.mxu0 %v43
  %v749 = vpop.f32.mrf.mxu0
  %v750 = vadd.f32 %v709, %v749
  %751 = vmatmul.f32.gmra.mxu0 %v49
  %v752 = vpop.f32.mrf.mxu0
  %v753 = vadd.f32 %v712, %v752
  %754 = vmatmul.f32.gmra.mxu0 %v55
  %v755 = vpop.f32.mrf.mxu0
  %v756 = vadd.f32 %v715, %v755
  %757 = vmatmul.f32.gmra.mxu0 %v61
  %v758 = vpop.f32.mrf.mxu0
  %v759 = vadd.f32 %v718, %v758
  %760 = vmatmul.f32.gmra.mxu0 %v67
  %v761 = vpop.f32.mrf.mxu0
  %v762 = vadd.f32 %v721, %v761
  %763 = vmatmul.f32.gmra.mxu0 %v73
  %v764 = vpop.f32.mrf.mxu0
  %v765 = vadd.f32 %v724, %v764
  %766 = vmatmul.f32.gmra.mxu0 %v79
  %v767 = vpop.f32.mrf.mxu0
  %v768 = vadd.f32 %v727, %v767
  %769 = vdwg.mxu0
  %770 = vst [vmem:[#allocation2] sm:$0xff] %v501
  %771 = vst [vmem:[#allocation2 + $0x8] sm:$0xff] %v747
  %772 = vst [vmem:[#allocation2 + $0x10] sm:$0xff] %v504
  %773 = vst [vmem:[#allocation2 + $0x18] sm:$0xff] %v750
  %774 = vst [vmem:[#allocation2 + $0x20] sm:$0xff] %v507
  %775 = vst [vmem:[#allocation2 + $0x28] sm:$0xff] %v753
  %776 = vst [vmem:[#allocation2 + $0x30] sm:$0xff] %v510
  %777 = vst [vmem:[#allocation2 + $0x38] sm:$0xff] %v756
  %778 = vst [vmem:[#allocation2 + $0x40] sm:$0xff] %v513
  %779 = vst [vmem:[#allocation2 + $0x48] sm:$0xff] %v759
  %780 = vst [vmem:[#allocation2 + $0x50] sm:$0xff] %v516
  %781 = vst [vmem:[#allocation2 + $0x58] sm:$0xff] %v762
  %782 = vst [vmem:[#allocation2 + $0x60] sm:$0xff] %v519
  %783 = vst [vmem:[#allocation2 + $0x68] sm:$0xff] %v765
  %784 = vst [vmem:[#allocation2 + $0x70] sm:$0xff] %v522
  %785 = vst [vmem:[#allocation2 + $0x78] sm:$0xff] %v768
  %v786 = vld [vmem:[%s3] sm:$0xff]
  %v787 = vld [vmem:[%s3 + $0x8] sm:$0xff]
  %v788 = vld [vmem:[%s3 + $0x10] sm:$0xff]
  %v789 = vld [vmem:[%s3 + $0x18] sm:$0xff]
  %v790 = vld [vmem:[%s3 + $0x20] sm:$0xff]
  %v791 = vld [vmem:[%s3 + $0x28] sm:$0xff]
  %v792 = vld [vmem:[%s3 + $0x30] sm:$0xff]
  %v793 = vld [vmem:[%s3 + $0x38] sm:$0xff]
  %v794 = vld [vmem:[%s3 + $0x40] sm:$0xff]
  %v795 = vld [vmem:[%s3 + $0x48] sm:$0xff]
  %v796 = vld [vmem:[%s3 + $0x50] sm:$0xff]
  %v797 = vld [vmem:[%s3 + $0x58] sm:$0xff]
  %v798 = vld [vmem:[%s3 + $0x60] sm:$0xff]
  %v799 = vld [vmem:[%s3 + $0x68] sm:$0xff]
  %v800 = vld [vmem:[%s3 + $0x70] sm:$0xff]
  %v801 = vld [vmem:[%s3 + $0x78] sm:$0xff]
  %v802 = vld [vmem:[%s5] sm:$0xff]
  %v803 = vld [vmem:[%s6] sm:$0xff]
  %vm804 = vcmask 523264
  %v806 = vsel %vm804, %v802, 0
  %808 = vmatpush.msra.mxu0 0.0
  %809 = vmatpush.msra.mxu0 0.0
  %810 = vmatpush.msra.mxu0 0.0
  %811 = vmatpush.msra.mxu0 0.0
  %812 = vmatpush.msra.mxu0 0.0
  %813 = vmatpush.msra.mxu0 0.0
  %814 = vmatpush.msra.mxu0 0.0
  %815 = vmatpush.msra.mxu0 0.0
  %816 = vmatpush.msra.mxu0 %v800
  %817 = vmatpush.msra.mxu0 %v798
  %818 = vmatpush.msra.mxu0 %v796
  %819 = vmatpush.msra.mxu0 %v794
  %820 = vmatpush.msra.mxu0 %v792
  %821 = vmatpush.msra.mxu0 %v790
  %822 = vmatpush.msra.mxu0 %v788
  %823 = vmatpush.msra.mxu0 %v786
  %824 = vmatmul.f32.gmra.mxu0 %v806
  %v825 = vpop.f32.mrf.mxu0
  %v826 = vadd.f32 0.0, %v825
  %827 = vdwg.mxu0
  %828 = vmatpush.msra.mxu0 0.0
  %829 = vmatpush.msra.mxu0 0.0
  %830 = vmatpush.msra.mxu0 0.0
  %831 = vmatpush.msra.mxu0 0.0
  %832 = vmatpush.msra.mxu0 0.0
  %833 = vmatpush.msra.mxu0 0.0
  %834 = vmatpush.msra.mxu0 0.0
  %835 = vmatpush.msra.mxu0 0.0
  %836 = vmatpush.msra.mxu0 %v801
  %837 = vmatpush.msra.mxu0 %v799
  %838 = vmatpush.msra.mxu0 %v797
  %839 = vmatpush.msra.mxu0 %v795
  %840 = vmatpush.msra.mxu0 %v793
  %841 = vmatpush.msra.mxu0 %v791
  %842 = vmatpush.msra.mxu0 %v789
  %843 = vmatpush.msra.mxu0 %v787
  %844 = vmatmul.f32.gmra.mxu0 %v806
  %v845 = vpop.f32.mrf.mxu0
  %v846 = vadd.f32 0.0, %v845
  %847 = vdwg.mxu0
  %v848 = vld [vmem:[#allocation2] sm:$0xff]
  %v849 = vadd.f32 %v848, %v826
  %v850 = vld [vmem:[#allocation2 + $0x78] sm:$0xff]
  %v851 = vadd.f32 %v850, %v846
  %v852 = vxor.u32 %v849, 2147483648
  %v853 = vmul.f32 %v852, 1.442695
  %v854 = vpow.pop %v853
  %v855 = vadd.f32 %v854, 1.0
  %v856 = vrcp.pop %v855
  %v857 = vmul.f32 %v855, %v856
  %v858 = vsub.f32 1.0, %v857
  %v859 = vmul.f32 %v856, %v858
  %v860 = vadd.f32 %v856, %v859
  %vm861 = vweird.f32 %v855
  %vm862 = vweird.f32 %v856
  %vm863 = vmor %vm861, %vm862
  %v864 = vsel %vm863, %v856, %v860
  %v865 = vand.u32 2147483647, %v855
  %vm866 = vcmp.eq.f32.partialorder %v865, 8.507059e+37
  %v867 = vand.u32 %v855, 2147483648
  %v868 = vor.u32 1.1754944e-38, %v867
  %v869 = vsel %vm866, %v868, %v864
  %v870 = vmul.f32 1.0, %v869
  %v871 = vtanh.pop %v849
  %873 = vrot.lane.b32.xlu0 %v803, 32
  %v874 = vpop.permute.xlu0 %873
  %v876 = vmul.f32 %v870, %v874
  %878 = vrot.lane.b32.xlu0 %v871, 32
  %v879 = vpop.permute.xlu0 %878
  %v881 = vmul.f32 %v870, %v879
  %883 = vrot.lane.b32.xlu0 %v881, 32
  %v884 = vpop.permute.xlu0 %883
  %v886 = vadd.f32 %v876, %v884
  %v887 = vtanh.pop %v886
  %889 = vrot.lane.b32.xlu0 %v887, 32
  %v890 = vpop.permute.xlu0 %889
  %v892 = vmul.f32 %v870, %v890
  %v893 = vxor.u32 %v851, 2147483648
  %v894 = vmul.f32 %v893, 1.442695
  %v895 = vpow.pop %v894
  %v896 = vadd.f32 %v895, 1.0
  %v897 = vrcp.pop %v896
  %v898 = vmul.f32 %v896, %v897
  %v899 = vsub.f32 1.0, %v898
  %v900 = vmul.f32 %v897, %v899
  %v901 = vadd.f32 %v897, %v900
  %vm902 = vweird.f32 %v896
  %vm903 = vweird.f32 %v897
  %vm904 = vmor %vm902, %vm903
  %v905 = vsel %vm904, %v897, %v901
  %v906 = vand.u32 2147483647, %v896
  %vm907 = vcmp.eq.f32.partialorder %v906, 8.507059e+37
  %v908 = vand.u32 %v896, 2147483648
  %v909 = vor.u32 1.1754944e-38, %v908
  %v910 = vsel %vm907, %v909, %v905
  %v911 = vmul.f32 1.0, %v910
  %v912 = vtanh.pop %v851
  %v913 = vmul.f32 %v911, %v803
  %915 = vrot.lane.b32.xlu0 %v912, 32
  %v916 = vpop.permute.xlu0 %915
  %v918 = vmul.f32 %v911, %v916
  %920 = vrot.lane.b32.xlu0 %v918, 32
  %v921 = vpop.permute.xlu0 %920
  %v923 = vadd.f32 %v913, %v921
  %v924 = vtanh.pop %v923
  %926 = vrot.lane.b32.xlu0 %v924, 32
  %v927 = vpop.permute.xlu0 %926
  %v929 = vmul.f32 %v911, %v927
  %931 = vrot.lane.b32.xlu0 %v892, 64
  %v932 = vpop.permute.xlu0 %931
  %935 = vrot.lane.b32.xlu0 %v929, 96
  %v936 = vpop.permute.xlu0 %935
  %vm938 = vcmask 261120
  %v939 = vsel %vm938, %v932, %v936
  %940 = vst.msk [vmem:[#allocation3] sm:$0xff] %vm938, %v932
  %vm941 = vcmask 523520
  %942 = vst.msk [vmem:[#allocation3 + $0x38] sm:$0xff] %vm941, %v936
  %v944 = vsel %vm804, %v939, 0
  %946 = vmatpush.msra.mxu0 0.0
  %947 = vmatpush.msra.mxu0 0.0
  %948 = vmatpush.msra.mxu0 0.0
  %949 = vmatpush.msra.mxu0 0.0
  %950 = vmatpush.msra.mxu0 0.0
  %951 = vmatpush.msra.mxu0 0.0
  %952 = vmatpush.msra.mxu0 0.0
  %953 = vmatpush.msra.mxu0 0.0
  %954 = vmatpush.msra.mxu0 %v800
  %955 = vmatpush.msra.mxu0 %v798
  %956 = vmatpush.msra.mxu0 %v796
  %957 = vmatpush.msra.mxu0 %v794
  %958 = vmatpush.msra.mxu0 %v792
  %959 = vmatpush.msra.mxu0 %v790
  %960 = vmatpush.msra.mxu0 %v788
  %961 = vmatpush.msra.mxu0 %v786
  %962 = vmatmul.f32.gmra.mxu0 %v944
  %v963 = vpop.f32.mrf.mxu0
  %v964 = vadd.f32 0.0, %v963
  %965 = vdwg.mxu0
  %966 = vmatpush.msra.mxu0 0.0
  %967 = vmatpush.msra.mxu0 0.0
  %968 = vmatpush.msra.mxu0 0.0
  %969 = vmatpush.msra.mxu0 0.0
  %970 = vmatpush.msra.mxu0 0.0
  %971 = vmatpush.msra.mxu0 0.0
  %972 = vmatpush.msra.mxu0 0.0
  %973 = vmatpush.msra.mxu0 0.0
  %974 = vmatpush.msra.mxu0 %v801
  %975 = vmatpush.msra.mxu0 %v799
  %976 = vmatpush.msra.mxu0 %v797
  %977 = vmatpush.msra.mxu0 %v795
  %978 = vmatpush.msra.mxu0 %v793
  %979 = vmatpush.msra.mxu0 %v791
  %980 = vmatpush.msra.mxu0 %v789
  %981 = vmatpush.msra.mxu0 %v787
  %982 = vmatmul.f32.gmra.mxu0 %v944
  %v983 = vpop.f32.mrf.mxu0
  %v984 = vadd.f32 0.0, %v983
  %985 = vdwg.mxu0
  %v986 = vld [vmem:[#allocation2 + $0x10] sm:$0xff]
  %v987 = vadd.f32 %v986, %v964
  %v988 = vld [vmem:[#allocation2 + $0x68] sm:$0xff]
  %v989 = vadd.f32 %v988, %v984
  %v990 = vxor.u32 %v987, 2147483648
  %v991 = vmul.f32 %v990, 1.442695
  %v992 = vpow.pop %v991
  %v993 = vadd.f32 %v992, 1.0
  %v994 = vrcp.pop %v993
  %v995 = vmul.f32 %v993, %v994
  %v996 = vsub.f32 1.0, %v995
  %v997 = vmul.f32 %v994, %v996
  %v998 = vadd.f32 %v994, %v997
  %vm999 = vweird.f32 %v993
  %vm1000 = vweird.f32 %v994
  %vm1001 = vmor %vm999, %vm1000
  %v1002 = vsel %vm1001, %v994, %v998
  %v1003 = vand.u32 2147483647, %v993
  %vm1004 = vcmp.eq.f32.partialorder %v1003, 8.507059e+37
  %v1005 = vand.u32 %v993, 2147483648
  %v1006 = vor.u32 1.1754944e-38, %v1005
  %v1007 = vsel %vm1004, %v1006, %v1002
  %v1008 = vmul.f32 1.0, %v1007
  %v1009 = vtanh.pop %v987
  %v1010 = vmul.f32 %v1008, %v886
  %1012 = vrot.lane.b32.xlu0 %v1009, 32
  %v1013 = vpop.permute.xlu0 %1012
  %v1015 = vmul.f32 %v1008, %v1013
  %1017 = vrot.lane.b32.xlu0 %v1015, 32
  %v1018 = vpop.permute.xlu0 %1017
  %v1020 = vadd.f32 %v1010, %v1018
  %v1021 = vtanh.pop %v1020
  %1023 = vrot.lane.b32.xlu0 %v1021, 32
  %v1024 = vpop.permute.xlu0 %1023
  %v1026 = vmul.f32 %v1008, %v1024
  %v1027 = vxor.u32 %v989, 2147483648
  %v1028 = vmul.f32 %v1027, 1.442695
  %v1029 = vpow.pop %v1028
  %v1030 = vadd.f32 %v1029, 1.0
  %v1031 = vrcp.pop %v1030
  %v1032 = vmul.f32 %v1030, %v1031
  %v1033 = vsub.f32 1.0, %v1032
  %v1034 = vmul.f32 %v1031, %v1033
  %v1035 = vadd.f32 %v1031, %v1034
  %vm1036 = vweird.f32 %v1030
  %vm1037 = vweird.f32 %v1031
  %vm1038 = vmor %vm1036, %vm1037
  %v1039 = vsel %vm1038, %v1031, %v1035
  %v1040 = vand.u32 2147483647, %v1030
  %vm1041 = vcmp.eq.f32.partialorder %v1040, 8.507059e+37
  %v1042 = vand.u32 %v1030, 2147483648
  %v1043 = vor.u32 1.1754944e-38, %v1042
  %v1044 = vsel %vm1041, %v1043, %v1039
  %v1045 = vmul.f32 1.0, %v1044
  %v1046 = vtanh.pop %v989
  %v1047 = vmul.f32 %v1045, %v923
  %1049 = vrot.lane.b32.xlu0 %v1046, 32
  %v1050 = vpop.permute.xlu0 %1049
  %v1052 = vmul.f32 %v1045, %v1050
  %1054 = vrot.lane.b32.xlu0 %v1052, 32
  %v1055 = vpop.permute.xlu0 %1054
  %v1057 = vadd.f32 %v1047, %v1055
  %v1058 = vtanh.pop %v1057
  %1060 = vrot.lane.b32.xlu0 %v1058, 32
  %v1061 = vpop.permute.xlu0 %1060
  %v1063 = vmul.f32 %v1045, %v1061
  %1065 = vrot.lane.b32.xlu0 %v1026, 64
  %v1066 = vpop.permute.xlu0 %1065
  %1069 = vrot.lane.b32.xlu0 %v1063, 96
  %v1070 = vpop.permute.xlu0 %1069
  %v1072 = vsel %vm938, %v1066, %v1070
  %1073 = vst.msk [vmem:[#allocation3 + $0x8] sm:$0xff] %vm938, %v1066
  %1074 = vst.msk [vmem:[#allocation3 + $0x30] sm:$0xff] %vm941, %v1070
  %v1076 = vsel %vm804, %v1072, 0
  %1078 = vmatpush.msra.mxu0 0.0
  %1079 = vmatpush.msra.mxu0 0.0
  %1080 = vmatpush.msra.mxu0 0.0
  %1081 = vmatpush.msra.mxu0 0.0
  %1082 = vmatpush.msra.mxu0 0.0
  %1083 = vmatpush.msra.mxu0 0.0
  %1084 = vmatpush.msra.mxu0 0.0
  %1085 = vmatpush.msra.mxu0 0.0
  %1086 = vmatpush.msra.mxu0 %v800
  %1087 = vmatpush.msra.mxu0 %v798
  %1088 = vmatpush.msra.mxu0 %v796
  %1089 = vmatpush.msra.mxu0 %v794
  %1090 = vmatpush.msra.mxu0 %v792
  %1091 = vmatpush.msra.mxu0 %v790
  %1092 = vmatpush.msra.mxu0 %v788
  %1093 = vmatpush.msra.mxu0 %v786
  %1094 = vmatmul.f32.gmra.mxu0 %v1076
  %v1095 = vpop.f32.mrf.mxu0
  %v1096 = vadd.f32 0.0, %v1095
  %1097 = vdwg.mxu0
  %1098 = vmatpush.msra.mxu0 0.0
  %1099 = vmatpush.msra.mxu0 0.0
  %1100 = vmatpush.msra.mxu0 0.0
  %1101 = vmatpush.msra.mxu0 0.0
  %1102 = vmatpush.msra.mxu0 0.0
  %1103 = vmatpush.msra.mxu0 0.0
  %1104 = vmatpush.msra.mxu0 0.0
  %1105 = vmatpush.msra.mxu0 0.0
  %1106 = vmatpush.msra.mxu0 %v801
  %1107 = vmatpush.msra.mxu0 %v799
  %1108 = vmatpush.msra.mxu0 %v797
  %1109 = vmatpush.msra.mxu0 %v795
  %1110 = vmatpush.msra.mxu0 %v793
  %1111 = vmatpush.msra.mxu0 %v791
  %1112 = vmatpush.msra.mxu0 %v789
  %1113 = vmatpush.msra.mxu0 %v787
  %1114 = vmatmul.f32.gmra.mxu0 %v1076
  %v1115 = vpop.f32.mrf.mxu0
  %v1116 = vadd.f32 0.0, %v1115
  %1117 = vdwg.mxu0
  %v1118 = vld [vmem:[#allocation2 + $0x20] sm:$0xff]
  %v1119 = vadd.f32 %v1118, %v1096
  %v1120 = vld [vmem:[#allocation2 + $0x58] sm:$0xff]
  %v1121 = vadd.f32 %v1120, %v1116
  %v1122 = vxor.u32 %v1119, 2147483648
  %v1123 = vmul.f32 %v1122, 1.442695
  %v1124 = vpow.pop %v1123
  %v1125 = vadd.f32 %v1124, 1.0
  %v1126 = vrcp.pop %v1125
  %v1127 = vmul.f32 %v1125, %v1126
  %v1128 = vsub.f32 1.0, %v1127
  %v1129 = vmul.f32 %v1126, %v1128
  %v1130 = vadd.f32 %v1126, %v1129
  %vm1131 = vweird.f32 %v1125
  %vm1132 = vweird.f32 %v1126
  %vm1133 = vmor %vm1131, %vm1132
  %v1134 = vsel %vm1133, %v1126, %v1130
  %v1135 = vand.u32 2147483647, %v1125
  %vm1136 = vcmp.eq.f32.partialorder %v1135, 8.507059e+37
  %v1137 = vand.u32 %v1125, 2147483648
  %v1138 = vor.u32 1.1754944e-38, %v1137
  %v1139 = vsel %vm1136, %v1138, %v1134
  %v1140 = vmul.f32 1.0, %v1139
  %v1141 = vtanh.pop %v1119
  %v1142 = vmul.f32 %v1140, %v1020
  %1144 = vrot.lane.b32.xlu0 %v1141, 32
  %v1145 = vpop.permute.xlu0 %1144
  %v1147 = vmul.f32 %v1140, %v1145
  %1149 = vrot.lane.b32.xlu0 %v1147, 32
  %v1150 = vpop.permute.xlu0 %1149
  %v1152 = vadd.f32 %v1142, %v1150
  %v1153 = vtanh.pop %v1152
  %1155 = vrot.lane.b32.xlu0 %v1153, 32
  %v1156 = vpop.permute.xlu0 %1155
  %v1158 = vmul.f32 %v1140, %v1156
  %v1159 = vxor.u32 %v1121, 2147483648
  %v1160 = vmul.f32 %v1159, 1.442695
  %v1161 = vpow.pop %v1160
  %v1162 = vadd.f32 %v1161, 1.0
  %v1163 = vrcp.pop %v1162
  %v1164 = vmul.f32 %v1162, %v1163
  %v1165 = vsub.f32 1.0, %v1164
  %v1166 = vmul.f32 %v1163, %v1165
  %v1167 = vadd.f32 %v1163, %v1166
  %vm1168 = vweird.f32 %v1162
  %vm1169 = vweird.f32 %v1163
  %vm1170 = vmor %vm1168, %vm1169
  %v1171 = vsel %vm1170, %v1163, %v1167
  %v1172 = vand.u32 2147483647, %v1162
  %vm1173 = vcmp.eq.f32.partialorder %v1172, 8.507059e+37
  %v1174 = vand.u32 %v1162, 2147483648
  %v1175 = vor.u32 1.1754944e-38, %v1174
  %v1176 = vsel %vm1173, %v1175, %v1171
  %v1177 = vmul.f32 1.0, %v1176
  %v1178 = vtanh.pop %v1121
  %v1179 = vmul.f32 %v1177, %v1057
  %1181 = vrot.lane.b32.xlu0 %v1178, 32
  %v1182 = vpop.permute.xlu0 %1181
  %v1184 = vmul.f32 %v1177, %v1182
  %1186 = vrot.lane.b32.xlu0 %v1184, 32
  %v1187 = vpop.permute.xlu0 %1186
  %v1189 = vadd.f32 %v1179, %v1187
  %v1190 = vtanh.pop %v1189
  %1192 = vrot.lane.b32.xlu0 %v1190, 32
  %v1193 = vpop.permute.xlu0 %1192
  %v1195 = vmul.f32 %v1177, %v1193
  %1197 = vrot.lane.b32.xlu0 %v1158, 64
  %v1198 = vpop.permute.xlu0 %1197
  %1201 = vrot.lane.b32.xlu0 %v1195, 96
  %v1202 = vpop.permute.xlu0 %1201
  %v1204 = vsel %vm938, %v1198, %v1202
  %1205 = vst.msk [vmem:[#allocation3 + $0x10] sm:$0xff] %vm938, %v1198
  %1206 = vst.msk [vmem:[#allocation3 + $0x28] sm:$0xff] %vm941, %v1202
  %v1208 = vsel %vm804, %v1204, 0
  %1210 = vmatpush.msra.mxu0 0.0
  %1211 = vmatpush.msra.mxu0 0.0
  %1212 = vmatpush.msra.mxu0 0.0
  %1213 = vmatpush.msra.mxu0 0.0
  %1214 = vmatpush.msra.mxu0 0.0
  %1215 = vmatpush.msra.mxu0 0.0
  %1216 = vmatpush.msra.mxu0 0.0
  %1217 = vmatpush.msra.mxu0 0.0
  %1218 = vmatpush.msra.mxu0 %v800
  %1219 = vmatpush.msra.mxu0 %v798
  %1220 = vmatpush.msra.mxu0 %v796
  %1221 = vmatpush.msra.mxu0 %v794
  %1222 = vmatpush.msra.mxu0 %v792
  %1223 = vmatpush.msra.mxu0 %v790
  %1224 = vmatpush.msra.mxu0 %v788
  %1225 = vmatpush.msra.mxu0 %v786
  %1226 = vmatmul.f32.gmra.mxu0 %v1208
  %v1227 = vpop.f32.mrf.mxu0
  %v1228 = vadd.f32 0.0, %v1227
  %1229 = vdwg.mxu0
  %1230 = vmatpush.msra.mxu0 0.0
  %1231 = vmatpush.msra.mxu0 0.0
  %1232 = vmatpush.msra.mxu0 0.0
  %1233 = vmatpush.msra.mxu0 0.0
  %1234 = vmatpush.msra.mxu0 0.0
  %1235 = vmatpush.msra.mxu0 0.0
  %1236 = vmatpush.msra.mxu0 0.0
  %1237 = vmatpush.msra.mxu0 0.0
  %1238 = vmatpush.msra.mxu0 %v801
  %1239 = vmatpush.msra.mxu0 %v799
  %1240 = vmatpush.msra.mxu0 %v797
  %1241 = vmatpush.msra.mxu0 %v795
  %1242 = vmatpush.msra.mxu0 %v793
  %1243 = vmatpush.msra.mxu0 %v791
  %1244 = vmatpush.msra.mxu0 %v789
  %1245 = vmatpush.msra.mxu0 %v787
  %1246 = vmatmul.f32.gmra.mxu0 %v1208
  %v1247 = vpop.f32.mrf.mxu0
  %v1248 = vadd.f32 0.0, %v1247
  %1249 = vdwg.mxu0
  %v1250 = vld [vmem:[#allocation2 + $0x30] sm:$0xff]
  %v1251 = vadd.f32 %v1250, %v1228
  %v1252 = vld [vmem:[#allocation2 + $0x48] sm:$0xff]
  %v1253 = vadd.f32 %v1252, %v1248
  %v1254 = vxor.u32 %v1251, 2147483648
  %v1255 = vmul.f32 %v1254, 1.442695
  %v1256 = vpow.pop %v1255
  %v1257 = vadd.f32 %v1256, 1.0
  %v1258 = vrcp.pop %v1257
  %v1259 = vmul.f32 %v1257, %v1258
  %v1260 = vsub.f32 1.0, %v1259
  %v1261 = vmul.f32 %v1258, %v1260
  %v1262 = vadd.f32 %v1258, %v1261
  %vm1263 = vweird.f32 %v1257
  %vm1264 = vweird.f32 %v1258
  %vm1265 = vmor %vm1263, %vm1264
  %v1266 = vsel %vm1265, %v1258, %v1262
  %v1267 = vand.u32 2147483647, %v1257
  %vm1268 = vcmp.eq.f32.partialorder %v1267, 8.507059e+37
  %v1269 = vand.u32 %v1257, 2147483648
  %v1270 = vor.u32 1.1754944e-38, %v1269
  %v1271 = vsel %vm1268, %v1270, %v1266
  %v1272 = vmul.f32 1.0, %v1271
  %v1273 = vtanh.pop %v1251
  %v1274 = vmul.f32 %v1272, %v1152
  %1276 = vrot.lane.b32.xlu0 %v1273, 32
  %v1277 = vpop.permute.xlu0 %1276
  %v1279 = vmul.f32 %v1272, %v1277
  %1281 = vrot.lane.b32.xlu0 %v1279, 32
  %v1282 = vpop.permute.xlu0 %1281
  %v1284 = vadd.f32 %v1274, %v1282
  %v1285 = vtanh.pop %v1284
  %1287 = vrot.lane.b32.xlu0 %v1285, 32
  %v1288 = vpop.permute.xlu0 %1287
  %v1290 = vmul.f32 %v1272, %v1288
  %v1291 = vxor.u32 %v1253, 2147483648
  %v1292 = vmul.f32 %v1291, 1.442695
  %v1293 = vpow.pop %v1292
  %v1294 = vadd.f32 %v1293, 1.0
  %v1295 = vrcp.pop %v1294
  %v1296 = vmul.f32 %v1294, %v1295
  %v1297 = vsub.f32 1.0, %v1296
  %v1298 = vmul.f32 %v1295, %v1297
  %v1299 = vadd.f32 %v1295, %v1298
  %vm1300 = vweird.f32 %v1294
  %vm1301 = vweird.f32 %v1295
  %vm1302 = vmor %vm1300, %vm1301
  %v1303 = vsel %vm1302, %v1295, %v1299
  %v1304 = vand.u32 2147483647, %v1294
  %vm1305 = vcmp.eq.f32.partialorder %v1304, 8.507059e+37
  %v1306 = vand.u32 %v1294, 2147483648
  %v1307 = vor.u32 1.1754944e-38, %v1306
  %v1308 = vsel %vm1305, %v1307, %v1303
  %v1309 = vmul.f32 1.0, %v1308
  %v1310 = vtanh.pop %v1253
  %v1311 = vmul.f32 %v1309, %v1189
  %1313 = vrot.lane.b32.xlu0 %v1310, 32
  %v1314 = vpop.permute.xlu0 %1313
  %v1316 = vmul.f32 %v1309, %v1314
  %1318 = vrot.lane.b32.xlu0 %v1316, 32
  %v1319 = vpop.permute.xlu0 %1318
  %v1321 = vadd.f32 %v1311, %v1319
  %v1322 = vtanh.pop %v1321
  %1324 = vrot.lane.b32.xlu0 %v1322, 32
  %v1325 = vpop.permute.xlu0 %1324
  %v1327 = vmul.f32 %v1309, %v1325
  %1329 = vrot.lane.b32.xlu0 %v1290, 64
  %v1330 = vpop.permute.xlu0 %1329
  %1333 = vrot.lane.b32.xlu0 %v1327, 96
  %v1334 = vpop.permute.xlu0 %1333
  %v1336 = vsel %vm938, %v1330, %v1334
  %1337 = vst.msk [vmem:[#allocation3 + $0x18] sm:$0xff] %vm938, %v1330
  %1338 = vst.msk [vmem:[#allocation3 + $0x20] sm:$0xff] %vm941, %v1334
  %v1340 = vsel %vm804, %v1336, 0
  %1342 = vmatpush.msra.mxu0 0.0
  %1343 = vmatpush.msra.mxu0 0.0
  %1344 = vmatpush.msra.mxu0 0.0
  %1345 = vmatpush.msra.mxu0 0.0
  %1346 = vmatpush.msra.mxu0 0.0
  %1347 = vmatpush.msra.mxu0 0.0
  %1348 = vmatpush.msra.mxu0 0.0
  %1349 = vmatpush.msra.mxu0 0.0
  %1350 = vmatpush.msra.mxu0 %v800
  %1351 = vmatpush.msra.mxu0 %v798
  %1352 = vmatpush.msra.mxu0 %v796
  %1353 = vmatpush.msra.mxu0 %v794
  %1354 = vmatpush.msra.mxu0 %v792
  %1355 = vmatpush.msra.mxu0 %v790
  %1356 = vmatpush.msra.mxu0 %v788
  %1357 = vmatpush.msra.mxu0 %v786
  %1358 = vmatmul.f32.gmra.mxu0 %v1340
  %v1359 = vpop.f32.mrf.mxu0
  %v1360 = vadd.f32 0.0, %v1359
  %1361 = vdwg.mxu0
  %1362 = vmatpush.msra.mxu0 0.0
  %1363 = vmatpush.msra.mxu0 0.0
  %1364 = vmatpush.msra.mxu0 0.0
  %1365 = vmatpush.msra.mxu0 0.0
  %1366 = vmatpush.msra.mxu0 0.0
  %1367 = vmatpush.msra.mxu0 0.0
  %1368 = vmatpush.msra.mxu0 0.0
  %1369 = vmatpush.msra.mxu0 0.0
  %1370 = vmatpush.msra.mxu0 %v801
  %1371 = vmatpush.msra.mxu0 %v799
  %1372 = vmatpush.msra.mxu0 %v797
  %1373 = vmatpush.msra.mxu0 %v795
  %1374 = vmatpush.msra.mxu0 %v793
  %1375 = vmatpush.msra.mxu0 %v791
  %1376 = vmatpush.msra.mxu0 %v789
  %1377 = vmatpush.msra.mxu0 %v787
  %1378 = vmatmul.f32.gmra.mxu0 %v1340
  %v1379 = vpop.f32.mrf.mxu0
  %v1380 = vadd.f32 0.0, %v1379
  %1381 = vdwg.mxu0
  %v1382 = vld [vmem:[#allocation2 + $0x40] sm:$0xff]
  %v1383 = vadd.f32 %v1382, %v1360
  %v1384 = vld [vmem:[#allocation2 + $0x38] sm:$0xff]
  %v1385 = vadd.f32 %v1384, %v1380
  %v1386 = vxor.u32 %v1383, 2147483648
  %v1387 = vmul.f32 %v1386, 1.442695
  %v1388 = vpow.pop %v1387
  %v1389 = vadd.f32 %v1388, 1.0
  %v1390 = vrcp.pop %v1389
  %v1391 = vmul.f32 %v1389, %v1390
  %v1392 = vsub.f32 1.0, %v1391
  %v1393 = vmul.f32 %v1390, %v1392
  %v1394 = vadd.f32 %v1390, %v1393
  %vm1395 = vweird.f32 %v1389
  %vm1396 = vweird.f32 %v1390
  %vm1397 = vmor %vm1395, %vm1396
  %v1398 = vsel %vm1397, %v1390, %v1394
  %v1399 = vand.u32 2147483647, %v1389
  %vm1400 = vcmp.eq.f32.partialorder %v1399, 8.507059e+37
  %v1401 = vand.u32 %v1389, 2147483648
  %v1402 = vor.u32 1.1754944e-38, %v1401
  %v1403 = vsel %vm1400, %v1402, %v1398
  %v1404 = vmul.f32 1.0, %v1403
  %v1405 = vtanh.pop %v1383
  %v1406 = vmul.f32 %v1404, %v1284
  %1408 = vrot.lane.b32.xlu0 %v1405, 32
  %v1409 = vpop.permute.xlu0 %1408
  %v1411 = vmul.f32 %v1404, %v1409
  %1413 = vrot.lane.b32.xlu0 %v1411, 32
  %v1414 = vpop.permute.xlu0 %1413
  %v1416 = vadd.f32 %v1406, %v1414
  %v1417 = vtanh.pop %v1416
  %1419 = vrot.lane.b32.xlu0 %v1417, 32
  %v1420 = vpop.permute.xlu0 %1419
  %v1422 = vmul.f32 %v1404, %v1420
  %v1423 = vxor.u32 %v1385, 2147483648
  %v1424 = vmul.f32 %v1423, 1.442695
  %v1425 = vpow.pop %v1424
  %v1426 = vadd.f32 %v1425, 1.0
  %v1427 = vrcp.pop %v1426
  %v1428 = vmul.f32 %v1426, %v1427
  %v1429 = vsub.f32 1.0, %v1428
  %v1430 = vmul.f32 %v1427, %v1429
  %v1431 = vadd.f32 %v1427, %v1430
  %vm1432 = vweird.f32 %v1426
  %vm1433 = vweird.f32 %v1427
  %vm1434 = vmor %vm1432, %vm1433
  %v1435 = vsel %vm1434, %v1427, %v1431
  %v1436 = vand.u32 2147483647, %v1426
  %vm1437 = vcmp.eq.f32.partialorder %v1436, 8.507059e+37
  %v1438 = vand.u32 %v1426, 2147483648
  %v1439 = vor.u32 1.1754944e-38, %v1438
  %v1440 = vsel %vm1437, %v1439, %v1435
  %v1441 = vmul.f32 1.0, %v1440
  %v1442 = vtanh.pop %v1385
  %v1443 = vmul.f32 %v1441, %v1321
  %1445 = vrot.lane.b32.xlu0 %v1442, 32
  %v1446 = vpop.permute.xlu0 %1445
  %v1448 = vmul.f32 %v1441, %v1446
  %1450 = vrot.lane.b32.xlu0 %v1448, 32
  %v1451 = vpop.permute.xlu0 %1450
  %v1453 = vadd.f32 %v1443, %v1451
  %v1454 = vtanh.pop %v1453
  %1456 = vrot.lane.b32.xlu0 %v1454, 32
  %v1457 = vpop.permute.xlu0 %1456
  %v1459 = vmul.f32 %v1441, %v1457
  %1461 = vrot.lane.b32.xlu0 %v1422, 64
  %v1462 = vpop.permute.xlu0 %1461
  %1465 = vrot.lane.b32.xlu0 %v1459, 96
  %v1466 = vpop.permute.xlu0 %1465
  %v1468 = vsel %vm938, %v1462, %v1466
  %1469 = vst.msk [vmem:[#allocation3 + $0x20] sm:$0xff] %vm938, %v1462
  %1470 = vst.msk [vmem:[#allocation3 + $0x18] sm:$0xff] %vm941, %v1466
  %v1472 = vsel %vm804, %v1468, 0
  %1474 = vmatpush.msra.mxu0 0.0
  %1475 = vmatpush.msra.mxu0 0.0
  %1476 = vmatpush.msra.mxu0 0.0
  %1477 = vmatpush.msra.mxu0 0.0
  %1478 = vmatpush.msra.mxu0 0.0
  %1479 = vmatpush.msra.mxu0 0.0
  %1480 = vmatpush.msra.mxu0 0.0
  %1481 = vmatpush.msra.mxu0 0.0
  %1482 = vmatpush.msra.mxu0 %v800
  %1483 = vmatpush.msra.mxu0 %v798
  %1484 = vmatpush.msra.mxu0 %v796
  %1485 = vmatpush.msra.mxu0 %v794
  %1486 = vmatpush.msra.mxu0 %v792
  %1487 = vmatpush.msra.mxu0 %v790
  %1488 = vmatpush.msra.mxu0 %v788
  %1489 = vmatpush.msra.mxu0 %v786
  %1490 = vmatmul.f32.gmra.mxu0 %v1472
  %v1491 = vpop.f32.mrf.mxu0
  %v1492 = vadd.f32 0.0, %v1491
  %1493 = vdwg.mxu0
  %1494 = vmatpush.msra.mxu0 0.0
  %1495 = vmatpush.msra.mxu0 0.0
  %1496 = vmatpush.msra.mxu0 0.0
  %1497 = vmatpush.msra.mxu0 0.0
  %1498 = vmatpush.msra.mxu0 0.0
  %1499 = vmatpush.msra.mxu0 0.0
  %1500 = vmatpush.msra.mxu0 0.0
  %1501 = vmatpush.msra.mxu0 0.0
  %1502 = vmatpush.msra.mxu0 %v801
  %1503 = vmatpush.msra.mxu0 %v799
  %1504 = vmatpush.msra.mxu0 %v797
  %1505 = vmatpush.msra.mxu0 %v795
  %1506 = vmatpush.msra.mxu0 %v793
  %1507 = vmatpush.msra.mxu0 %v791
  %1508 = vmatpush.msra.mxu0 %v789
  %1509 = vmatpush.msra.mxu0 %v787
  %1510 = vmatmul.f32.gmra.mxu0 %v1472
  %v1511 = vpop.f32.mrf.mxu0
  %v1512 = vadd.f32 0.0, %v1511
  %1513 = vdwg.mxu0
  %v1514 = vld [vmem:[#allocation2 + $0x50] sm:$0xff]
  %v1515 = vadd.f32 %v1514, %v1492
  %v1516 = vld [vmem:[#allocation2 + $0x28] sm:$0xff]
  %v1517 = vadd.f32 %v1516, %v1512
  %v1518 = vxor.u32 %v1515, 2147483648
  %v1519 = vmul.f32 %v1518, 1.442695
  %v1520 = vpow.pop %v1519
  %v1521 = vadd.f32 %v1520, 1.0
  %v1522 = vrcp.pop %v1521
  %v1523 = vmul.f32 %v1521, %v1522
  %v1524 = vsub.f32 1.0, %v1523
  %v1525 = vmul.f32 %v1522, %v1524
  %v1526 = vadd.f32 %v1522, %v1525
  %vm1527 = vweird.f32 %v1521
  %vm1528 = vweird.f32 %v1522
  %vm1529 = vmor %vm1527, %vm1528
  %v1530 = vsel %vm1529, %v1522, %v1526
  %v1531 = vand.u32 2147483647, %v1521
  %vm1532 = vcmp.eq.f32.partialorder %v1531, 8.507059e+37
  %v1533 = vand.u32 %v1521, 2147483648
  %v1534 = vor.u32 1.1754944e-38, %v1533
  %v1535 = vsel %vm1532, %v1534, %v1530
  %v1536 = vmul.f32 1.0, %v1535
  %v1537 = vtanh.pop %v1515
  %v1538 = vmul.f32 %v1536, %v1416
  %1540 = vrot.lane.b32.xlu0 %v1537, 32
  %v1541 = vpop.permute.xlu0 %1540
  %v1543 = vmul.f32 %v1536, %v1541
  %1545 = vrot.lane.b32.xlu0 %v1543, 32
  %v1546 = vpop.permute.xlu0 %1545
  %v1548 = vadd.f32 %v1538, %v1546
  %v1549 = vtanh.pop %v1548
  %1551 = vrot.lane.b32.xlu0 %v1549, 32
  %v1552 = vpop.permute.xlu0 %1551
  %v1554 = vmul.f32 %v1536, %v1552
  %v1555 = vxor.u32 %v1517, 2147483648
  %v1556 = vmul.f32 %v1555, 1.442695
  %v1557 = vpow.pop %v1556
  %v1558 = vadd.f32 %v1557, 1.0
  %v1559 = vrcp.pop %v1558
  %v1560 = vmul.f32 %v1558, %v1559
  %v1561 = vsub.f32 1.0, %v1560
  %v1562 = vmul.f32 %v1559, %v1561
  %v1563 = vadd.f32 %v1559, %v1562
  %vm1564 = vweird.f32 %v1558
  %vm1565 = vweird.f32 %v1559
  %vm1566 = vmor %vm1564, %vm1565
  %v1567 = vsel %vm1566, %v1559, %v1563
  %v1568 = vand.u32 2147483647, %v1558
  %vm1569 = vcmp.eq.f32.partialorder %v1568, 8.507059e+37
  %v1570 = vand.u32 %v1558, 2147483648
  %v1571 = vor.u32 1.1754944e-38, %v1570
  %v1572 = vsel %vm1569, %v1571, %v1567
  %v1573 = vmul.f32 1.0, %v1572
  %v1574 = vtanh.pop %v1517
  %v1575 = vmul.f32 %v1573, %v1453
  %1577 = vrot.lane.b32.xlu0 %v1574, 32
  %v1578 = vpop.permute.xlu0 %1577
  %v1580 = vmul.f32 %v1573, %v1578
  %1582 = vrot.lane.b32.xlu0 %v1580, 32
  %v1583 = vpop.permute.xlu0 %1582
  %v1585 = vadd.f32 %v1575, %v1583
  %v1586 = vtanh.pop %v1585
  %1588 = vrot.lane.b32.xlu0 %v1586, 32
  %v1589 = vpop.permute.xlu0 %1588
  %v1591 = vmul.f32 %v1573, %v1589
  %1593 = vrot.lane.b32.xlu0 %v1554, 64
  %v1594 = vpop.permute.xlu0 %1593
  %1597 = vrot.lane.b32.xlu0 %v1591, 96
  %v1598 = vpop.permute.xlu0 %1597
  %v1600 = vsel %vm938, %v1594, %v1598
  %1601 = vst.msk [vmem:[#allocation3 + $0x28] sm:$0xff] %vm938, %v1594
  %1602 = vst.msk [vmem:[#allocation3 + $0x10] sm:$0xff] %vm941, %v1598
  %v1604 = vsel %vm804, %v1600, 0
  %1606 = vmatpush.msra.mxu0 0.0
  %1607 = vmatpush.msra.mxu0 0.0
  %1608 = vmatpush.msra.mxu0 0.0
  %1609 = vmatpush.msra.mxu0 0.0
  %1610 = vmatpush.msra.mxu0 0.0
  %1611 = vmatpush.msra.mxu0 0.0
  %1612 = vmatpush.msra.mxu0 0.0
  %1613 = vmatpush.msra.mxu0 0.0
  %1614 = vmatpush.msra.mxu0 %v800
  %1615 = vmatpush.msra.mxu0 %v798
  %1616 = vmatpush.msra.mxu0 %v796
  %1617 = vmatpush.msra.mxu0 %v794
  %1618 = vmatpush.msra.mxu0 %v792
  %1619 = vmatpush.msra.mxu0 %v790
  %1620 = vmatpush.msra.mxu0 %v788
  %1621 = vmatpush.msra.mxu0 %v786
  %1622 = vmatmul.f32.gmra.mxu0 %v1604
  %v1623 = vpop.f32.mrf.mxu0
  %v1624 = vadd.f32 0.0, %v1623
  %1625 = vdwg.mxu0
  %1626 = vmatpush.msra.mxu0 0.0
  %1627 = vmatpush.msra.mxu0 0.0
  %1628 = vmatpush.msra.mxu0 0.0
  %1629 = vmatpush.msra.mxu0 0.0
  %1630 = vmatpush.msra.mxu0 0.0
  %1631 = vmatpush.msra.mxu0 0.0
  %1632 = vmatpush.msra.mxu0 0.0
  %1633 = vmatpush.msra.mxu0 0.0
  %1634 = vmatpush.msra.mxu0 %v801
  %1635 = vmatpush.msra.mxu0 %v799
  %1636 = vmatpush.msra.mxu0 %v797
  %1637 = vmatpush.msra.mxu0 %v795
  %1638 = vmatpush.msra.mxu0 %v793
  %1639 = vmatpush.msra.mxu0 %v791
  %1640 = vmatpush.msra.mxu0 %v789
  %1641 = vmatpush.msra.mxu0 %v787
  %1642 = vmatmul.f32.gmra.mxu0 %v1604
  %v1643 = vpop.f32.mrf.mxu0
  %v1644 = vadd.f32 0.0, %v1643
  %1645 = vdwg.mxu0
  %v1646 = vld [vmem:[#allocation2 + $0x60] sm:$0xff]
  %v1647 = vadd.f32 %v1646, %v1624
  %v1648 = vld [vmem:[#allocation2 + $0x18] sm:$0xff]
  %v1649 = vadd.f32 %v1648, %v1644
  %v1650 = vxor.u32 %v1647, 2147483648
  %v1651 = vmul.f32 %v1650, 1.442695
  %v1652 = vpow.pop %v1651
  %v1653 = vadd.f32 %v1652, 1.0
  %v1654 = vrcp.pop %v1653
  %v1655 = vmul.f32 %v1653, %v1654
  %v1656 = vsub.f32 1.0, %v1655
  %v1657 = vmul.f32 %v1654, %v1656
  %v1658 = vadd.f32 %v1654, %v1657
  %vm1659 = vweird.f32 %v1653
  %vm1660 = vweird.f32 %v1654
  %vm1661 = vmor %vm1659, %vm1660
  %v1662 = vsel %vm1661, %v1654, %v1658
  %v1663 = vand.u32 2147483647, %v1653
  %vm1664 = vcmp.eq.f32.partialorder %v1663, 8.507059e+37
  %v1665 = vand.u32 %v1653, 2147483648
  %v1666 = vor.u32 1.1754944e-38, %v1665
  %v1667 = vsel %vm1664, %v1666, %v1662
  %v1668 = vmul.f32 1.0, %v1667
  %v1669 = vtanh.pop %v1647
  %v1670 = vmul.f32 %v1668, %v1548
  %1672 = vrot.lane.b32.xlu0 %v1669, 32
  %v1673 = vpop.permute.xlu0 %1672
  %v1675 = vmul.f32 %v1668, %v1673
  %1677 = vrot.lane.b32.xlu0 %v1675, 32
  %v1678 = vpop.permute.xlu0 %1677
  %v1680 = vadd.f32 %v1670, %v1678
  %v1681 = vtanh.pop %v1680
  %1683 = vrot.lane.b32.xlu0 %v1681, 32
  %v1684 = vpop.permute.xlu0 %1683
  %v1686 = vmul.f32 %v1668, %v1684
  %v1687 = vxor.u32 %v1649, 2147483648
  %v1688 = vmul.f32 %v1687, 1.442695
  %v1689 = vpow.pop %v1688
  %v1690 = vadd.f32 %v1689, 1.0
  %v1691 = vrcp.pop %v1690
  %v1692 = vmul.f32 %v1690, %v1691
  %v1693 = vsub.f32 1.0, %v1692
  %v1694 = vmul.f32 %v1691, %v1693
  %v1695 = vadd.f32 %v1691, %v1694
  %vm1696 = vweird.f32 %v1690
  %vm1697 = vweird.f32 %v1691
  %vm1698 = vmor %vm1696, %vm1697
  %v1699 = vsel %vm1698, %v1691, %v1695
  %v1700 = vand.u32 2147483647, %v1690
  %vm1701 = vcmp.eq.f32.partialorder %v1700, 8.507059e+37
  %v1702 = vand.u32 %v1690, 2147483648
  %v1703 = vor.u32 1.1754944e-38, %v1702
  %v1704 = vsel %vm1701, %v1703, %v1699
  %v1705 = vmul.f32 1.0, %v1704
  %v1706 = vtanh.pop %v1649
  %v1707 = vmul.f32 %v1705, %v1585
  %1709 = vrot.lane.b32.xlu0 %v1706, 32
  %v1710 = vpop.permute.xlu0 %1709
  %v1712 = vmul.f32 %v1705, %v1710
  %1714 = vrot.lane.b32.xlu0 %v1712, 32
  %v1715 = vpop.permute.xlu0 %1714
  %v1717 = vadd.f32 %v1707, %v1715
  %v1718 = vtanh.pop %v1717
  %1720 = vrot.lane.b32.xlu0 %v1718, 32
  %v1721 = vpop.permute.xlu0 %1720
  %v1723 = vmul.f32 %v1705, %v1721
  %1725 = vrot.lane.b32.xlu0 %v1686, 64
  %v1726 = vpop.permute.xlu0 %1725
  %1729 = vrot.lane.b32.xlu0 %v1723, 96
  %v1730 = vpop.permute.xlu0 %1729
  %v1732 = vsel %vm938, %v1726, %v1730
  %1733 = vst.msk [vmem:[#allocation3 + $0x30] sm:$0xff] %vm938, %v1726
  %1734 = vst.msk [vmem:[#allocation3 + $0x8] sm:$0xff] %vm941, %v1730
  %v1736 = vsel %vm804, %v1732, 0
  %1738 = vmatpush.msra.mxu0 0.0
  %1739 = vmatpush.msra.mxu0 0.0
  %1740 = vmatpush.msra.mxu0 0.0
  %1741 = vmatpush.msra.mxu0 0.0
  %1742 = vmatpush.msra.mxu0 0.0
  %1743 = vmatpush.msra.mxu0 0.0
  %1744 = vmatpush.msra.mxu0 0.0
  %1745 = vmatpush.msra.mxu0 0.0
  %1746 = vmatpush.msra.mxu0 %v800
  %1747 = vmatpush.msra.mxu0 %v798
  %1748 = vmatpush.msra.mxu0 %v796
  %1749 = vmatpush.msra.mxu0 %v794
  %1750 = vmatpush.msra.mxu0 %v792
  %1751 = vmatpush.msra.mxu0 %v790
  %1752 = vmatpush.msra.mxu0 %v788
  %1753 = vmatpush.msra.mxu0 %v786
  %1754 = vmatmul.f32.gmra.mxu0 %v1736
  %v1755 = vpop.f32.mrf.mxu0
  %v1756 = vadd.f32 0.0, %v1755
  %1757 = vdwg.mxu0
  %1758 = vmatpush.msra.mxu0 0.0
  %1759 = vmatpush.msra.mxu0 0.0
  %1760 = vmatpush.msra.mxu0 0.0
  %1761 = vmatpush.msra.mxu0 0.0
  %1762 = vmatpush.msra.mxu0 0.0
  %1763 = vmatpush.msra.mxu0 0.0
  %1764 = vmatpush.msra.mxu0 0.0
  %1765 = vmatpush.msra.mxu0 0.0
  %1766 = vmatpush.msra.mxu0 %v801
  %1767 = vmatpush.msra.mxu0 %v799
  %1768 = vmatpush.msra.mxu0 %v797
  %1769 = vmatpush.msra.mxu0 %v795
  %1770 = vmatpush.msra.mxu0 %v793
  %1771 = vmatpush.msra.mxu0 %v791
  %1772 = vmatpush.msra.mxu0 %v789
  %1773 = vmatpush.msra.mxu0 %v787
  %1774 = vmatmul.f32.gmra.mxu0 %v1736
  %v1775 = vpop.f32.mrf.mxu0
  %v1776 = vadd.f32 0.0, %v1775
  %1777 = vdwg.mxu0
  %v1778 = vld [vmem:[#allocation2 + $0x70] sm:$0xff]
  %v1779 = vadd.f32 %v1778, %v1756
  %v1780 = vld [vmem:[#allocation2 + $0x8] sm:$0xff]
  %v1781 = vadd.f32 %v1780, %v1776
  %v1782 = vxor.u32 %v1779, 2147483648
  %v1783 = vmul.f32 %v1782, 1.442695
  %v1784 = vpow.pop %v1783
  %v1785 = vadd.f32 %v1784, 1.0
  %v1786 = vrcp.pop %v1785
  %v1787 = vmul.f32 %v1785, %v1786
  %v1788 = vsub.f32 1.0, %v1787
  %v1789 = vmul.f32 %v1786, %v1788
  %v1790 = vadd.f32 %v1786, %v1789
  %vm1791 = vweird.f32 %v1785
  %vm1792 = vweird.f32 %v1786
  %vm1793 = vmor %vm1791, %vm1792
  %v1794 = vsel %vm1793, %v1786, %v1790
  %v1795 = vand.u32 2147483647, %v1785
  %vm1796 = vcmp.eq.f32.partialorder %v1795, 8.507059e+37
  %v1797 = vand.u32 %v1785, 2147483648
  %v1798 = vor.u32 1.1754944e-38, %v1797
  %v1799 = vsel %vm1796, %v1798, %v1794
  %v1800 = vmul.f32 1.0, %v1799
  %v1801 = vtanh.pop %v1779
  %v1802 = vmul.f32 %v1800, %v1680
  %1804 = vrot.lane.b32.xlu0 %v1801, 32
  %v1805 = vpop.permute.xlu0 %1804
  %v1807 = vmul.f32 %v1800, %v1805
  %1809 = vrot.lane.b32.xlu0 %v1807, 32
  %v1810 = vpop.permute.xlu0 %1809
  %v1812 = vadd.f32 %v1802, %v1810
  %v1813 = vtanh.pop %v1812
  %1815 = vrot.lane.b32.xlu0 %v1813, 32
  %v1816 = vpop.permute.xlu0 %1815
  %v1818 = vmul.f32 %v1800, %v1816
  %v1819 = vxor.u32 %v1781, 2147483648
  %v1820 = vmul.f32 %v1819, 1.442695
  %v1821 = vpow.pop %v1820
  %v1822 = vadd.f32 %v1821, 1.0
  %v1823 = vrcp.pop %v1822
  %v1824 = vmul.f32 %v1822, %v1823
  %v1825 = vsub.f32 1.0, %v1824
  %v1826 = vmul.f32 %v1823, %v1825
  %v1827 = vadd.f32 %v1823, %v1826
  %vm1828 = vweird.f32 %v1822
  %vm1829 = vweird.f32 %v1823
  %vm1830 = vmor %vm1828, %vm1829
  %v1831 = vsel %vm1830, %v1823, %v1827
  %v1832 = vand.u32 2147483647, %v1822
  %vm1833 = vcmp.eq.f32.partialorder %v1832, 8.507059e+37
  %v1834 = vand.u32 %v1822, 2147483648
  %v1835 = vor.u32 1.1754944e-38, %v1834
  %v1836 = vsel %vm1833, %v1835, %v1831
  %v1837 = vmul.f32 1.0, %v1836
  %v1838 = vtanh.pop %v1781
  %v1839 = vmul.f32 %v1837, %v1717
  %1841 = vrot.lane.b32.xlu0 %v1838, 32
  %v1842 = vpop.permute.xlu0 %1841
  %v1844 = vmul.f32 %v1837, %v1842
  %1846 = vrot.lane.b32.xlu0 %v1844, 32
  %v1847 = vpop.permute.xlu0 %1846
  %v1849 = vadd.f32 %v1839, %v1847
  %v1850 = vtanh.pop %v1849
  %1852 = vrot.lane.b32.xlu0 %v1850, 32
  %v1853 = vpop.permute.xlu0 %1852
  %v1855 = vmul.f32 %v1837, %v1853
  %1857 = vrot.lane.b32.xlu0 %v1818, 64
  %v1858 = vpop.permute.xlu0 %1857
  %1860 = vst.msk [vmem:[#allocation3 + $0x38] sm:$0xff] %vm938, %v1858
  %1862 = vrot.lane.b32.xlu0 %v1855, 96
  %v1863 = vpop.permute.xlu0 %1862
  %1865 = vst.msk [vmem:[#allocation3] sm:$0xff] %vm941, %v1863
  %v1866 = vld [vmem:[#allocation3] sm:$0xff]
  %v1867 = vld [vmem:[#allocation3 + $0x8] sm:$0xff]
  %v1868 = vld [vmem:[#allocation3 + $0x10] sm:$0xff]
  %v1869 = vld [vmem:[#allocation3 + $0x18] sm:$0xff]
  %v1870 = vld [vmem:[#allocation3 + $0x20] sm:$0xff]
  %v1871 = vld [vmem:[#allocation3 + $0x28] sm:$0xff]
  %v1872 = vld [vmem:[#allocation3 + $0x30] sm:$0xff]
  %v1873 = vld [vmem:[#allocation3 + $0x38] sm:$0xff]
  %v1874 = vld [vmem:[%s2] sm:$0xff]
  %v1875 = vld [vmem:[%s2 + $0x8] sm:$0xff]
  %v1876 = vld [vmem:[%s2 + $0x10] sm:$0xff]
  %v1877 = vld [vmem:[%s2 + $0x18] sm:$0xff]
  %v1878 = vld [vmem:[%s2 + $0x20] sm:$0xff]
  %v1879 = vld [vmem:[%s2 + $0x28] sm:$0xff]
  %v1880 = vld [vmem:[%s2 + $0x30] sm:$0xff]
  %v1881 = vld [vmem:[%s2 + $0x38] sm:$0xff]
  %v1882 = vld [vmem:[%s2 + $0x40] sm:$0xff]
  %v1883 = vld [vmem:[%s2 + $0x48] sm:$0xff]
  %v1884 = vld [vmem:[%s2 + $0x50] sm:$0xff]
  %v1885 = vld [vmem:[%s2 + $0x58] sm:$0xff]
  %v1886 = vld [vmem:[%s2 + $0x60] sm:$0xff]
  %v1887 = vld [vmem:[%s2 + $0x68] sm:$0xff]
  %v1888 = vld [vmem:[%s2 + $0x70] sm:$0xff]
  %v1889 = vld [vmem:[%s2 + $0x78] sm:$0xff]
  %s1890 = scalar_lea.vmem %s4, 2
  %v1891 = vld [vmem:[%s1890] sm:$0x3]
  %v1893 = vperm.slane %v1891, 0
  %v1894 = vperm.slane %v1891, 1
  %v1898 = vsel %vm804, %v1866, 0
  %v1901 = vsel %vm804, %v1867, 0
  %v1904 = vsel %vm804, %v1868, 0
  %v1907 = vsel %vm804, %v1869, 0
  %v1910 = vsel %vm804, %v1870, 0
  %v1913 = vsel %vm804, %v1871, 0
  %v1916 = vsel %vm804, %v1872, 0
  %v1919 = vsel %vm804, %v1873, 0
  %1921 = vmatpush.msra.mxu0 0.0
  %1922 = vmatpush.msra.mxu0 0.0
  %1923 = vmatpush.msra.mxu0 0.0
  %1924 = vmatpush.msra.mxu0 0.0
  %1925 = vmatpush.msra.mxu0 0.0
  %1926 = vmatpush.msra.mxu0 0.0
  %1927 = vmatpush.msra.mxu0 0.0
  %1928 = vmatpush.msra.mxu0 0.0
  %1929 = vmatpush.msra.mxu0 %v1888
  %1930 = vmatpush.msra.mxu0 %v1886
  %1931 = vmatpush.msra.mxu0 %v1884
  %1932 = vmatpush.msra.mxu0 %v1882
  %1933 = vmatpush.msra.mxu0 %v1880
  %1934 = vmatpush.msra.mxu0 %v1878
  %1935 = vmatpush.msra.mxu0 %v1876
  %1936 = vmatpush.msra.mxu0 %v1874
  %1937 = vmatmul.f32.gmra.mxu0 %v1898
  %v1938 = vpop.f32.mrf.mxu0
  %v1939 = vadd.f32 %v1893, %v1938
  %1940 = vmatmul.f32.gmra.mxu0 %v1901
  %v1941 = vpop.f32.mrf.mxu0
  %v1942 = vadd.f32 %v1893, %v1941
  %1943 = vmatmul.f32.gmra.mxu0 %v1904
  %v1944 = vpop.f32.mrf.mxu0
  %v1945 = vadd.f32 %v1893, %v1944
  %1946 = vmatmul.f32.gmra.mxu0 %v1907
  %v1947 = vpop.f32.mrf.mxu0
  %v1948 = vadd.f32 %v1893, %v1947
  %1949 = vmatmul.f32.gmra.mxu0 %v1910
  %v1950 = vpop.f32.mrf.mxu0
  %v1951 = vadd.f32 %v1893, %v1950
  %1952 = vmatmul.f32.gmra.mxu0 %v1913
  %v1953 = vpop.f32.mrf.mxu0
  %v1954 = vadd.f32 %v1893, %v1953
  %1955 = vmatmul.f32.gmra.mxu0 %v1916
  %v1956 = vpop.f32.mrf.mxu0
  %v1957 = vadd.f32 %v1893, %v1956
  %1958 = vmatmul.f32.gmra.mxu0 %v1919
  %v1959 = vpop.f32.mrf.mxu0
  %v1960 = vadd.f32 %v1893, %v1959
  %1961 = vdwg.mxu0
  %1962 = vmatpush.msra.mxu0 0.0
  %1963 = vmatpush.msra.mxu0 0.0
  %1964 = vmatpush.msra.mxu0 0.0
  %1965 = vmatpush.msra.mxu0 0.0
  %1966 = vmatpush.msra.mxu0 0.0
  %1967 = vmatpush.msra.mxu0 0.0
  %1968 = vmatpush.msra.mxu0 0.0
  %1969 = vmatpush.msra.mxu0 0.0
  %1970 = vmatpush.msra.mxu0 %v1889
  %1971 = vmatpush.msra.mxu0 %v1887
  %1972 = vmatpush.msra.mxu0 %v1885
  %1973 = vmatpush.msra.mxu0 %v1883
  %1974 = vmatpush.msra.mxu0 %v1881
  %1975 = vmatpush.msra.mxu0 %v1879
  %1976 = vmatpush.msra.mxu0 %v1877
  %1977 = vmatpush.msra.mxu0 %v1875
  %1978 = vmatmul.f32.gmra.mxu0 %v1898
  %v1979 = vpop.f32.mrf.mxu0
  %v1980 = vadd.f32 %v1894, %v1979
  %1981 = vmatmul.f32.gmra.mxu0 %v1901
  %v1982 = vpop.f32.mrf.mxu0
  %v1983 = vadd.f32 %v1894, %v1982
  %1984 = vmatmul.f32.gmra.mxu0 %v1904
  %v1985 = vpop.f32.mrf.mxu0
  %v1986 = vadd.f32 %v1894, %v1985
  %1987 = vmatmul.f32.gmra.mxu0 %v1907
  %v1988 = vpop.f32.mrf.mxu0
  %v1989 = vadd.f32 %v1894, %v1988
  %1990 = vmatmul.f32.gmra.mxu0 %v1910
  %v1991 = vpop.f32.mrf.mxu0
  %v1992 = vadd.f32 %v1894, %v1991
  %1993 = vmatmul.f32.gmra.mxu0 %v1913
  %v1994 = vpop.f32.mrf.mxu0
  %v1995 = vadd.f32 %v1894, %v1994
  %1996 = vmatmul.f32.gmra.mxu0 %v1916
  %v1997 = vpop.f32.mrf.mxu0
  %v1998 = vadd.f32 %v1894, %v1997
  %1999 = vmatmul.f32.gmra.mxu0 %v1919
  %v2000 = vpop.f32.mrf.mxu0
  %v2001 = vadd.f32 %v1894, %v2000
  %2002 = vdwg.mxu0
  %2003 = vst [vmem:[#allocation2] sm:$0xff] %v1939
  %2004 = vst [vmem:[#allocation2 + $0x8] sm:$0xff] %v1980
  %2005 = vst [vmem:[#allocation2 + $0x10] sm:$0xff] %v1942
  %2006 = vst [vmem:[#allocation2 + $0x18] sm:$0xff] %v1983
  %2007 = vst [vmem:[#allocation2 + $0x20] sm:$0xff] %v1945
  %2008 = vst [vmem:[#allocation2 + $0x28] sm:$0xff] %v1986
  %2009 = vst [vmem:[#allocation2 + $0x30] sm:$0xff] %v1948
  %2010 = vst [vmem:[#allocation2 + $0x38] sm:$0xff] %v1989
  %2011 = vst [vmem:[#allocation2 + $0x40] sm:$0xff] %v1951
  %2012 = vst [vmem:[#allocation2 + $0x48] sm:$0xff] %v1992
  %2013 = vst [vmem:[#allocation2 + $0x50] sm:$0xff] %v1954
  %2014 = vst [vmem:[#allocation2 + $0x58] sm:$0xff] %v1995
  %2015 = vst [vmem:[#allocation2 + $0x60] sm:$0xff] %v1957
  %2016 = vst [vmem:[#allocation2 + $0x68] sm:$0xff] %v1998
  %2017 = vst [vmem:[#allocation2 + $0x70] sm:$0xff] %v1960
  %2018 = vst [vmem:[#allocation2 + $0x78] sm:$0xff] %v2001
  %s2019 = scalar_lea.vmem %s3, 128
  %v2020 = vld [vmem:[%s2019] sm:$0xff]
  %v2021 = vld [vmem:[%s2019 + $0x8] sm:$0xff]
  %v2022 = vld [vmem:[%s2019 + $0x10] sm:$0xff]
  %v2023 = vld [vmem:[%s2019 + $0x18] sm:$0xff]
  %v2024 = vld [vmem:[%s2019 + $0x20] sm:$0xff]
  %v2025 = vld [vmem:[%s2019 + $0x28] sm:$0xff]
  %v2026 = vld [vmem:[%s2019 + $0x30] sm:$0xff]
  %v2027 = vld [vmem:[%s2019 + $0x38] sm:$0xff]
  %v2028 = vld [vmem:[%s2019 + $0x40] sm:$0xff]
  %v2029 = vld [vmem:[%s2019 + $0x48] sm:$0xff]
  %v2030 = vld [vmem:[%s2019 + $0x50] sm:$0xff]
  %v2031 = vld [vmem:[%s2019 + $0x58] sm:$0xff]
  %v2032 = vld [vmem:[%s2019 + $0x60] sm:$0xff]
  %v2033 = vld [vmem:[%s2019 + $0x68] sm:$0xff]
  %v2034 = vld [vmem:[%s2019 + $0x70] sm:$0xff]
  %v2035 = vld [vmem:[%s2019 + $0x78] sm:$0xff]
  %s2036 = scalar_lea.vmem %s5, 8
  %v2037 = vld [vmem:[%s2036] sm:$0xff]
  %s2038 = scalar_lea.vmem %s6, 8
  %v2039 = vld [vmem:[%s2038] sm:$0xff]
  %v2041 = vsel %vm804, %v2037, 0
  %2043 = vmatpush.msra.mxu0 0.0
  %2044 = vmatpush.msra.mxu0 0.0
  %2045 = vmatpush.msra.mxu0 0.0
  %2046 = vmatpush.msra.mxu0 0.0
  %2047 = vmatpush.msra.mxu0 0.0
  %2048 = vmatpush.msra.mxu0 0.0
  %2049 = vmatpush.msra.mxu0 0.0
  %2050 = vmatpush.msra.mxu0 0.0
  %2051 = vmatpush.msra.mxu0 %v2034
  %2052 = vmatpush.msra.mxu0 %v2032
  %2053 = vmatpush.msra.mxu0 %v2030
  %2054 = vmatpush.msra.mxu0 %v2028
  %2055 = vmatpush.msra.mxu0 %v2026
  %2056 = vmatpush.msra.mxu0 %v2024
  %2057 = vmatpush.msra.mxu0 %v2022
  %2058 = vmatpush.msra.mxu0 %v2020
  %2059 = vmatmul.f32.gmra.mxu0 %v2041
  %v2060 = vpop.f32.mrf.mxu0
  %v2061 = vadd.f32 0.0, %v2060
  %2062 = vdwg.mxu0
  %2063 = vmatpush.msra.mxu0 0.0
  %2064 = vmatpush.msra.mxu0 0.0
  %2065 = vmatpush.msra.mxu0 0.0
  %2066 = vmatpush.msra.mxu0 0.0
  %2067 = vmatpush.msra.mxu0 0.0
  %2068 = vmatpush.msra.mxu0 0.0
  %2069 = vmatpush.msra.mxu0 0.0
  %2070 = vmatpush.msra.mxu0 0.0
  %2071 = vmatpush.msra.mxu0 %v2035
  %2072 = vmatpush.msra.mxu0 %v2033
  %2073 = vmatpush.msra.mxu0 %v2031
  %2074 = vmatpush.msra.mxu0 %v2029
  %2075 = vmatpush.msra.mxu0 %v2027
  %2076 = vmatpush.msra.mxu0 %v2025
  %2077 = vmatpush.msra.mxu0 %v2023
  %2078 = vmatpush.msra.mxu0 %v2021
  %2079 = vmatmul.f32.gmra.mxu0 %v2041
  %v2080 = vpop.f32.mrf.mxu0
  %v2081 = vadd.f32 0.0, %v2080
  %2082 = vdwg.mxu0
  %v2083 = vld [vmem:[#allocation2] sm:$0xff]
  %v2084 = vadd.f32 %v2083, %v2061
  %v2085 = vld [vmem:[#allocation2 + $0x78] sm:$0xff]
  %v2086 = vadd.f32 %v2085, %v2081
  %v2087 = vxor.u32 %v2084, 2147483648
  %v2088 = vmul.f32 %v2087, 1.442695
  %v2089 = vpow.pop %v2088
  %v2090 = vadd.f32 %v2089, 1.0
  %v2091 = vrcp.pop %v2090
  %v2092 = vmul.f32 %v2090, %v2091
  %v2093 = vsub.f32 1.0, %v2092
  %v2094 = vmul.f32 %v2091, %v2093
  %v2095 = vadd.f32 %v2091, %v2094
  %vm2096 = vweird.f32 %v2090
  %vm2097 = vweird.f32 %v2091
  %vm2098 = vmor %vm2096, %vm2097
  %v2099 = vsel %vm2098, %v2091, %v2095
  %v2100 = vand.u32 2147483647, %v2090
  %vm2101 = vcmp.eq.f32.partialorder %v2100, 8.507059e+37
  %v2102 = vand.u32 %v2090, 2147483648
  %v2103 = vor.u32 1.1754944e-38, %v2102
  %v2104 = vsel %vm2101, %v2103, %v2099
  %v2105 = vmul.f32 1.0, %v2104
  %v2106 = vtanh.pop %v2084
  %2108 = vrot.lane.b32.xlu0 %v2039, 32
  %v2109 = vpop.permute.xlu0 %2108
  %v2111 = vmul.f32 %v2105, %v2109
  %2113 = vrot.lane.b32.xlu0 %v2106, 32
  %v2114 = vpop.permute.xlu0 %2113
  %v2116 = vmul.f32 %v2105, %v2114
  %2118 = vrot.lane.b32.xlu0 %v2116, 32
  %v2119 = vpop.permute.xlu0 %2118
  %v2121 = vadd.f32 %v2111, %v2119
  %v2122 = vtanh.pop %v2121
  %2124 = vrot.lane.b32.xlu0 %v2122, 32
  %v2125 = vpop.permute.xlu0 %2124
  %v2127 = vmul.f32 %v2105, %v2125
  %v2128 = vxor.u32 %v2086, 2147483648
  %v2129 = vmul.f32 %v2128, 1.442695
  %v2130 = vpow.pop %v2129
  %v2131 = vadd.f32 %v2130, 1.0
  %v2132 = vrcp.pop %v2131
  %v2133 = vmul.f32 %v2131, %v2132
  %v2134 = vsub.f32 1.0, %v2133
  %v2135 = vmul.f32 %v2132, %v2134
  %v2136 = vadd.f32 %v2132, %v2135
  %vm2137 = vweird.f32 %v2131
  %vm2138 = vweird.f32 %v2132
  %vm2139 = vmor %vm2137, %vm2138
  %v2140 = vsel %vm2139, %v2132, %v2136
  %v2141 = vand.u32 2147483647, %v2131
  %vm2142 = vcmp.eq.f32.partialorder %v2141, 8.507059e+37
  %v2143 = vand.u32 %v2131, 2147483648
  %v2144 = vor.u32 1.1754944e-38, %v2143
  %v2145 = vsel %vm2142, %v2144, %v2140
  %v2146 = vmul.f32 1.0, %v2145
  %v2147 = vtanh.pop %v2086
  %v2148 = vmul.f32 %v2146, %v2039
  %2150 = vrot.lane.b32.xlu0 %v2147, 32
  %v2151 = vpop.permute.xlu0 %2150
  %v2153 = vmul.f32 %v2146, %v2151
  %2155 = vrot.lane.b32.xlu0 %v2153, 32
  %v2156 = vpop.permute.xlu0 %2155
  %v2158 = vadd.f32 %v2148, %v2156
  %v2159 = vtanh.pop %v2158
  %2161 = vrot.lane.b32.xlu0 %v2159, 32
  %v2162 = vpop.permute.xlu0 %2161
  %v2164 = vmul.f32 %v2146, %v2162
  %2166 = vrot.lane.b32.xlu0 %v2127, 64
  %v2167 = vpop.permute.xlu0 %2166
  %2170 = vrot.lane.b32.xlu0 %v2164, 96
  %v2171 = vpop.permute.xlu0 %2170
  %v2173 = vsel %vm938, %v2167, %v2171
  %v2175 = vsel %vm804, %v2173, 0
  %2177 = vmatpush.msra.mxu0 0.0
  %2178 = vmatpush.msra.mxu0 0.0
  %2179 = vmatpush.msra.mxu0 0.0
  %2180 = vmatpush.msra.mxu0 0.0
  %2181 = vmatpush.msra.mxu0 0.0
  %2182 = vmatpush.msra.mxu0 0.0
  %2183 = vmatpush.msra.mxu0 0.0
  %2184 = vmatpush.msra.mxu0 0.0
  %2185 = vmatpush.msra.mxu0 %v2034
  %2186 = vmatpush.msra.mxu0 %v2032
  %2187 = vmatpush.msra.mxu0 %v2030
  %2188 = vmatpush.msra.mxu0 %v2028
  %2189 = vmatpush.msra.mxu0 %v2026
  %2190 = vmatpush.msra.mxu0 %v2024
  %2191 = vmatpush.msra.mxu0 %v2022
  %2192 = vmatpush.msra.mxu0 %v2020
  %2193 = vmatmul.f32.gmra.mxu0 %v2175
  %v2194 = vpop.f32.mrf.mxu0
  %v2195 = vadd.f32 0.0, %v2194
  %2196 = vdwg.mxu0
  %2197 = vmatpush.msra.mxu0 0.0
  %2198 = vmatpush.msra.mxu0 0.0
  %2199 = vmatpush.msra.mxu0 0.0
  %2200 = vmatpush.msra.mxu0 0.0
  %2201 = vmatpush.msra.mxu0 0.0
  %2202 = vmatpush.msra.mxu0 0.0
  %2203 = vmatpush.msra.mxu0 0.0
  %2204 = vmatpush.msra.mxu0 0.0
  %2205 = vmatpush.msra.mxu0 %v2035
  %2206 = vmatpush.msra.mxu0 %v2033
  %2207 = vmatpush.msra.mxu0 %v2031
  %2208 = vmatpush.msra.mxu0 %v2029
  %2209 = vmatpush.msra.mxu0 %v2027
  %2210 = vmatpush.msra.mxu0 %v2025
  %2211 = vmatpush.msra.mxu0 %v2023
  %2212 = vmatpush.msra.mxu0 %v2021
  %2213 = vmatmul.f32.gmra.mxu0 %v2175
  %v2214 = vpop.f32.mrf.mxu0
  %v2215 = vadd.f32 0.0, %v2214
  %2216 = vdwg.mxu0
  %v2217 = vld [vmem:[#allocation2 + $0x10] sm:$0xff]
  %v2218 = vadd.f32 %v2217, %v2195
  %v2219 = vld [vmem:[#allocation2 + $0x68] sm:$0xff]
  %v2220 = vadd.f32 %v2219, %v2215
  %v2221 = vxor.u32 %v2218, 2147483648
  %v2222 = vmul.f32 %v2221, 1.442695
  %v2223 = vpow.pop %v2222
  %v2224 = vadd.f32 %v2223, 1.0
  %v2225 = vrcp.pop %v2224
  %v2226 = vmul.f32 %v2224, %v2225
  %v2227 = vsub.f32 1.0, %v2226
  %v2228 = vmul.f32 %v2225, %v2227
  %v2229 = vadd.f32 %v2225, %v2228
  %vm2230 = vweird.f32 %v2224
  %vm2231 = vweird.f32 %v2225
  %vm2232 = vmor %vm2230, %vm2231
  %v2233 = vsel %vm2232, %v2225, %v2229
  %v2234 = vand.u32 2147483647, %v2224
  %vm2235 = vcmp.eq.f32.partialorder %v2234, 8.507059e+37
  %v2236 = vand.u32 %v2224, 2147483648
  %v2237 = vor.u32 1.1754944e-38, %v2236
  %v2238 = vsel %vm2235, %v2237, %v2233
  %v2239 = vmul.f32 1.0, %v2238
  %v2240 = vtanh.pop %v2218
  %v2241 = vmul.f32 %v2239, %v2121
  %2243 = vrot.lane.b32.xlu0 %v2240, 32
  %v2244 = vpop.permute.xlu0 %2243
  %v2246 = vmul.f32 %v2239, %v2244
  %2248 = vrot.lane.b32.xlu0 %v2246, 32
  %v2249 = vpop.permute.xlu0 %2248
  %v2251 = vadd.f32 %v2241, %v2249
  %v2252 = vtanh.pop %v2251
  %2254 = vrot.lane.b32.xlu0 %v2252, 32
  %v2255 = vpop.permute.xlu0 %2254
  %v2257 = vmul.f32 %v2239, %v2255
  %v2258 = vxor.u32 %v2220, 2147483648
  %v2259 = vmul.f32 %v2258, 1.442695
  %v2260 = vpow.pop %v2259
  %v2261 = vadd.f32 %v2260, 1.0
  %v2262 = vrcp.pop %v2261
  %v2263 = vmul.f32 %v2261, %v2262
  %v2264 = vsub.f32 1.0, %v2263
  %v2265 = vmul.f32 %v2262, %v2264
  %v2266 = vadd.f32 %v2262, %v2265
  %vm2267 = vweird.f32 %v2261
  %vm2268 = vweird.f32 %v2262
  %vm2269 = vmor %vm2267, %vm2268
  %v2270 = vsel %vm2269, %v2262, %v2266
  %v2271 = vand.u32 2147483647, %v2261
  %vm2272 = vcmp.eq.f32.partialorder %v2271, 8.507059e+37
  %v2273 = vand.u32 %v2261, 2147483648
  %v2274 = vor.u32 1.1754944e-38, %v2273
  %v2275 = vsel %vm2272, %v2274, %v2270
  %v2276 = vmul.f32 1.0, %v2275
  %v2277 = vtanh.pop %v2220
  %v2278 = vmul.f32 %v2276, %v2158
  %2280 = vrot.lane.b32.xlu0 %v2277, 32
  %v2281 = vpop.permute.xlu0 %2280
  %v2283 = vmul.f32 %v2276, %v2281
  %2285 = vrot.lane.b32.xlu0 %v2283, 32
  %v2286 = vpop.permute.xlu0 %2285
  %v2288 = vadd.f32 %v2278, %v2286
  %v2289 = vtanh.pop %v2288
  %2291 = vrot.lane.b32.xlu0 %v2289, 32
  %v2292 = vpop.permute.xlu0 %2291
  %v2294 = vmul.f32 %v2276, %v2292
  %2296 = vrot.lane.b32.xlu0 %v2257, 64
  %v2297 = vpop.permute.xlu0 %2296
  %2300 = vrot.lane.b32.xlu0 %v2294, 96
  %v2301 = vpop.permute.xlu0 %2300
  %v2303 = vsel %vm938, %v2297, %v2301
  %v2305 = vsel %vm804, %v2303, 0
  %2307 = vmatpush.msra.mxu0 0.0
  %2308 = vmatpush.msra.mxu0 0.0
  %2309 = vmatpush.msra.mxu0 0.0
  %2310 = vmatpush.msra.mxu0 0.0
  %2311 = vmatpush.msra.mxu0 0.0
  %2312 = vmatpush.msra.mxu0 0.0
  %2313 = vmatpush.msra.mxu0 0.0
  %2314 = vmatpush.msra.mxu0 0.0
  %2315 = vmatpush.msra.mxu0 %v2034
  %2316 = vmatpush.msra.mxu0 %v2032
  %2317 = vmatpush.msra.mxu0 %v2030
  %2318 = vmatpush.msra.mxu0 %v2028
  %2319 = vmatpush.msra.mxu0 %v2026
  %2320 = vmatpush.msra.mxu0 %v2024
  %2321 = vmatpush.msra.mxu0 %v2022
  %2322 = vmatpush.msra.mxu0 %v2020
  %2323 = vmatmul.f32.gmra.mxu0 %v2305
  %v2324 = vpop.f32.mrf.mxu0
  %v2325 = vadd.f32 0.0, %v2324
  %2326 = vdwg.mxu0
  %2327 = vmatpush.msra.mxu0 0.0
  %2328 = vmatpush.msra.mxu0 0.0
  %2329 = vmatpush.msra.mxu0 0.0
  %2330 = vmatpush.msra.mxu0 0.0
  %2331 = vmatpush.msra.mxu0 0.0
  %2332 = vmatpush.msra.mxu0 0.0
  %2333 = vmatpush.msra.mxu0 0.0
  %2334 = vmatpush.msra.mxu0 0.0
  %2335 = vmatpush.msra.mxu0 %v2035
  %2336 = vmatpush.msra.mxu0 %v2033
  %2337 = vmatpush.msra.mxu0 %v2031
  %2338 = vmatpush.msra.mxu0 %v2029
  %2339 = vmatpush.msra.mxu0 %v2027
  %2340 = vmatpush.msra.mxu0 %v2025
  %2341 = vmatpush.msra.mxu0 %v2023
  %2342 = vmatpush.msra.mxu0 %v2021
  %2343 = vmatmul.f32.gmra.mxu0 %v2305
  %v2344 = vpop.f32.mrf.mxu0
  %v2345 = vadd.f32 0.0, %v2344
  %2346 = vdwg.mxu0
  %v2347 = vld [vmem:[#allocation2 + $0x20] sm:$0xff]
  %v2348 = vadd.f32 %v2347, %v2325
  %v2349 = vld [vmem:[#allocation2 + $0x58] sm:$0xff]
  %v2350 = vadd.f32 %v2349, %v2345
  %v2351 = vxor.u32 %v2348, 2147483648
  %v2352 = vmul.f32 %v2351, 1.442695
  %v2353 = vpow.pop %v2352
  %v2354 = vadd.f32 %v2353, 1.0
  %v2355 = vrcp.pop %v2354
  %v2356 = vmul.f32 %v2354, %v2355
  %v2357 = vsub.f32 1.0, %v2356
  %v2358 = vmul.f32 %v2355, %v2357
  %v2359 = vadd.f32 %v2355, %v2358
  %vm2360 = vweird.f32 %v2354
  %vm2361 = vweird.f32 %v2355
  %vm2362 = vmor %vm2360, %vm2361
  %v2363 = vsel %vm2362, %v2355, %v2359
  %v2364 = vand.u32 2147483647, %v2354
  %vm2365 = vcmp.eq.f32.partialorder %v2364, 8.507059e+37
  %v2366 = vand.u32 %v2354, 2147483648
  %v2367 = vor.u32 1.1754944e-38, %v2366
  %v2368 = vsel %vm2365, %v2367, %v2363
  %v2369 = vmul.f32 1.0, %v2368
  %v2370 = vtanh.pop %v2348
  %v2371 = vmul.f32 %v2369, %v2251
  %2373 = vrot.lane.b32.xlu0 %v2370, 32
  %v2374 = vpop.permute.xlu0 %2373
  %v2376 = vmul.f32 %v2369, %v2374
  %2378 = vrot.lane.b32.xlu0 %v2376, 32
  %v2379 = vpop.permute.xlu0 %2378
  %v2381 = vadd.f32 %v2371, %v2379
  %v2382 = vtanh.pop %v2381
  %2384 = vrot.lane.b32.xlu0 %v2382, 32
  %v2385 = vpop.permute.xlu0 %2384
  %v2387 = vmul.f32 %v2369, %v2385
  %v2388 = vxor.u32 %v2350, 2147483648
  %v2389 = vmul.f32 %v2388, 1.442695
  %v2390 = vpow.pop %v2389
  %v2391 = vadd.f32 %v2390, 1.0
  %v2392 = vrcp.pop %v2391
  %v2393 = vmul.f32 %v2391, %v2392
  %v2394 = vsub.f32 1.0, %v2393
  %v2395 = vmul.f32 %v2392, %v2394
  %v2396 = vadd.f32 %v2392, %v2395
  %vm2397 = vweird.f32 %v2391
  %vm2398 = vweird.f32 %v2392
  %vm2399 = vmor %vm2397, %vm2398
  %v2400 = vsel %vm2399, %v2392, %v2396
  %v2401 = vand.u32 2147483647, %v2391
  %vm2402 = vcmp.eq.f32.partialorder %v2401, 8.507059e+37
  %v2403 = vand.u32 %v2391, 2147483648
  %v2404 = vor.u32 1.1754944e-38, %v2403
  %v2405 = vsel %vm2402, %v2404, %v2400
  %v2406 = vmul.f32 1.0, %v2405
  %v2407 = vtanh.pop %v2350
  %v2408 = vmul.f32 %v2406, %v2288
  %2410 = vrot.lane.b32.xlu0 %v2407, 32
  %v2411 = vpop.permute.xlu0 %2410
  %v2413 = vmul.f32 %v2406, %v2411
  %2415 = vrot.lane.b32.xlu0 %v2413, 32
  %v2416 = vpop.permute.xlu0 %2415
  %v2418 = vadd.f32 %v2408, %v2416
  %v2419 = vtanh.pop %v2418
  %2421 = vrot.lane.b32.xlu0 %v2419, 32
  %v2422 = vpop.permute.xlu0 %2421
  %v2424 = vmul.f32 %v2406, %v2422
  %2426 = vrot.lane.b32.xlu0 %v2387, 64
  %v2427 = vpop.permute.xlu0 %2426
  %2430 = vrot.lane.b32.xlu0 %v2424, 96
  %v2431 = vpop.permute.xlu0 %2430
  %v2433 = vsel %vm938, %v2427, %v2431
  %v2435 = vsel %vm804, %v2433, 0
  %2437 = vmatpush.msra.mxu0 0.0
  %2438 = vmatpush.msra.mxu0 0.0
  %2439 = vmatpush.msra.mxu0 0.0
  %2440 = vmatpush.msra.mxu0 0.0
  %2441 = vmatpush.msra.mxu0 0.0
  %2442 = vmatpush.msra.mxu0 0.0
  %2443 = vmatpush.msra.mxu0 0.0
  %2444 = vmatpush.msra.mxu0 0.0
  %2445 = vmatpush.msra.mxu0 %v2034
  %2446 = vmatpush.msra.mxu0 %v2032
  %2447 = vmatpush.msra.mxu0 %v2030
  %2448 = vmatpush.msra.mxu0 %v2028
  %2449 = vmatpush.msra.mxu0 %v2026
  %2450 = vmatpush.msra.mxu0 %v2024
  %2451 = vmatpush.msra.mxu0 %v2022
  %2452 = vmatpush.msra.mxu0 %v2020
  %2453 = vmatmul.f32.gmra.mxu0 %v2435
  %v2454 = vpop.f32.mrf.mxu0
  %v2455 = vadd.f32 0.0, %v2454
  %2456 = vdwg.mxu0
  %2457 = vmatpush.msra.mxu0 0.0
  %2458 = vmatpush.msra.mxu0 0.0
  %2459 = vmatpush.msra.mxu0 0.0
  %2460 = vmatpush.msra.mxu0 0.0
  %2461 = vmatpush.msra.mxu0 0.0
  %2462 = vmatpush.msra.mxu0 0.0
  %2463 = vmatpush.msra.mxu0 0.0
  %2464 = vmatpush.msra.mxu0 0.0
  %2465 = vmatpush.msra.mxu0 %v2035
  %2466 = vmatpush.msra.mxu0 %v2033
  %2467 = vmatpush.msra.mxu0 %v2031
  %2468 = vmatpush.msra.mxu0 %v2029
  %2469 = vmatpush.msra.mxu0 %v2027
  %2470 = vmatpush.msra.mxu0 %v2025
  %2471 = vmatpush.msra.mxu0 %v2023
  %2472 = vmatpush.msra.mxu0 %v2021
  %2473 = vmatmul.f32.gmra.mxu0 %v2435
  %v2474 = vpop.f32.mrf.mxu0
  %v2475 = vadd.f32 0.0, %v2474
  %2476 = vdwg.mxu0
  %v2477 = vld [vmem:[#allocation2 + $0x30] sm:$0xff]
  %v2478 = vadd.f32 %v2477, %v2455
  %v2479 = vld [vmem:[#allocation2 + $0x48] sm:$0xff]
  %v2480 = vadd.f32 %v2479, %v2475
  %v2481 = vxor.u32 %v2478, 2147483648
  %v2482 = vmul.f32 %v2481, 1.442695
  %v2483 = vpow.pop %v2482
  %v2484 = vadd.f32 %v2483, 1.0
  %v2485 = vrcp.pop %v2484
  %v2486 = vmul.f32 %v2484, %v2485
  %v2487 = vsub.f32 1.0, %v2486
  %v2488 = vmul.f32 %v2485, %v2487
  %v2489 = vadd.f32 %v2485, %v2488
  %vm2490 = vweird.f32 %v2484
  %vm2491 = vweird.f32 %v2485
  %vm2492 = vmor %vm2490, %vm2491
  %v2493 = vsel %vm2492, %v2485, %v2489
  %v2494 = vand.u32 2147483647, %v2484
  %vm2495 = vcmp.eq.f32.partialorder %v2494, 8.507059e+37
  %v2496 = vand.u32 %v2484, 2147483648
  %v2497 = vor.u32 1.1754944e-38, %v2496
  %v2498 = vsel %vm2495, %v2497, %v2493
  %v2499 = vmul.f32 1.0, %v2498
  %v2500 = vtanh.pop %v2478
  %v2501 = vmul.f32 %v2499, %v2381
  %2503 = vrot.lane.b32.xlu0 %v2500, 32
  %v2504 = vpop.permute.xlu0 %2503
  %v2506 = vmul.f32 %v2499, %v2504
  %2508 = vrot.lane.b32.xlu0 %v2506, 32
  %v2509 = vpop.permute.xlu0 %2508
  %v2511 = vadd.f32 %v2501, %v2509
  %v2512 = vtanh.pop %v2511
  %2514 = vrot.lane.b32.xlu0 %v2512, 32
  %v2515 = vpop.permute.xlu0 %2514
  %v2517 = vmul.f32 %v2499, %v2515
  %v2518 = vxor.u32 %v2480, 2147483648
  %v2519 = vmul.f32 %v2518, 1.442695
  %v2520 = vpow.pop %v2519
  %v2521 = vadd.f32 %v2520, 1.0
  %v2522 = vrcp.pop %v2521
  %v2523 = vmul.f32 %v2521, %v2522
  %v2524 = vsub.f32 1.0, %v2523
  %v2525 = vmul.f32 %v2522, %v2524
  %v2526 = vadd.f32 %v2522, %v2525
  %vm2527 = vweird.f32 %v2521
  %vm2528 = vweird.f32 %v2522
  %vm2529 = vmor %vm2527, %vm2528
  %v2530 = vsel %vm2529, %v2522, %v2526
  %v2531 = vand.u32 2147483647, %v2521
  %vm2532 = vcmp.eq.f32.partialorder %v2531, 8.507059e+37
  %v2533 = vand.u32 %v2521, 2147483648
  %v2534 = vor.u32 1.1754944e-38, %v2533
  %v2535 = vsel %vm2532, %v2534, %v2530
  %v2536 = vmul.f32 1.0, %v2535
  %v2537 = vtanh.pop %v2480
  %v2538 = vmul.f32 %v2536, %v2418
  %2540 = vrot.lane.b32.xlu0 %v2537, 32
  %v2541 = vpop.permute.xlu0 %2540
  %v2543 = vmul.f32 %v2536, %v2541
  %2545 = vrot.lane.b32.xlu0 %v2543, 32
  %v2546 = vpop.permute.xlu0 %2545
  %v2548 = vadd.f32 %v2538, %v2546
  %v2549 = vtanh.pop %v2548
  %2551 = vrot.lane.b32.xlu0 %v2549, 32
  %v2552 = vpop.permute.xlu0 %2551
  %v2554 = vmul.f32 %v2536, %v2552
  %2556 = vrot.lane.b32.xlu0 %v2517, 64
  %v2557 = vpop.permute.xlu0 %2556
  %2560 = vrot.lane.b32.xlu0 %v2554, 96
  %v2561 = vpop.permute.xlu0 %2560
  %v2563 = vsel %vm938, %v2557, %v2561
  %v2565 = vsel %vm804, %v2563, 0
  %2567 = vmatpush.msra.mxu0 0.0
  %2568 = vmatpush.msra.mxu0 0.0
  %2569 = vmatpush.msra.mxu0 0.0
  %2570 = vmatpush.msra.mxu0 0.0
  %2571 = vmatpush.msra.mxu0 0.0
  %2572 = vmatpush.msra.mxu0 0.0
  %2573 = vmatpush.msra.mxu0 0.0
  %2574 = vmatpush.msra.mxu0 0.0
  %2575 = vmatpush.msra.mxu0 %v2034
  %2576 = vmatpush.msra.mxu0 %v2032
  %2577 = vmatpush.msra.mxu0 %v2030
  %2578 = vmatpush.msra.mxu0 %v2028
  %2579 = vmatpush.msra.mxu0 %v2026
  %2580 = vmatpush.msra.mxu0 %v2024
  %2581 = vmatpush.msra.mxu0 %v2022
  %2582 = vmatpush.msra.mxu0 %v2020
  %2583 = vmatmul.f32.gmra.mxu0 %v2565
  %v2584 = vpop.f32.mrf.mxu0
  %v2585 = vadd.f32 0.0, %v2584
  %2586 = vdwg.mxu0
  %2587 = vmatpush.msra.mxu0 0.0
  %2588 = vmatpush.msra.mxu0 0.0
  %2589 = vmatpush.msra.mxu0 0.0
  %2590 = vmatpush.msra.mxu0 0.0
  %2591 = vmatpush.msra.mxu0 0.0
  %2592 = vmatpush.msra.mxu0 0.0
  %2593 = vmatpush.msra.mxu0 0.0
  %2594 = vmatpush.msra.mxu0 0.0
  %2595 = vmatpush.msra.mxu0 %v2035
  %2596 = vmatpush.msra.mxu0 %v2033
  %2597 = vmatpush.msra.mxu0 %v2031
  %2598 = vmatpush.msra.mxu0 %v2029
  %2599 = vmatpush.msra.mxu0 %v2027
  %2600 = vmatpush.msra.mxu0 %v2025
  %2601 = vmatpush.msra.mxu0 %v2023
  %2602 = vmatpush.msra.mxu0 %v2021
  %2603 = vmatmul.f32.gmra.mxu0 %v2565
  %v2604 = vpop.f32.mrf.mxu0
  %v2605 = vadd.f32 0.0, %v2604
  %2606 = vdwg.mxu0
  %v2607 = vld [vmem:[#allocation2 + $0x40] sm:$0xff]
  %v2608 = vadd.f32 %v2607, %v2585
  %v2609 = vld [vmem:[#allocation2 + $0x38] sm:$0xff]
  %v2610 = vadd.f32 %v2609, %v2605
  %v2611 = vxor.u32 %v2608, 2147483648
  %v2612 = vmul.f32 %v2611, 1.442695
  %v2613 = vpow.pop %v2612
  %v2614 = vadd.f32 %v2613, 1.0
  %v2615 = vrcp.pop %v2614
  %v2616 = vmul.f32 %v2614, %v2615
  %v2617 = vsub.f32 1.0, %v2616
  %v2618 = vmul.f32 %v2615, %v2617
  %v2619 = vadd.f32 %v2615, %v2618
  %vm2620 = vweird.f32 %v2614
  %vm2621 = vweird.f32 %v2615
  %vm2622 = vmor %vm2620, %vm2621
  %v2623 = vsel %vm2622, %v2615, %v2619
  %v2624 = vand.u32 2147483647, %v2614
  %vm2625 = vcmp.eq.f32.partialorder %v2624, 8.507059e+37
  %v2626 = vand.u32 %v2614, 2147483648
  %v2627 = vor.u32 1.1754944e-38, %v2626
  %v2628 = vsel %vm2625, %v2627, %v2623
  %v2629 = vmul.f32 1.0, %v2628
  %v2630 = vtanh.pop %v2608
  %v2631 = vmul.f32 %v2629, %v2511
  %2633 = vrot.lane.b32.xlu0 %v2630, 32
  %v2634 = vpop.permute.xlu0 %2633
  %v2636 = vmul.f32 %v2629, %v2634
  %2638 = vrot.lane.b32.xlu0 %v2636, 32
  %v2639 = vpop.permute.xlu0 %2638
  %v2641 = vadd.f32 %v2631, %v2639
  %v2642 = vtanh.pop %v2641
  %2644 = vrot.lane.b32.xlu0 %v2642, 32
  %v2645 = vpop.permute.xlu0 %2644
  %v2647 = vmul.f32 %v2629, %v2645
  %v2648 = vxor.u32 %v2610, 2147483648
  %v2649 = vmul.f32 %v2648, 1.442695
  %v2650 = vpow.pop %v2649
  %v2651 = vadd.f32 %v2650, 1.0
  %v2652 = vrcp.pop %v2651
  %v2653 = vmul.f32 %v2651, %v2652
  %v2654 = vsub.f32 1.0, %v2653
  %v2655 = vmul.f32 %v2652, %v2654
  %v2656 = vadd.f32 %v2652, %v2655
  %vm2657 = vweird.f32 %v2651
  %vm2658 = vweird.f32 %v2652
  %vm2659 = vmor %vm2657, %vm2658
  %v2660 = vsel %vm2659, %v2652, %v2656
  %v2661 = vand.u32 2147483647, %v2651
  %vm2662 = vcmp.eq.f32.partialorder %v2661, 8.507059e+37
  %v2663 = vand.u32 %v2651, 2147483648
  %v2664 = vor.u32 1.1754944e-38, %v2663
  %v2665 = vsel %vm2662, %v2664, %v2660
  %v2666 = vmul.f32 1.0, %v2665
  %v2667 = vtanh.pop %v2610
  %v2668 = vmul.f32 %v2666, %v2548
  %2670 = vrot.lane.b32.xlu0 %v2667, 32
  %v2671 = vpop.permute.xlu0 %2670
  %v2673 = vmul.f32 %v2666, %v2671
  %2675 = vrot.lane.b32.xlu0 %v2673, 32
  %v2676 = vpop.permute.xlu0 %2675
  %v2678 = vadd.f32 %v2668, %v2676
  %v2679 = vtanh.pop %v2678
  %2681 = vrot.lane.b32.xlu0 %v2679, 32
  %v2682 = vpop.permute.xlu0 %2681
  %v2684 = vmul.f32 %v2666, %v2682
  %2686 = vrot.lane.b32.xlu0 %v2647, 64
  %v2687 = vpop.permute.xlu0 %2686
  %2690 = vrot.lane.b32.xlu0 %v2684, 96
  %v2691 = vpop.permute.xlu0 %2690
  %v2693 = vsel %vm938, %v2687, %v2691
  %v2695 = vsel %vm804, %v2693, 0
  %2697 = vmatpush.msra.mxu0 0.0
  %2698 = vmatpush.msra.mxu0 0.0
  %2699 = vmatpush.msra.mxu0 0.0
  %2700 = vmatpush.msra.mxu0 0.0
  %2701 = vmatpush.msra.mxu0 0.0
  %2702 = vmatpush.msra.mxu0 0.0
  %2703 = vmatpush.msra.mxu0 0.0
  %2704 = vmatpush.msra.mxu0 0.0
  %2705 = vmatpush.msra.mxu0 %v2034
  %2706 = vmatpush.msra.mxu0 %v2032
  %2707 = vmatpush.msra.mxu0 %v2030
  %2708 = vmatpush.msra.mxu0 %v2028
  %2709 = vmatpush.msra.mxu0 %v2026
  %2710 = vmatpush.msra.mxu0 %v2024
  %2711 = vmatpush.msra.mxu0 %v2022
  %2712 = vmatpush.msra.mxu0 %v2020
  %2713 = vmatmul.f32.gmra.mxu0 %v2695
  %v2714 = vpop.f32.mrf.mxu0
  %v2715 = vadd.f32 0.0, %v2714
  %2716 = vdwg.mxu0
  %2717 = vmatpush.msra.mxu0 0.0
  %2718 = vmatpush.msra.mxu0 0.0
  %2719 = vmatpush.msra.mxu0 0.0
  %2720 = vmatpush.msra.mxu0 0.0
  %2721 = vmatpush.msra.mxu0 0.0
  %2722 = vmatpush.msra.mxu0 0.0
  %2723 = vmatpush.msra.mxu0 0.0
  %2724 = vmatpush.msra.mxu0 0.0
  %2725 = vmatpush.msra.mxu0 %v2035
  %2726 = vmatpush.msra.mxu0 %v2033
  %2727 = vmatpush.msra.mxu0 %v2031
  %2728 = vmatpush.msra.mxu0 %v2029
  %2729 = vmatpush.msra.mxu0 %v2027
  %2730 = vmatpush.msra.mxu0 %v2025
  %2731 = vmatpush.msra.mxu0 %v2023
  %2732 = vmatpush.msra.mxu0 %v2021
  %2733 = vmatmul.f32.gmra.mxu0 %v2695
  %v2734 = vpop.f32.mrf.mxu0
  %v2735 = vadd.f32 0.0, %v2734
  %2736 = vdwg.mxu0
  %v2737 = vld [vmem:[#allocation2 + $0x50] sm:$0xff]
  %v2738 = vadd.f32 %v2737, %v2715
  %v2739 = vld [vmem:[#allocation2 + $0x28] sm:$0xff]
  %v2740 = vadd.f32 %v2739, %v2735
  %v2741 = vxor.u32 %v2738, 2147483648
  %v2742 = vmul.f32 %v2741, 1.442695
  %v2743 = vpow.pop %v2742
  %v2744 = vadd.f32 %v2743, 1.0
  %v2745 = vrcp.pop %v2744
  %v2746 = vmul.f32 %v2744, %v2745
  %v2747 = vsub.f32 1.0, %v2746
  %v2748 = vmul.f32 %v2745, %v2747
  %v2749 = vadd.f32 %v2745, %v2748
  %vm2750 = vweird.f32 %v2744
  %vm2751 = vweird.f32 %v2745
  %vm2752 = vmor %vm2750, %vm2751
  %v2753 = vsel %vm2752, %v2745, %v2749
  %v2754 = vand.u32 2147483647, %v2744
  %vm2755 = vcmp.eq.f32.partialorder %v2754, 8.507059e+37
  %v2756 = vand.u32 %v2744, 2147483648
  %v2757 = vor.u32 1.1754944e-38, %v2756
  %v2758 = vsel %vm2755, %v2757, %v2753
  %v2759 = vmul.f32 1.0, %v2758
  %v2760 = vtanh.pop %v2738
  %v2761 = vmul.f32 %v2759, %v2641
  %2763 = vrot.lane.b32.xlu0 %v2760, 32
  %v2764 = vpop.permute.xlu0 %2763
  %v2766 = vmul.f32 %v2759, %v2764
  %2768 = vrot.lane.b32.xlu0 %v2766, 32
  %v2769 = vpop.permute.xlu0 %2768
  %v2771 = vadd.f32 %v2761, %v2769
  %v2772 = vtanh.pop %v2771
  %2774 = vrot.lane.b32.xlu0 %v2772, 32
  %v2775 = vpop.permute.xlu0 %2774
  %v2777 = vmul.f32 %v2759, %v2775
  %v2778 = vxor.u32 %v2740, 2147483648
  %v2779 = vmul.f32 %v2778, 1.442695
  %v2780 = vpow.pop %v2779
  %v2781 = vadd.f32 %v2780, 1.0
  %v2782 = vrcp.pop %v2781
  %v2783 = vmul.f32 %v2781, %v2782
  %v2784 = vsub.f32 1.0, %v2783
  %v2785 = vmul.f32 %v2782, %v2784
  %v2786 = vadd.f32 %v2782, %v2785
  %vm2787 = vweird.f32 %v2781
  %vm2788 = vweird.f32 %v2782
  %vm2789 = vmor %vm2787, %vm2788
  %v2790 = vsel %vm2789, %v2782, %v2786
  %v2791 = vand.u32 2147483647, %v2781
  %vm2792 = vcmp.eq.f32.partialorder %v2791, 8.507059e+37
  %v2793 = vand.u32 %v2781, 2147483648
  %v2794 = vor.u32 1.1754944e-38, %v2793
  %v2795 = vsel %vm2792, %v2794, %v2790
  %v2796 = vmul.f32 1.0, %v2795
  %v2797 = vtanh.pop %v2740
  %v2798 = vmul.f32 %v2796, %v2678
  %2800 = vrot.lane.b32.xlu0 %v2797, 32
  %v2801 = vpop.permute.xlu0 %2800
  %v2803 = vmul.f32 %v2796, %v2801
  %2805 = vrot.lane.b32.xlu0 %v2803, 32
  %v2806 = vpop.permute.xlu0 %2805
  %v2808 = vadd.f32 %v2798, %v2806
  %v2809 = vtanh.pop %v2808
  %2811 = vrot.lane.b32.xlu0 %v2809, 32
  %v2812 = vpop.permute.xlu0 %2811
  %v2814 = vmul.f32 %v2796, %v2812
  %2816 = vrot.lane.b32.xlu0 %v2777, 64
  %v2817 = vpop.permute.xlu0 %2816
  %2820 = vrot.lane.b32.xlu0 %v2814, 96
  %v2821 = vpop.permute.xlu0 %2820
  %v2823 = vsel %vm938, %v2817, %v2821
  %v2825 = vsel %vm804, %v2823, 0
  %2827 = vmatpush.msra.mxu0 0.0
  %2828 = vmatpush.msra.mxu0 0.0
  %2829 = vmatpush.msra.mxu0 0.0
  %2830 = vmatpush.msra.mxu0 0.0
  %2831 = vmatpush.msra.mxu0 0.0
  %2832 = vmatpush.msra.mxu0 0.0
  %2833 = vmatpush.msra.mxu0 0.0
  %2834 = vmatpush.msra.mxu0 0.0
  %2835 = vmatpush.msra.mxu0 %v2034
  %2836 = vmatpush.msra.mxu0 %v2032
  %2837 = vmatpush.msra.mxu0 %v2030
  %2838 = vmatpush.msra.mxu0 %v2028
  %2839 = vmatpush.msra.mxu0 %v2026
  %2840 = vmatpush.msra.mxu0 %v2024
  %2841 = vmatpush.msra.mxu0 %v2022
  %2842 = vmatpush.msra.mxu0 %v2020
  %2843 = vmatmul.f32.gmra.mxu0 %v2825
  %v2844 = vpop.f32.mrf.mxu0
  %v2845 = vadd.f32 0.0, %v2844
  %2846 = vdwg.mxu0
  %2847 = vmatpush.msra.mxu0 0.0
  %2848 = vmatpush.msra.mxu0 0.0
  %2849 = vmatpush.msra.mxu0 0.0
  %2850 = vmatpush.msra.mxu0 0.0
  %2851 = vmatpush.msra.mxu0 0.0
  %2852 = vmatpush.msra.mxu0 0.0
  %2853 = vmatpush.msra.mxu0 0.0
  %2854 = vmatpush.msra.mxu0 0.0
  %2855 = vmatpush.msra.mxu0 %v2035
  %2856 = vmatpush.msra.mxu0 %v2033
  %2857 = vmatpush.msra.mxu0 %v2031
  %2858 = vmatpush.msra.mxu0 %v2029
  %2859 = vmatpush.msra.mxu0 %v2027
  %2860 = vmatpush.msra.mxu0 %v2025
  %2861 = vmatpush.msra.mxu0 %v2023
  %2862 = vmatpush.msra.mxu0 %v2021
  %2863 = vmatmul.f32.gmra.mxu0 %v2825
  %v2864 = vpop.f32.mrf.mxu0
  %v2865 = vadd.f32 0.0, %v2864
  %2866 = vdwg.mxu0
  %v2867 = vld [vmem:[#allocation2 + $0x60] sm:$0xff]
  %v2868 = vadd.f32 %v2867, %v2845
  %v2869 = vld [vmem:[#allocation2 + $0x18] sm:$0xff]
  %v2870 = vadd.f32 %v2869, %v2865
  %v2871 = vxor.u32 %v2868, 2147483648
  %v2872 = vmul.f32 %v2871, 1.442695
  %v2873 = vpow.pop %v2872
  %v2874 = vadd.f32 %v2873, 1.0
  %v2875 = vrcp.pop %v2874
  %v2876 = vmul.f32 %v2874, %v2875
  %v2877 = vsub.f32 1.0, %v2876
  %v2878 = vmul.f32 %v2875, %v2877
  %v2879 = vadd.f32 %v2875, %v2878
  %vm2880 = vweird.f32 %v2874
  %vm2881 = vweird.f32 %v2875
  %vm2882 = vmor %vm2880, %vm2881
  %v2883 = vsel %vm2882, %v2875, %v2879
  %v2884 = vand.u32 2147483647, %v2874
  %vm2885 = vcmp.eq.f32.partialorder %v2884, 8.507059e+37
  %v2886 = vand.u32 %v2874, 2147483648
  %v2887 = vor.u32 1.1754944e-38, %v2886
  %v2888 = vsel %vm2885, %v2887, %v2883
  %v2889 = vmul.f32 1.0, %v2888
  %v2890 = vtanh.pop %v2868
  %v2891 = vmul.f32 %v2889, %v2771
  %2893 = vrot.lane.b32.xlu0 %v2890, 32
  %v2894 = vpop.permute.xlu0 %2893
  %v2896 = vmul.f32 %v2889, %v2894
  %2898 = vrot.lane.b32.xlu0 %v2896, 32
  %v2899 = vpop.permute.xlu0 %2898
  %v2901 = vadd.f32 %v2891, %v2899
  %v2902 = vtanh.pop %v2901
  %2904 = vrot.lane.b32.xlu0 %v2902, 32
  %v2905 = vpop.permute.xlu0 %2904
  %v2907 = vmul.f32 %v2889, %v2905
  %v2908 = vxor.u32 %v2870, 2147483648
  %v2909 = vmul.f32 %v2908, 1.442695
  %v2910 = vpow.pop %v2909
  %v2911 = vadd.f32 %v2910, 1.0
  %v2912 = vrcp.pop %v2911
  %v2913 = vmul.f32 %v2911, %v2912
  %v2914 = vsub.f32 1.0, %v2913
  %v2915 = vmul.f32 %v2912, %v2914
  %v2916 = vadd.f32 %v2912, %v2915
  %vm2917 = vweird.f32 %v2911
  %vm2918 = vweird.f32 %v2912
  %vm2919 = vmor %vm2917, %vm2918
  %v2920 = vsel %vm2919, %v2912, %v2916
  %v2921 = vand.u32 2147483647, %v2911
  %vm2922 = vcmp.eq.f32.partialorder %v2921, 8.507059e+37
  %v2923 = vand.u32 %v2911, 2147483648
  %v2924 = vor.u32 1.1754944e-38, %v2923
  %v2925 = vsel %vm2922, %v2924, %v2920
  %v2926 = vmul.f32 1.0, %v2925
  %v2927 = vtanh.pop %v2870
  %v2928 = vmul.f32 %v2926, %v2808
  %2930 = vrot.lane.b32.xlu0 %v2927, 32
  %v2931 = vpop.permute.xlu0 %2930
  %v2933 = vmul.f32 %v2926, %v2931
  %2935 = vrot.lane.b32.xlu0 %v2933, 32
  %v2936 = vpop.permute.xlu0 %2935
  %v2938 = vadd.f32 %v2928, %v2936
  %v2939 = vtanh.pop %v2938
  %2941 = vrot.lane.b32.xlu0 %v2939, 32
  %v2942 = vpop.permute.xlu0 %2941
  %v2944 = vmul.f32 %v2926, %v2942
  %2946 = vrot.lane.b32.xlu0 %v2907, 64
  %v2947 = vpop.permute.xlu0 %2946
  %2950 = vrot.lane.b32.xlu0 %v2944, 96
  %v2951 = vpop.permute.xlu0 %2950
  %v2953 = vsel %vm938, %v2947, %v2951
  %v2955 = vsel %vm804, %v2953, 0
  %2957 = vmatpush.msra.mxu0 0.0
  %2958 = vmatpush.msra.mxu0 0.0
  %2959 = vmatpush.msra.mxu0 0.0
  %2960 = vmatpush.msra.mxu0 0.0
  %2961 = vmatpush.msra.mxu0 0.0
  %2962 = vmatpush.msra.mxu0 0.0
  %2963 = vmatpush.msra.mxu0 0.0
  %2964 = vmatpush.msra.mxu0 0.0
  %2965 = vmatpush.msra.mxu0 %v2034
  %2966 = vmatpush.msra.mxu0 %v2032
  %2967 = vmatpush.msra.mxu0 %v2030
  %2968 = vmatpush.msra.mxu0 %v2028
  %2969 = vmatpush.msra.mxu0 %v2026
  %2970 = vmatpush.msra.mxu0 %v2024
  %2971 = vmatpush.msra.mxu0 %v2022
  %2972 = vmatpush.msra.mxu0 %v2020
  %2973 = vmatmul.f32.gmra.mxu0 %v2955
  %v2974 = vpop.f32.mrf.mxu0
  %v2975 = vadd.f32 0.0, %v2974
  %2976 = vdwg.mxu0
  %2977 = vmatpush.msra.mxu0 0.0
  %2978 = vmatpush.msra.mxu0 0.0
  %2979 = vmatpush.msra.mxu0 0.0
  %2980 = vmatpush.msra.mxu0 0.0
  %2981 = vmatpush.msra.mxu0 0.0
  %2982 = vmatpush.msra.mxu0 0.0
  %2983 = vmatpush.msra.mxu0 0.0
  %2984 = vmatpush.msra.mxu0 0.0
  %2985 = vmatpush.msra.mxu0 %v2035
  %2986 = vmatpush.msra.mxu0 %v2033
  %2987 = vmatpush.msra.mxu0 %v2031
  %2988 = vmatpush.msra.mxu0 %v2029
  %2989 = vmatpush.msra.mxu0 %v2027
  %2990 = vmatpush.msra.mxu0 %v2025
  %2991 = vmatpush.msra.mxu0 %v2023
  %2992 = vmatpush.msra.mxu0 %v2021
  %2993 = vmatmul.f32.gmra.mxu0 %v2955
  %v2994 = vpop.f32.mrf.mxu0
  %v2995 = vadd.f32 0.0, %v2994
  %2996 = vdwg.mxu0
  %v2997 = vld [vmem:[#allocation2 + $0x70] sm:$0xff]
  %v2998 = vadd.f32 %v2997, %v2975
  %v2999 = vld [vmem:[#allocation2 + $0x8] sm:$0xff]
  %v3000 = vadd.f32 %v2999, %v2995
  %v3001 = vxor.u32 %v2998, 2147483648
  %v3002 = vmul.f32 %v3001, 1.442695
  %v3003 = vpow.pop %v3002
  %v3004 = vadd.f32 %v3003, 1.0
  %v3005 = vrcp.pop %v3004
  %v3006 = vmul.f32 %v3004, %v3005
  %v3007 = vsub.f32 1.0, %v3006
  %v3008 = vmul.f32 %v3005, %v3007
  %v3009 = vadd.f32 %v3005, %v3008
  %vm3010 = vweird.f32 %v3004
  %vm3011 = vweird.f32 %v3005
  %vm3012 = vmor %vm3010, %vm3011
  %v3013 = vsel %vm3012, %v3005, %v3009
  %v3014 = vand.u32 2147483647, %v3004
  %vm3015 = vcmp.eq.f32.partialorder %v3014, 8.507059e+37
  %v3016 = vand.u32 %v3004, 2147483648
  %v3017 = vor.u32 1.1754944e-38, %v3016
  %v3018 = vsel %vm3015, %v3017, %v3013
  %v3019 = vmul.f32 1.0, %v3018
  %v3020 = vtanh.pop %v2998
  %v3021 = vmul.f32 %v3019, %v2901
  %3023 = vrot.lane.b32.xlu0 %v3020, 32
  %v3024 = vpop.permute.xlu0 %3023
  %v3026 = vmul.f32 %v3019, %v3024
  %3028 = vrot.lane.b32.xlu0 %v3026, 32
  %v3029 = vpop.permute.xlu0 %3028
  %v3031 = vadd.f32 %v3021, %v3029
  %v3032 = vtanh.pop %v3031
  %3034 = vrot.lane.b32.xlu0 %v3032, 32
  %v3035 = vpop.permute.xlu0 %3034
  %v3037 = vmul.f32 %v3019, %v3035
  %v3038 = vxor.u32 %v3000, 2147483648
  %v3039 = vmul.f32 %v3038, 1.442695
  %v3040 = vpow.pop %v3039
  %v3041 = vadd.f32 %v3040, 1.0
  %v3042 = vrcp.pop %v3041
  %v3043 = vmul.f32 %v3041, %v3042
  %v3044 = vsub.f32 1.0, %v3043
  %v3045 = vmul.f32 %v3042, %v3044
  %v3046 = vadd.f32 %v3042, %v3045
  %vm3047 = vweird.f32 %v3041
  %vm3048 = vweird.f32 %v3042
  %vm3049 = vmor %vm3047, %vm3048
  %v3050 = vsel %vm3049, %v3042, %v3046
  %v3051 = vand.u32 2147483647, %v3041
  %vm3052 = vcmp.eq.f32.partialorder %v3051, 8.507059e+37
  %v3053 = vand.u32 %v3041, 2147483648
  %v3054 = vor.u32 1.1754944e-38, %v3053
  %v3055 = vsel %vm3052, %v3054, %v3050
  %v3056 = vmul.f32 1.0, %v3055
  %v3057 = vtanh.pop %v3000
  %v3058 = vmul.f32 %v3056, %v2938
  %3060 = vrot.lane.b32.xlu0 %v3057, 32
  %v3061 = vpop.permute.xlu0 %3060
  %v3063 = vmul.f32 %v3056, %v3061
  %3065 = vrot.lane.b32.xlu0 %v3063, 32
  %v3066 = vpop.permute.xlu0 %3065
  %v3068 = vadd.f32 %v3058, %v3066
  %v3069 = vtanh.pop %v3068
  %3071 = vrot.lane.b32.xlu0 %v3069, 32
  %v3072 = vpop.permute.xlu0 %3071
  %v3074 = vmul.f32 %v3056, %v3072
  %3076 = vrot.lane.b32.xlu0 %v3037, 64
  %v3077 = vpop.permute.xlu0 %3076
  %3080 = vrot.lane.b32.xlu0 %v3074, 96
  %v3081 = vpop.permute.xlu0 %3080
  %v3083 = vsel %vm938, %v3077, %v3081
  %v3084 = vld [vmem:[%s7] sm:$0xff]
  %v3085 = vld [vmem:[%s7 + $0x8] sm:$0xff]
  %v3086 = vld [vmem:[%s7 + $0x10] sm:$0xff]
  %v3087 = vld [vmem:[%s7 + $0x18] sm:$0xff]
  %v3088 = vld [vmem:[%s7 + $0x20] sm:$0xff]
  %v3089 = vld [vmem:[%s7 + $0x28] sm:$0xff]
  %v3090 = vld [vmem:[%s7 + $0x30] sm:$0xff]
  %v3091 = vld [vmem:[%s7 + $0x38] sm:$0xff]
  %v3092 = vld [vmem:[%s8] sm:$0x1]
  %v3094 = vperm.slane %v3092, 0
  %v3097 = vsel %vm804, %v3083, 0
  %3099 = vmatpush.msra.mxu0 0.0
  %3100 = vmatpush.msra.mxu0 0.0
  %3101 = vmatpush.msra.mxu0 0.0
  %3102 = vmatpush.msra.mxu0 0.0
  %3103 = vmatpush.msra.mxu0 0.0
  %3104 = vmatpush.msra.mxu0 0.0
  %3105 = vmatpush.msra.mxu0 0.0
  %3106 = vmatpush.msra.mxu0 0.0
  %3107 = vmatpush.msra.mxu0 %v3091
  %3108 = vmatpush.msra.mxu0 %v3090
  %3109 = vmatpush.msra.mxu0 %v3089
  %3110 = vmatpush.msra.mxu0 %v3088
  %3111 = vmatpush.msra.mxu0 %v3087
  %3112 = vmatpush.msra.mxu0 %v3086
  %3113 = vmatpush.msra.mxu0 %v3085
  %3114 = vmatpush.msra.mxu0 %v3084
  %3115 = vmatmul.f32.gmra.mxu0 %v3097
  %v3116 = vpop.f32.mrf.mxu0
  %v3117 = vadd.f32 %v3094, %v3116
  %3118 = vdwg.mxu0
  %vm3119 = vcmask 31744
  %3120 = vst.msk [vmem:[%s9] sm:$0xff] %vm3119, %v3117
  // Predicated region
  $region38: #{bert_lstm_forward.1} parent=0 // pred_check
    _
  $region39: #{bert_lstm_forward.1} parent=0 // pred_check_branch
    %3122 = sbr.rel (0) target = $region41
  $region40: #{bert_lstm_forward.1} parent=0 // pred_region
    _
  $region41: #{bert_lstm_forward.1} parent=0 // pred_fallthru
    _
  // Predicated region
  $region42: #{bert_lstm_forward.1} parent=0 // pred_check
    _
  $region43: #{bert_lstm_forward.1} parent=0 // pred_check_branch
    %3124 = sbr.rel (0) target = $region45
  $region44: #{bert_lstm_forward.1} parent=0 // pred_region
    _
  $region45: #{bert_lstm_forward.1} parent=0 // pred_fallthru
    _

</llo_original>
